<compile_context>
chip_gen: v6e
topology: v6e:2x2x1
jax: 0.10.0
libtpu: 0.0.40
codegen_flags: <defaults>
</compile_context>

<pallas_src>
import functools

import jax
import jax.numpy as jnp
from jax.experimental import pallas as pl
from jax.experimental.pallas import tpu as pltpu

# ------------------------- config (arg_parser substitute) -------------------
EMBED_DIM = 32
N_HEADS = 4
N_LAYERS = 2
FF_HIDDEN = 64
N_ROW = 5
N_COL = 5
RETURN_DEPOT = True
MAX_N_CUSTOMERS = 15
MATMUL_DTYPE = jnp.bfloat16     # MXU operand dtype; accumulation stays f32


# ------------------------------- kernel -------------------------------------
def _encoder_kernel(
    x1_in_ref, x2_in_ref, kmask2_ref,
    w_emb1_ref, w_emb2_ref, b_emb2_ref,
    wqkv_ref, wo_ref,
    g1_ref, be1_ref, w1_ref, b1_ref, w2_ref, b2_ref, g2_ref, be2_ref,
    x1_out_ref, gemb_out_ref, x2_out_ref,
    *, n_heads, n_layers):
    """Processes ONE batch element per grid step (grid=(B,), axis 'parallel')."""
    D = x1_out_ref.shape[-1]
    dh = D // n_heads
    scale = 1.0 / (dh ** 0.5)
    mm = wqkv_ref.dtype                               # bf16 MXU operand dtype

    def layer_norm(h, g, b):
        mu = jnp.mean(h, axis=-1, keepdims=True)
        var = jnp.mean(jnp.square(h - mu), axis=-1, keepdims=True)
        return (h - mu) * jax.lax.rsqrt(var + 1e-5) * g + b

    def encoder_layer(x, l, key_bias):
        # x: (N, D) f32 activations for one batch element.
        qkv = jnp.dot(x.astype(mm), wqkv_ref[l],
                      preferred_element_type=jnp.float32)          # (N, 3D)
        head_outs = []
        for h in range(n_heads):                                   # static unroll
            q = qkv[:, h * dh:(h + 1) * dh].astype(mm)
            k = qkv[:, D + h * dh:D + (h + 1) * dh].astype(mm)
            v = qkv[:, 2 * D + h * dh:2 * D + (h + 1) * dh].astype(mm)
            logits = jax.lax.dot_general(
                q, k, (((1,), (1,)), ((), ())),
                preferred_element_type=jnp.float32) * scale        # (N, N) f32
            if key_bias is not None:
                logits = logits + key_bias                         # mask keys
            mx = jnp.max(logits, axis=-1, keepdims=True)
            e = jnp.exp(logits - mx)
            p = e / jnp.sum(e, axis=-1, keepdims=True)             # exact softmax
            head_outs.append(jnp.dot(p.astype(mm), v,
                                     preferred_element_type=jnp.float32))
        attn = jnp.dot(jnp.concatenate(head_outs, axis=-1).astype(mm),
                       wo_ref[l], preferred_element_type=jnp.float32)

        h1 = layer_norm(x + attn, g1_ref[l], be1_ref[l])           # residual + LN
        ff = jnp.maximum(
            jnp.dot(h1.astype(mm), w1_ref[l],
                    preferred_element_type=jnp.float32) + b1_ref[l], 0.0)
        ff = jnp.dot(ff.astype(mm), w2_ref[l],
                     preferred_element_type=jnp.float32) + b2_ref[l]
        return layer_norm(h1 + ff, g2_ref[l], be2_ref[l])          # residual + LN

    # -- fused initial embeddings (one matmul per node type) --
    x1 = jnp.dot(x1_in_ref[...].astype(mm), w_emb1_ref[...],
                 preferred_element_type=jnp.float32)               # (N1, D)
    x2 = (jnp.dot(x2_in_ref[...].astype(mm), w_emb2_ref[...],
                  preferred_element_type=jnp.float32)
          + b_emb2_ref[...])                                       # (N2, D)

    key_bias2 = kmask2_ref[...]                                    # (1, N2): 0 / -1e9

    for l in range(n_layers):                                      # task stack
        x1 = encoder_layer(x1, l, None)
    for l in range(n_layers):                                      # courier stack
        x2 = encoder_layer(x2, n_layers + l, key_bias2)

    x1_out_ref[...] = x1
    x2_out_ref[...] = x2
    gemb_out_ref[...] = jnp.mean(x1, axis=0, keepdims=True)        # graph embedding


# ----------------------------- parameter init -------------------------------
def _linear_init(key, fan_in, fan_out):
    k1, k2 = jax.random.split(key)
    lim = 1.0 / (fan_in ** 0.5)
    w = jax.random.uniform(k1, (fan_in, fan_out), jnp.float32, -lim, lim)
    b = jax.random.uniform(k2, (1, fan_out), jnp.float32, -lim, lim)
    return w, b


def _encoder_layer_init(key, d, f):
    ks = jax.random.split(key, 6)
    s = 1.0 / (d ** 0.5)
    p = {
        "wq": jax.random.normal(ks[0], (d, d), jnp.float32) * s,
        "wk": jax.random.normal(ks[1], (d, d), jnp.float32) * s,
        "wv": jax.random.normal(ks[2], (d, d), jnp.float32) * s,
        "wo": jax.random.normal(ks[3], (d, d), jnp.float32) * s,
        "g1": jnp.ones((1, d), jnp.float32),
        "be1": jnp.zeros((1, d), jnp.float32),
        "g2": jnp.ones((1, d), jnp.float32),
        "be2": jnp.zeros((1, d), jnp.float32),
    }
    p["w1"], p["b1"] = _linear_init(ks[4], d, f)
    p["w2"], p["b2"] = _linear_init(ks[5], f, d)
    return p


def init_params(key):
    ks = jax.random.split(key, 4 + 2 * N_LAYERS)
    D = EMBED_DIM
    oh, ow = N_ROW - 1, N_COL - 1
    p = {}
    p["w_depot"], p["b_depot"] = _linear_init(ks[0], 2, D)
    p["w_init"], p["b_init"] = _linear_init(ks[1], 4, D)
    # conv weight: PyTorch (3,1,2,2) -> im2col matmul form (4, 3)
    p["w_conv"], p["b_conv"] = _linear_init(ks[2], 4, 3)
    p["w_lin"], p["b_lin"] = _linear_init(ks[3], 3 * oh * ow, D)
    p["task_layers"] = [_encoder_layer_init(ks[4 + i], D, FF_HIDDEN)
                        for i in range(N_LAYERS)]
    p["courier_layers"] = [_encoder_layer_init(ks[4 + N_LAYERS + i], D, FF_HIDDEN)
                           for i in range(N_LAYERS)]
    return p


def pack_params(params):
    """One-time host-side weight fusion for the kernel (QKV fused, bf16 MXU slabs)."""
    D = EMBED_DIM
    oh, ow = N_ROW - 1, N_COL - 1
    P = oh * ow * 4
    mm = MATMUL_DTYPE
    packed = {}

    # fused depot/grid initial embedding: input cols are
    # [depot_xy(2), grid_feat(4), depot_bias_ind(1), grid_bias_ind(1)]
    packed["w_emb1"] = jnp.concatenate(
        [params["w_depot"], params["w_init"],
         params["b_depot"], params["b_init"]], axis=0).astype(mm)       # (8, D)

    # pre-compose Conv2d(1,3,k=2) (im2col form (4,3)) with Linear(3*oh*ow, D);
    # matches torch conv -> .reshape(bs,-1) (channel-major) -> linear exactly
    # (no nonlinearity between them in the reference).
    w_lin3 = params["w_lin"].reshape(3, oh * ow, D)                     # (c, p, D)
    packed["w_emb2"] = jnp.einsum(
        "kc,cpd->pkd", params["w_conv"], w_lin3).reshape(P, D).astype(mm)  # (P, D)
    packed["b_emb2"] = (params["b_conv"] @ jnp.sum(w_lin3, axis=1)
                        + params["b_lin"]).astype(jnp.float32)          # (1, D)

    layers = params["task_layers"] + params["courier_layers"]           # 2L layers
    packed["wqkv"] = jnp.stack(
        [jnp.concatenate([lp["wq"], lp["wk"], lp["wv"]], axis=1) for lp in layers],
        axis=0).astype(mm)                                              # (2L, D, 3D)
    packed["wo"] = jnp.stack([lp["wo"] for lp in layers], axis=0).astype(mm)
    packed["w1"] = jnp.stack([lp["w1"] for lp in layers], axis=0).astype(mm)
    packed["w2"] = jnp.stack([lp["w2"] for lp in layers], axis=0).astype(mm)
    for k in ("g1", "be1", "b1", "b2", "g2", "be2"):                    # f32 (VPU math)
        packed[k] = jnp.stack([lp[k] for lp in layers], axis=0)
    return packed


# --------------------------------- forward ----------------------------------
@jax.jit
def graph_attention_encoder(packed, x, mask2=None):
    depot, grids, customers, graph = x[0], x[1], x[2], x[3]
    bs, max_n_couriers, _ = customers.shape
    D = EMBED_DIM
    n_grid = grids.shape[1]
    N1 = 1 + n_grid
    N2 = max_n_couriers
    oh, ow = N_ROW - 1, N_COL - 1
    P = oh * ow * 4

    # -- input formatting (pure data movement, fused by XLA under jit) --
    if RETURN_DEPOT:
        depot_xy = depot[:, :, 0:2]                                   # (bs, 1, 2)
    else:
        depot_xy = jnp.mean(depot, axis=1)[:, None, 0:2]
    depot_rows = jnp.concatenate(
        [depot_xy,
         jnp.zeros((bs, 1, 4), jnp.float32),
         jnp.ones((bs, 1, 1), jnp.float32),
         jnp.zeros((bs, 1, 1), jnp.float32)], axis=-1)
    grid_rows = jnp.concatenate(
        [jnp.zeros((bs, n_grid, 2), jnp.float32),
         grids.astype(jnp.float32),
         jnp.zeros((bs, n_grid, 1), jnp.float32),
         jnp.ones((bs, n_grid, 1), jnp.float32)], axis=-1)
    x1_in = jnp.concatenate([depot_rows, grid_rows], axis=1)          # (bs, N1, 8)

    g = graph.reshape(bs, N2, N_ROW, N_COL).astype(jnp.float32)       # NCHW, C=1
    patches = jnp.stack([g[..., :-1, :-1], g[..., :-1, 1:],
                         g[..., 1:, :-1], g[..., 1:, 1:]], axis=-1)   # (bs,N2,oh,ow,4)
    x2_in = patches.reshape(bs, N2, P)                                # (bs, N2, P)

    if mask2 is None:
        kmask2 = jnp.zeros((bs, 1, N2), jnp.float32)
    else:
        kmask2 = jnp.where(mask2, -1e9, 0.0).astype(jnp.float32).reshape(bs, 1, N2)

    def resident(arr):  # whole-array weight, VMEM-resident across all grid steps
        return pl.BlockSpec(arr.shape, lambda b, _nd=arr.ndim: (0,) * _nd)

    weight_keys = ("w_emb1", "w_emb2", "b_emb2", "wqkv", "wo",
                   "g1", "be1", "w1", "b1", "w2", "b2", "g2", "be2")

    kernel = functools.partial(_encoder_kernel, n_heads=N_HEADS, n_layers=N_LAYERS)
    x1_out, gemb, x2_out = pl.pallas_call(
        kernel,
        grid=(bs,),
        out_shape=(jax.ShapeDtypeStruct((bs, N1, D), jnp.float32),
                   jax.ShapeDtypeStruct((bs, 1, D), jnp.float32),
                   jax.ShapeDtypeStruct((bs, N2, D), jnp.float32)),
        in_specs=[pl.BlockSpec((None, N1, 8), lambda b: (b, 0, 0)),
                  pl.BlockSpec((None, N2, P), lambda b: (b, 0, 0)),
                  pl.BlockSpec((None, 1, N2), lambda b: (b, 0, 0))]
                 + [resident(packed[k]) for k in weight_keys],
        out_specs=(pl.BlockSpec((None, N1, D), lambda b: (b, 0, 0)),
                   pl.BlockSpec((None, 1, D), lambda b: (b, 0, 0)),
                   pl.BlockSpec((None, N2, D), lambda b: (b, 0, 0))),
        compiler_params=pltpu.CompilerParams(dimension_semantics=("parallel",)),
    )(x1_in, x2_in, kmask2, *[packed[k] for k in weight_keys])

    return x1_out, gemb.reshape(bs, D), x2_out


# ----------------------------------- main ------------------------------------
if __name__ == "__main__":
    key = jax.random.PRNGKey(0)
    ks = jax.random.split(key, 5)
    bs = 2
    max_n_couriers = 3
    n_grid = 15

    depot = jax.random.uniform(ks[0], (bs, 1, 4), jnp.float32)
    grids = jax.random.uniform(ks[1], (bs, n_grid, 4), jnp.float32)
    customers = jax.random.uniform(
        ks[2], (bs, max_n_couriers, 2 * MAX_N_CUSTOMERS), jnp.float32)
    cust_graph = jax.random.uniform(
        ks[3], (bs, max_n_couriers, 1, N_ROW, N_COL), jnp.float32)
    ntask = jnp.zeros((bs,), jnp.float32)                    # unused by forward
    mask2 = jnp.array([[False, False, True],
                       [False, False, False]])               # worker pad mask

    params = init_params(jax.random.PRNGKey(42))
    packed = pack_params(params)

    x1, graph_emb, x2 = graph_attention_encoder(
        packed, (depot, grids, customers, cust_graph, ntask), mask2)
    jax.block_until_ready((x1, graph_emb, x2))

    assert x1.shape == (bs, 1 + n_grid, EMBED_DIM)
    assert graph_emb.shape == (bs, EMBED_DIM)
    assert x2.shape == (bs, max_n_couriers, EMBED_DIM)
    assert bool(jnp.all(jnp.isfinite(x1))) and bool(jnp.all(jnp.isfinite(x2)))
    assert bool(jnp.all(jnp.isfinite(graph_emb)))
    print("KERNEL_OK")
</pallas_src>

<mosaic_0001>
module attributes {stable_mosaic.version = 11 : i64} {
  func.func @_encoder_kernel(%arg0: i32, %arg1: memref<1x16x8xf32, #tpu.memory_space<vmem>>, %arg2: memref<1x3x64xf32, #tpu.memory_space<vmem>>, %arg3: memref<1x1x3xf32, #tpu.memory_space<vmem>>, %arg4: memref<8x32xbf16, #tpu.memory_space<vmem>>, %arg5: memref<64x32xbf16, #tpu.memory_space<vmem>>, %arg6: memref<1x32xf32, #tpu.memory_space<vmem>>, %arg7: memref<4x32x96xbf16, #tpu.memory_space<vmem>>, %arg8: memref<4x32x32xbf16, #tpu.memory_space<vmem>>, %arg9: memref<4x1x32xf32, #tpu.memory_space<vmem>>, %arg10: memref<4x1x32xf32, #tpu.memory_space<vmem>>, %arg11: memref<4x32x64xbf16, #tpu.memory_space<vmem>>, %arg12: memref<4x1x64xf32, #tpu.memory_space<vmem>>, %arg13: memref<4x64x32xbf16, #tpu.memory_space<vmem>>, %arg14: memref<4x1x32xf32, #tpu.memory_space<vmem>>, %arg15: memref<4x1x32xf32, #tpu.memory_space<vmem>>, %arg16: memref<4x1x32xf32, #tpu.memory_space<vmem>>, %arg17: memref<1x16x32xf32, #tpu.memory_space<vmem>>, %arg18: memref<1x1x32xf32, #tpu.memory_space<vmem>>, %arg19: memref<1x3x32xf32, #tpu.memory_space<vmem>>) attributes {dimension_semantics = [#tpu.dimension_semantics<parallel>], iteration_bounds = array<i64: 2>, scalar_prefetch = 0 : i64, scratch_operands = 0 : i64, tpu.core_type = #tpu.core_type<tc>, window_params = [{transform_indices = @transform_0, window_bounds = array<i64: 1, 16, 8>}, {transform_indices = @transform_1, window_bounds = array<i64: 1, 3, 64>}, {transform_indices = @transform_2, window_bounds = array<i64: 1, 1, 3>}, {pipeline_mode = #tpu.pipeline_mode<synchronous>, transform_indices = @transform_3, window_bounds = array<i64: 8, 32>}, {pipeline_mode = #tpu.pipeline_mode<synchronous>, transform_indices = @transform_4, window_bounds = array<i64: 64, 32>}, {pipeline_mode = #tpu.pipeline_mode<synchronous>, transform_indices = @transform_5, window_bounds = array<i64: 1, 32>}, {pipeline_mode = #tpu.pipeline_mode<synchronous>, transform_indices = @transform_6, window_bounds = array<i64: 4, 32, 96>}, {pipeline_mode = #tpu.pipeline_mode<synchronous>, transform_indices = @transform_7, window_bounds = array<i64: 4, 32, 32>}, {pipeline_mode = #tpu.pipeline_mode<synchronous>, transform_indices = @transform_8, window_bounds = array<i64: 4, 1, 32>}, {pipeline_mode = #tpu.pipeline_mode<synchronous>, transform_indices = @transform_9, window_bounds = array<i64: 4, 1, 32>}, {pipeline_mode = #tpu.pipeline_mode<synchronous>, transform_indices = @transform_10, window_bounds = array<i64: 4, 32, 64>}, {pipeline_mode = #tpu.pipeline_mode<synchronous>, transform_indices = @transform_11, window_bounds = array<i64: 4, 1, 64>}, {pipeline_mode = #tpu.pipeline_mode<synchronous>, transform_indices = @transform_12, window_bounds = array<i64: 4, 64, 32>}, {pipeline_mode = #tpu.pipeline_mode<synchronous>, transform_indices = @transform_13, window_bounds = array<i64: 4, 1, 32>}, {pipeline_mode = #tpu.pipeline_mode<synchronous>, transform_indices = @transform_14, window_bounds = array<i64: 4, 1, 32>}, {pipeline_mode = #tpu.pipeline_mode<synchronous>, transform_indices = @transform_15, window_bounds = array<i64: 4, 1, 32>}, {transform_indices = @transform_16, window_bounds = array<i64: 1, 16, 32>}, {transform_indices = @transform_17, window_bounds = array<i64: 1, 1, 32>}, {transform_indices = @transform_18, window_bounds = array<i64: 1, 3, 32>}]} {
    %c0 = arith.constant 0 : index
    %c0_0 = arith.constant 0 : index
    %c0_1 = arith.constant 0 : index
    %0 = vector.load %arg1[%c0, %c0_0, %c0_1] : memref<1x16x8xf32, #tpu.memory_space<vmem>>, vector<1x16x8xf32>
    %1 = vector.shape_cast %0 : vector<1x16x8xf32> to vector<16x8xf32>
    %2 = arith.truncf %1 : vector<16x8xf32> to vector<16x8xbf16>
    %c0_2 = arith.constant 0 : index
    %c0_3 = arith.constant 0 : index
    %3 = vector.load %arg4[%c0_2, %c0_3] : memref<8x32xbf16, #tpu.memory_space<vmem>>, vector<8x32xbf16>
    %cst = arith.constant dense<0.000000e+00> : vector<16x32xf32>
    %4 = tpu.matmul %2, %3, %cst {dimension_numbers = #tpu.dot_dimension_numbers<[1], [0], [0], [1], [0, 0, 1, 1], [], []>} : vector<16x8xbf16>, vector<8x32xbf16>, vector<16x32xf32> -> vector<16x32xf32>
    %c0_4 = arith.constant 0 : index
    %c0_5 = arith.constant 0 : index
    %c0_6 = arith.constant 0 : index
    %5 = vector.load %arg2[%c0_4, %c0_5, %c0_6] : memref<1x3x64xf32, #tpu.memory_space<vmem>>, vector<1x3x64xf32>
    %6 = vector.shape_cast %5 : vector<1x3x64xf32> to vector<3x64xf32>
    %7 = arith.truncf %6 : vector<3x64xf32> to vector<3x64xbf16>
    %c0_7 = arith.constant 0 : index
    %c0_8 = arith.constant 0 : index
    %8 = vector.load %arg5[%c0_7, %c0_8] : memref<64x32xbf16, #tpu.memory_space<vmem>>, vector<64x32xbf16>
    %cst_9 = arith.constant dense<0.000000e+00> : vector<3x32xf32>
    %9 = tpu.matmul %7, %8, %cst_9 {dimension_numbers = #tpu.dot_dimension_numbers<[1], [0], [0], [1], [0, 0, 1, 1], [], []>} : vector<3x64xbf16>, vector<64x32xbf16>, vector<3x32xf32> -> vector<3x32xf32>
    %c0_10 = arith.constant 0 : index
    %c0_11 = arith.constant 0 : index
    %10 = vector.load %arg6[%c0_10, %c0_11] : memref<1x32xf32, #tpu.memory_space<vmem>>, vector<1x32xf32>
    %11 = vector.broadcast %10 : vector<1x32xf32> to vector<3x32xf32>
    %12 = arith.addf %9, %11 : vector<3x32xf32>
    %c0_12 = arith.constant 0 : index
    %c0_13 = arith.constant 0 : index
    %c0_14 = arith.constant 0 : index
    %13 = vector.load %arg3[%c0_12, %c0_13, %c0_14] : memref<1x1x3xf32, #tpu.memory_space<vmem>>, vector<1x1x3xf32>
    %14 = vector.shape_cast %13 : vector<1x1x3xf32> to vector<1x3xf32>
    %15 = arith.truncf %4 : vector<16x32xf32> to vector<16x32xbf16>
    %c0_15 = arith.constant 0 : index
    %c0_16 = arith.constant 0 : index
    %c0_17 = arith.constant 0 : index
    %16 = vector.load %arg7[%c0_15, %c0_16, %c0_17] : memref<4x32x96xbf16, #tpu.memory_space<vmem>>, vector<1x32x96xbf16>
    %17 = vector.shape_cast %16 : vector<1x32x96xbf16> to vector<32x96xbf16>
    %cst_18 = arith.constant dense<0.000000e+00> : vector<16x96xf32>
    %18 = tpu.matmul %15, %17, %cst_18 {dimension_numbers = #tpu.dot_dimension_numbers<[1], [0], [0], [1], [0, 0, 1, 1], [], []>} : vector<16x32xbf16>, vector<32x96xbf16>, vector<16x96xf32> -> vector<16x96xf32>
    %19 = vector.extract_strided_slice %18 {offsets = [0, 0], sizes = [16, 8], strides = [1, 1]} : vector<16x96xf32> to vector<16x8xf32>
    %20 = arith.truncf %19 : vector<16x8xf32> to vector<16x8xbf16>
    %21 = vector.extract_strided_slice %18 {offsets = [0, 32], sizes = [16, 8], strides = [1, 1]} : vector<16x96xf32> to vector<16x8xf32>
    %22 = arith.truncf %21 : vector<16x8xf32> to vector<16x8xbf16>
    %23 = vector.extract_strided_slice %18 {offsets = [0, 64], sizes = [16, 8], strides = [1, 1]} : vector<16x96xf32> to vector<16x8xf32>
    %24 = arith.truncf %23 : vector<16x8xf32> to vector<16x8xbf16>
    %cst_19 = arith.constant dense<0.000000e+00> : vector<16x16xf32>
    %25 = tpu.matmul %20, %22, %cst_19 {dimension_numbers = #tpu.dot_dimension_numbers<[1], [1], [0], [0], [0, 0, 1, 0], [], []>} : vector<16x8xbf16>, vector<16x8xbf16>, vector<16x16xf32> -> vector<16x16xf32>
    %cst_20 = arith.constant 0.353553385 : f32
    %26 = vector.broadcast %cst_20 : f32 to vector<16x16xf32>
    %27 = arith.mulf %25, %26 : vector<16x16xf32>
    %cst_21 = arith.constant dense<0xFF800000> : vector<16xf32>
    %28 = vector.multi_reduction <maximumf>, %27, %cst_21 [1] : vector<16x16xf32> to vector<16xf32>
    %29 = vector.shape_cast %28 : vector<16xf32> to vector<16x1xf32>
    %30 = vector.broadcast %29 : vector<16x1xf32> to vector<16x16xf32>
    %31 = arith.subf %27, %30 : vector<16x16xf32>
    %32 = math.exp %31 : vector<16x16xf32>
    %cst_22 = arith.constant dense<0.000000e+00> : vector<16xf32>
    %33 = vector.multi_reduction <add>, %32, %cst_22 [1] : vector<16x16xf32> to vector<16xf32>
    %34 = vector.shape_cast %33 : vector<16xf32> to vector<16x1xf32>
    %35 = vector.broadcast %34 : vector<16x1xf32> to vector<16x16xf32>
    %36 = arith.divf %32, %35 : vector<16x16xf32>
    %37 = arith.truncf %36 : vector<16x16xf32> to vector<16x16xbf16>
    %cst_23 = arith.constant dense<0.000000e+00> : vector<16x8xf32>
    %38 = tpu.matmul %37, %24, %cst_23 {dimension_numbers = #tpu.dot_dimension_numbers<[1], [0], [0], [1], [0, 0, 1, 1], [], []>} : vector<16x16xbf16>, vector<16x8xbf16>, vector<16x8xf32> -> vector<16x8xf32>
    %39 = vector.extract_strided_slice %18 {offsets = [0, 8], sizes = [16, 8], strides = [1, 1]} : vector<16x96xf32> to vector<16x8xf32>
    %40 = arith.truncf %39 : vector<16x8xf32> to vector<16x8xbf16>
    %41 = vector.extract_strided_slice %18 {offsets = [0, 40], sizes = [16, 8], strides = [1, 1]} : vector<16x96xf32> to vector<16x8xf32>
    %42 = arith.truncf %41 : vector<16x8xf32> to vector<16x8xbf16>
    %43 = vector.extract_strided_slice %18 {offsets = [0, 72], sizes = [16, 8], strides = [1, 1]} : vector<16x96xf32> to vector<16x8xf32>
    %44 = arith.truncf %43 : vector<16x8xf32> to vector<16x8xbf16>
    %cst_24 = arith.constant dense<0.000000e+00> : vector<16x16xf32>
    %45 = tpu.matmul %40, %42, %cst_24 {dimension_numbers = #tpu.dot_dimension_numbers<[1], [1], [0], [0], [0, 0, 1, 0], [], []>} : vector<16x8xbf16>, vector<16x8xbf16>, vector<16x16xf32> -> vector<16x16xf32>
    %cst_25 = arith.constant 0.353553385 : f32
    %46 = vector.broadcast %cst_25 : f32 to vector<16x16xf32>
    %47 = arith.mulf %45, %46 : vector<16x16xf32>
    %cst_26 = arith.constant dense<0xFF800000> : vector<16xf32>
    %48 = vector.multi_reduction <maximumf>, %47, %cst_26 [1] : vector<16x16xf32> to vector<16xf32>
    %49 = vector.shape_cast %48 : vector<16xf32> to vector<16x1xf32>
    %50 = vector.broadcast %49 : vector<16x1xf32> to vector<16x16xf32>
    %51 = arith.subf %47, %50 : vector<16x16xf32>
    %52 = math.exp %51 : vector<16x16xf32>
    %cst_27 = arith.constant dense<0.000000e+00> : vector<16xf32>
    %53 = vector.multi_reduction <add>, %52, %cst_27 [1] : vector<16x16xf32> to vector<16xf32>
    %54 = vector.shape_cast %53 : vector<16xf32> to vector<16x1xf32>
    %55 = vector.broadcast %54 : vector<16x1xf32> to vector<16x16xf32>
    %56 = arith.divf %52, %55 : vector<16x16xf32>
    %57 = arith.truncf %56 : vector<16x16xf32> to vector<16x16xbf16>
    %cst_28 = arith.constant dense<0.000000e+00> : vector<16x8xf32>
    %58 = tpu.matmul %57, %44, %cst_28 {dimension_numbers = #tpu.dot_dimension_numbers<[1], [0], [0], [1], [0, 0, 1, 1], [], []>} : vector<16x16xbf16>, vector<16x8xbf16>, vector<16x8xf32> -> vector<16x8xf32>
    %59 = vector.extract_strided_slice %18 {offsets = [0, 16], sizes = [16, 8], strides = [1, 1]} : vector<16x96xf32> to vector<16x8xf32>
    %60 = arith.truncf %59 : vector<16x8xf32> to vector<16x8xbf16>
    %61 = vector.extract_strided_slice %18 {offsets = [0, 48], sizes = [16, 8], strides = [1, 1]} : vector<16x96xf32> to vector<16x8xf32>
    %62 = arith.truncf %61 : vector<16x8xf32> to vector<16x8xbf16>
    %63 = vector.extract_strided_slice %18 {offsets = [0, 80], sizes = [16, 8], strides = [1, 1]} : vector<16x96xf32> to vector<16x8xf32>
    %64 = arith.truncf %63 : vector<16x8xf32> to vector<16x8xbf16>
    %cst_29 = arith.constant dense<0.000000e+00> : vector<16x16xf32>
    %65 = tpu.matmul %60, %62, %cst_29 {dimension_numbers = #tpu.dot_dimension_numbers<[1], [1], [0], [0], [0, 0, 1, 0], [], []>} : vector<16x8xbf16>, vector<16x8xbf16>, vector<16x16xf32> -> vector<16x16xf32>
    %cst_30 = arith.constant 0.353553385 : f32
    %66 = vector.broadcast %cst_30 : f32 to vector<16x16xf32>
    %67 = arith.mulf %65, %66 : vector<16x16xf32>
    %cst_31 = arith.constant dense<0xFF800000> : vector<16xf32>
    %68 = vector.multi_reduction <maximumf>, %67, %cst_31 [1] : vector<16x16xf32> to vector<16xf32>
    %69 = vector.shape_cast %68 : vector<16xf32> to vector<16x1xf32>
    %70 = vector.broadcast %69 : vector<16x1xf32> to vector<16x16xf32>
    %71 = arith.subf %67, %70 : vector<16x16xf32>
    %72 = math.exp %71 : vector<16x16xf32>
    %cst_32 = arith.constant dense<0.000000e+00> : vector<16xf32>
    %73 = vector.multi_reduction <add>, %72, %cst_32 [1] : vector<16x16xf32> to vector<16xf32>
    %74 = vector.shape_cast %73 : vector<16xf32> to vector<16x1xf32>
    %75 = vector.broadcast %74 : vector<16x1xf32> to vector<16x16xf32>
    %76 = arith.divf %72, %75 : vector<16x16xf32>
    %77 = arith.truncf %76 : vector<16x16xf32> to vector<16x16xbf16>
    %cst_33 = arith.constant dense<0.000000e+00> : vector<16x8xf32>
    %78 = tpu.matmul %77, %64, %cst_33 {dimension_numbers = #tpu.dot_dimension_numbers<[1], [0], [0], [1], [0, 0, 1, 1], [], []>} : vector<16x16xbf16>, vector<16x8xbf16>, vector<16x8xf32> -> vector<16x8xf32>
    %79 = vector.extract_strided_slice %18 {offsets = [0, 24], sizes = [16, 8], strides = [1, 1]} : vector<16x96xf32> to vector<16x8xf32>
    %80 = arith.truncf %79 : vector<16x8xf32> to vector<16x8xbf16>
    %81 = vector.extract_strided_slice %18 {offsets = [0, 56], sizes = [16, 8], strides = [1, 1]} : vector<16x96xf32> to vector<16x8xf32>
    %82 = arith.truncf %81 : vector<16x8xf32> to vector<16x8xbf16>
    %83 = vector.extract_strided_slice %18 {offsets = [0, 88], sizes = [16, 8], strides = [1, 1]} : vector<16x96xf32> to vector<16x8xf32>
    %84 = arith.truncf %83 : vector<16x8xf32> to vector<16x8xbf16>
    %cst_34 = arith.constant dense<0.000000e+00> : vector<16x16xf32>
    %85 = tpu.matmul %80, %82, %cst_34 {dimension_numbers = #tpu.dot_dimension_numbers<[1], [1], [0], [0], [0, 0, 1, 0], [], []>} : vector<16x8xbf16>, vector<16x8xbf16>, vector<16x16xf32> -> vector<16x16xf32>
    %cst_35 = arith.constant 0.353553385 : f32
    %86 = vector.broadcast %cst_35 : f32 to vector<16x16xf32>
    %87 = arith.mulf %85, %86 : vector<16x16xf32>
    %cst_36 = arith.constant dense<0xFF800000> : vector<16xf32>
    %88 = vector.multi_reduction <maximumf>, %87, %cst_36 [1] : vector<16x16xf32> to vector<16xf32>
    %89 = vector.shape_cast %88 : vector<16xf32> to vector<16x1xf32>
    %90 = vector.broadcast %89 : vector<16x1xf32> to vector<16x16xf32>
    %91 = arith.subf %87, %90 : vector<16x16xf32>
    %92 = math.exp %91 : vector<16x16xf32>
    %cst_37 = arith.constant dense<0.000000e+00> : vector<16xf32>
    %93 = vector.multi_reduction <add>, %92, %cst_37 [1] : vector<16x16xf32> to vector<16xf32>
    %94 = vector.shape_cast %93 : vector<16xf32> to vector<16x1xf32>
    %95 = vector.broadcast %94 : vector<16x1xf32> to vector<16x16xf32>
    %96 = arith.divf %92, %95 : vector<16x16xf32>
    %97 = arith.truncf %96 : vector<16x16xf32> to vector<16x16xbf16>
    %cst_38 = arith.constant dense<0.000000e+00> : vector<16x8xf32>
    %98 = tpu.matmul %97, %84, %cst_38 {dimension_numbers = #tpu.dot_dimension_numbers<[1], [0], [0], [1], [0, 0, 1, 1], [], []>} : vector<16x16xbf16>, vector<16x8xbf16>, vector<16x8xf32> -> vector<16x8xf32>
    %99 = tpu.concatenate %38, %58, %78, %98 in 1 : vector<16x8xf32>, vector<16x8xf32>, vector<16x8xf32>, vector<16x8xf32> -> vector<16x32xf32>
    %100 = arith.truncf %99 : vector<16x32xf32> to vector<16x32xbf16>
    %c0_39 = arith.constant 0 : index
    %c0_40 = arith.constant 0 : index
    %c0_41 = arith.constant 0 : index
    %101 = vector.load %arg8[%c0_39, %c0_40, %c0_41] : memref<4x32x32xbf16, #tpu.memory_space<vmem>>, vector<1x32x32xbf16>
    %102 = vector.shape_cast %101 : vector<1x32x32xbf16> to vector<32x32xbf16>
    %cst_42 = arith.constant dense<0.000000e+00> : vector<16x32xf32>
    %103 = tpu.matmul %100, %102, %cst_42 {dimension_numbers = #tpu.dot_dimension_numbers<[1], [0], [0], [1], [0, 0, 1, 1], [], []>} : vector<16x32xbf16>, vector<32x32xbf16>, vector<16x32xf32> -> vector<16x32xf32>
    %104 = arith.addf %4, %103 : vector<16x32xf32>
    %c0_43 = arith.constant 0 : index
    %c0_44 = arith.constant 0 : index
    %c0_45 = arith.constant 0 : index
    %105 = vector.load %arg9[%c0_43, %c0_44, %c0_45] : memref<4x1x32xf32, #tpu.memory_space<vmem>>, vector<1x1x32xf32>
    %106 = vector.shape_cast %105 : vector<1x1x32xf32> to vector<1x32xf32>
    %c0_46 = arith.constant 0 : index
    %c0_47 = arith.constant 0 : index
    %c0_48 = arith.constant 0 : index
    %107 = vector.load %arg10[%c0_46, %c0_47, %c0_48] : memref<4x1x32xf32, #tpu.memory_space<vmem>>, vector<1x1x32xf32>
    %108 = vector.shape_cast %107 : vector<1x1x32xf32> to vector<1x32xf32>
    %cst_49 = arith.constant dense<0.000000e+00> : vector<16xf32>
    %109 = vector.multi_reduction <add>, %104, %cst_49 [1] : vector<16x32xf32> to vector<16xf32>
    %110 = vector.shape_cast %109 : vector<16xf32> to vector<16x1xf32>
    %cst_50 = arith.constant 3.200000e+01 : f32
    %111 = vector.broadcast %cst_50 : f32 to vector<16x1xf32>
    %112 = arith.divf %110, %111 : vector<16x1xf32>
    %113 = vector.broadcast %112 : vector<16x1xf32> to vector<16x32xf32>
    %114 = arith.subf %104, %113 : vector<16x32xf32>
    %115 = arith.mulf %114, %114 : vector<16x32xf32>
    %cst_51 = arith.constant dense<0.000000e+00> : vector<16xf32>
    %116 = vector.multi_reduction <add>, %115, %cst_51 [1] : vector<16x32xf32> to vector<16xf32>
    %117 = vector.shape_cast %116 : vector<16xf32> to vector<16x1xf32>
    %cst_52 = arith.constant 3.200000e+01 : f32
    %118 = vector.broadcast %cst_52 : f32 to vector<16x1xf32>
    %119 = arith.divf %117, %118 : vector<16x1xf32>
    %120 = vector.broadcast %112 : vector<16x1xf32> to vector<16x32xf32>
    %121 = arith.subf %104, %120 : vector<16x32xf32>
    %cst_53 = arith.constant 9.99999974E-6 : f32
    %122 = vector.broadcast %cst_53 : f32 to vector<16x1xf32>
    %123 = arith.addf %119, %122 : vector<16x1xf32>
    %124 = math.rsqrt %123 : vector<16x1xf32>
    %125 = vector.broadcast %124 : vector<16x1xf32> to vector<16x32xf32>
    %126 = arith.mulf %121, %125 : vector<16x32xf32>
    %127 = vector.broadcast %106 : vector<1x32xf32> to vector<16x32xf32>
    %128 = arith.mulf %126, %127 : vector<16x32xf32>
    %129 = vector.broadcast %108 : vector<1x32xf32> to vector<16x32xf32>
    %130 = arith.addf %128, %129 : vector<16x32xf32>
    %131 = arith.truncf %130 : vector<16x32xf32> to vector<16x32xbf16>
    %c0_54 = arith.constant 0 : index
    %c0_55 = arith.constant 0 : index
    %c0_56 = arith.constant 0 : index
    %132 = vector.load %arg11[%c0_54, %c0_55, %c0_56] : memref<4x32x64xbf16, #tpu.memory_space<vmem>>, vector<1x32x64xbf16>
    %133 = vector.shape_cast %132 : vector<1x32x64xbf16> to vector<32x64xbf16>
    %cst_57 = arith.constant dense<0.000000e+00> : vector<16x64xf32>
    %134 = tpu.matmul %131, %133, %cst_57 {dimension_numbers = #tpu.dot_dimension_numbers<[1], [0], [0], [1], [0, 0, 1, 1], [], []>} : vector<16x32xbf16>, vector<32x64xbf16>, vector<16x64xf32> -> vector<16x64xf32>
    %c0_58 = arith.constant 0 : index
    %c0_59 = arith.constant 0 : index
    %c0_60 = arith.constant 0 : index
    %135 = vector.load %arg12[%c0_58, %c0_59, %c0_60] : memref<4x1x64xf32, #tpu.memory_space<vmem>>, vector<1x1x64xf32>
    %136 = vector.shape_cast %135 : vector<1x1x64xf32> to vector<1x64xf32>
    %137 = vector.broadcast %136 : vector<1x64xf32> to vector<16x64xf32>
    %138 = arith.addf %134, %137 : vector<16x64xf32>
    %cst_61 = arith.constant 0.000000e+00 : f32
    %139 = vector.broadcast %cst_61 : f32 to vector<16x64xf32>
    %140 = arith.maximumf %138, %139 : vector<16x64xf32>
    %141 = arith.truncf %140 : vector<16x64xf32> to vector<16x64xbf16>
    %c0_62 = arith.constant 0 : index
    %c0_63 = arith.constant 0 : index
    %c0_64 = arith.constant 0 : index
    %142 = vector.load %arg13[%c0_62, %c0_63, %c0_64] : memref<4x64x32xbf16, #tpu.memory_space<vmem>>, vector<1x64x32xbf16>
    %143 = vector.shape_cast %142 : vector<1x64x32xbf16> to vector<64x32xbf16>
    %cst_65 = arith.constant dense<0.000000e+00> : vector<16x32xf32>
    %144 = tpu.matmul %141, %143, %cst_65 {dimension_numbers = #tpu.dot_dimension_numbers<[1], [0], [0], [1], [0, 0, 1, 1], [], []>} : vector<16x64xbf16>, vector<64x32xbf16>, vector<16x32xf32> -> vector<16x32xf32>
    %c0_66 = arith.constant 0 : index
    %c0_67 = arith.constant 0 : index
    %c0_68 = arith.constant 0 : index
    %145 = vector.load %arg14[%c0_66, %c0_67, %c0_68] : memref<4x1x32xf32, #tpu.memory_space<vmem>>, vector<1x1x32xf32>
    %146 = vector.shape_cast %145 : vector<1x1x32xf32> to vector<1x32xf32>
    %147 = vector.broadcast %146 : vector<1x32xf32> to vector<16x32xf32>
    %148 = arith.addf %144, %147 : vector<16x32xf32>
    %149 = arith.addf %130, %148 : vector<16x32xf32>
    %c0_69 = arith.constant 0 : index
    %c0_70 = arith.constant 0 : index
    %c0_71 = arith.constant 0 : index
    %150 = vector.load %arg15[%c0_69, %c0_70, %c0_71] : memref<4x1x32xf32, #tpu.memory_space<vmem>>, vector<1x1x32xf32>
    %151 = vector.shape_cast %150 : vector<1x1x32xf32> to vector<1x32xf32>
    %c0_72 = arith.constant 0 : index
    %c0_73 = arith.constant 0 : index
    %c0_74 = arith.constant 0 : index
    %152 = vector.load %arg16[%c0_72, %c0_73, %c0_74] : memref<4x1x32xf32, #tpu.memory_space<vmem>>, vector<1x1x32xf32>
    %153 = vector.shape_cast %152 : vector<1x1x32xf32> to vector<1x32xf32>
    %cst_75 = arith.constant dense<0.000000e+00> : vector<16xf32>
    %154 = vector.multi_reduction <add>, %149, %cst_75 [1] : vector<16x32xf32> to vector<16xf32>
    %155 = vector.shape_cast %154 : vector<16xf32> to vector<16x1xf32>
    %cst_76 = arith.constant 3.200000e+01 : f32
    %156 = vector.broadcast %cst_76 : f32 to vector<16x1xf32>
    %157 = arith.divf %155, %156 : vector<16x1xf32>
    %158 = vector.broadcast %157 : vector<16x1xf32> to vector<16x32xf32>
    %159 = arith.subf %149, %158 : vector<16x32xf32>
    %160 = arith.mulf %159, %159 : vector<16x32xf32>
    %cst_77 = arith.constant dense<0.000000e+00> : vector<16xf32>
    %161 = vector.multi_reduction <add>, %160, %cst_77 [1] : vector<16x32xf32> to vector<16xf32>
    %162 = vector.shape_cast %161 : vector<16xf32> to vector<16x1xf32>
    %cst_78 = arith.constant 3.200000e+01 : f32
    %163 = vector.broadcast %cst_78 : f32 to vector<16x1xf32>
    %164 = arith.divf %162, %163 : vector<16x1xf32>
    %165 = vector.broadcast %157 : vector<16x1xf32> to vector<16x32xf32>
    %166 = arith.subf %149, %165 : vector<16x32xf32>
    %cst_79 = arith.constant 9.99999974E-6 : f32
    %167 = vector.broadcast %cst_79 : f32 to vector<16x1xf32>
    %168 = arith.addf %164, %167 : vector<16x1xf32>
    %169 = math.rsqrt %168 : vector<16x1xf32>
    %170 = vector.broadcast %169 : vector<16x1xf32> to vector<16x32xf32>
    %171 = arith.mulf %166, %170 : vector<16x32xf32>
    %172 = vector.broadcast %151 : vector<1x32xf32> to vector<16x32xf32>
    %173 = arith.mulf %171, %172 : vector<16x32xf32>
    %174 = vector.broadcast %153 : vector<1x32xf32> to vector<16x32xf32>
    %175 = arith.addf %173, %174 : vector<16x32xf32>
    %176 = arith.truncf %175 : vector<16x32xf32> to vector<16x32xbf16>
    %c1 = arith.constant 1 : index
    %c0_80 = arith.constant 0 : index
    %c0_81 = arith.constant 0 : index
    %177 = vector.load %arg7[%c1, %c0_80, %c0_81] : memref<4x32x96xbf16, #tpu.memory_space<vmem>>, vector<1x32x96xbf16>
    %178 = vector.shape_cast %177 : vector<1x32x96xbf16> to vector<32x96xbf16>
    %cst_82 = arith.constant dense<0.000000e+00> : vector<16x96xf32>
    %179 = tpu.matmul %176, %178, %cst_82 {dimension_numbers = #tpu.dot_dimension_numbers<[1], [0], [0], [1], [0, 0, 1, 1], [], []>} : vector<16x32xbf16>, vector<32x96xbf16>, vector<16x96xf32> -> vector<16x96xf32>
    %180 = vector.extract_strided_slice %179 {offsets = [0, 0], sizes = [16, 8], strides = [1, 1]} : vector<16x96xf32> to vector<16x8xf32>
    %181 = arith.truncf %180 : vector<16x8xf32> to vector<16x8xbf16>
    %182 = vector.extract_strided_slice %179 {offsets = [0, 32], sizes = [16, 8], strides = [1, 1]} : vector<16x96xf32> to vector<16x8xf32>
    %183 = arith.truncf %182 : vector<16x8xf32> to vector<16x8xbf16>
    %184 = vector.extract_strided_slice %179 {offsets = [0, 64], sizes = [16, 8], strides = [1, 1]} : vector<16x96xf32> to vector<16x8xf32>
    %185 = arith.truncf %184 : vector<16x8xf32> to vector<16x8xbf16>
    %cst_83 = arith.constant dense<0.000000e+00> : vector<16x16xf32>
    %186 = tpu.matmul %181, %183, %cst_83 {dimension_numbers = #tpu.dot_dimension_numbers<[1], [1], [0], [0], [0, 0, 1, 0], [], []>} : vector<16x8xbf16>, vector<16x8xbf16>, vector<16x16xf32> -> vector<16x16xf32>
    %cst_84 = arith.constant 0.353553385 : f32
    %187 = vector.broadcast %cst_84 : f32 to vector<16x16xf32>
    %188 = arith.mulf %186, %187 : vector<16x16xf32>
    %cst_85 = arith.constant dense<0xFF800000> : vector<16xf32>
    %189 = vector.multi_reduction <maximumf>, %188, %cst_85 [1] : vector<16x16xf32> to vector<16xf32>
    %190 = vector.shape_cast %189 : vector<16xf32> to vector<16x1xf32>
    %191 = vector.broadcast %190 : vector<16x1xf32> to vector<16x16xf32>
    %192 = arith.subf %188, %191 : vector<16x16xf32>
    %193 = math.exp %192 : vector<16x16xf32>
    %cst_86 = arith.constant dense<0.000000e+00> : vector<16xf32>
    %194 = vector.multi_reduction <add>, %193, %cst_86 [1] : vector<16x16xf32> to vector<16xf32>
    %195 = vector.shape_cast %194 : vector<16xf32> to vector<16x1xf32>
    %196 = vector.broadcast %195 : vector<16x1xf32> to vector<16x16xf32>
    %197 = arith.divf %193, %196 : vector<16x16xf32>
    %198 = arith.truncf %197 : vector<16x16xf32> to vector<16x16xbf16>
    %cst_87 = arith.constant dense<0.000000e+00> : vector<16x8xf32>
    %199 = tpu.matmul %198, %185, %cst_87 {dimension_numbers = #tpu.dot_dimension_numbers<[1], [0], [0], [1], [0, 0, 1, 1], [], []>} : vector<16x16xbf16>, vector<16x8xbf16>, vector<16x8xf32> -> vector<16x8xf32>
    %200 = vector.extract_strided_slice %179 {offsets = [0, 8], sizes = [16, 8], strides = [1, 1]} : vector<16x96xf32> to vector<16x8xf32>
    %201 = arith.truncf %200 : vector<16x8xf32> to vector<16x8xbf16>
    %202 = vector.extract_strided_slice %179 {offsets = [0, 40], sizes = [16, 8], strides = [1, 1]} : vector<16x96xf32> to vector<16x8xf32>
    %203 = arith.truncf %202 : vector<16x8xf32> to vector<16x8xbf16>
    %204 = vector.extract_strided_slice %179 {offsets = [0, 72], sizes = [16, 8], strides = [1, 1]} : vector<16x96xf32> to vector<16x8xf32>
    %205 = arith.truncf %204 : vector<16x8xf32> to vector<16x8xbf16>
    %cst_88 = arith.constant dense<0.000000e+00> : vector<16x16xf32>
    %206 = tpu.matmul %201, %203, %cst_88 {dimension_numbers = #tpu.dot_dimension_numbers<[1], [1], [0], [0], [0, 0, 1, 0], [], []>} : vector<16x8xbf16>, vector<16x8xbf16>, vector<16x16xf32> -> vector<16x16xf32>
    %cst_89 = arith.constant 0.353553385 : f32
    %207 = vector.broadcast %cst_89 : f32 to vector<16x16xf32>
    %208 = arith.mulf %206, %207 : vector<16x16xf32>
    %cst_90 = arith.constant dense<0xFF800000> : vector<16xf32>
    %209 = vector.multi_reduction <maximumf>, %208, %cst_90 [1] : vector<16x16xf32> to vector<16xf32>
    %210 = vector.shape_cast %209 : vector<16xf32> to vector<16x1xf32>
    %211 = vector.broadcast %210 : vector<16x1xf32> to vector<16x16xf32>
    %212 = arith.subf %208, %211 : vector<16x16xf32>
    %213 = math.exp %212 : vector<16x16xf32>
    %cst_91 = arith.constant dense<0.000000e+00> : vector<16xf32>
    %214 = vector.multi_reduction <add>, %213, %cst_91 [1] : vector<16x16xf32> to vector<16xf32>
    %215 = vector.shape_cast %214 : vector<16xf32> to vector<16x1xf32>
    %216 = vector.broadcast %215 : vector<16x1xf32> to vector<16x16xf32>
    %217 = arith.divf %213, %216 : vector<16x16xf32>
    %218 = arith.truncf %217 : vector<16x16xf32> to vector<16x16xbf16>
    %cst_92 = arith.constant dense<0.000000e+00> : vector<16x8xf32>
    %219 = tpu.matmul %218, %205, %cst_92 {dimension_numbers = #tpu.dot_dimension_numbers<[1], [0], [0], [1], [0, 0, 1, 1], [], []>} : vector<16x16xbf16>, vector<16x8xbf16>, vector<16x8xf32> -> vector<16x8xf32>
    %220 = vector.extract_strided_slice %179 {offsets = [0, 16], sizes = [16, 8], strides = [1, 1]} : vector<16x96xf32> to vector<16x8xf32>
    %221 = arith.truncf %220 : vector<16x8xf32> to vector<16x8xbf16>
    %222 = vector.extract_strided_slice %179 {offsets = [0, 48], sizes = [16, 8], strides = [1, 1]} : vector<16x96xf32> to vector<16x8xf32>
    %223 = arith.truncf %222 : vector<16x8xf32> to vector<16x8xbf16>
    %224 = vector.extract_strided_slice %179 {offsets = [0, 80], sizes = [16, 8], strides = [1, 1]} : vector<16x96xf32> to vector<16x8xf32>
    %225 = arith.truncf %224 : vector<16x8xf32> to vector<16x8xbf16>
    %cst_93 = arith.constant dense<0.000000e+00> : vector<16x16xf32>
    %226 = tpu.matmul %221, %223, %cst_93 {dimension_numbers = #tpu.dot_dimension_numbers<[1], [1], [0], [0], [0, 0, 1, 0], [], []>} : vector<16x8xbf16>, vector<16x8xbf16>, vector<16x16xf32> -> vector<16x16xf32>
    %cst_94 = arith.constant 0.353553385 : f32
    %227 = vector.broadcast %cst_94 : f32 to vector<16x16xf32>
    %228 = arith.mulf %226, %227 : vector<16x16xf32>
    %cst_95 = arith.constant dense<0xFF800000> : vector<16xf32>
    %229 = vector.multi_reduction <maximumf>, %228, %cst_95 [1] : vector<16x16xf32> to vector<16xf32>
    %230 = vector.shape_cast %229 : vector<16xf32> to vector<16x1xf32>
    %231 = vector.broadcast %230 : vector<16x1xf32> to vector<16x16xf32>
    %232 = arith.subf %228, %231 : vector<16x16xf32>
    %233 = math.exp %232 : vector<16x16xf32>
    %cst_96 = arith.constant dense<0.000000e+00> : vector<16xf32>
    %234 = vector.multi_reduction <add>, %233, %cst_96 [1] : vector<16x16xf32> to vector<16xf32>
    %235 = vector.shape_cast %234 : vector<16xf32> to vector<16x1xf32>
    %236 = vector.broadcast %235 : vector<16x1xf32> to vector<16x16xf32>
    %237 = arith.divf %233, %236 : vector<16x16xf32>
    %238 = arith.truncf %237 : vector<16x16xf32> to vector<16x16xbf16>
    %cst_97 = arith.constant dense<0.000000e+00> : vector<16x8xf32>
    %239 = tpu.matmul %238, %225, %cst_97 {dimension_numbers = #tpu.dot_dimension_numbers<[1], [0], [0], [1], [0, 0, 1, 1], [], []>} : vector<16x16xbf16>, vector<16x8xbf16>, vector<16x8xf32> -> vector<16x8xf32>
    %240 = vector.extract_strided_slice %179 {offsets = [0, 24], sizes = [16, 8], strides = [1, 1]} : vector<16x96xf32> to vector<16x8xf32>
    %241 = arith.truncf %240 : vector<16x8xf32> to vector<16x8xbf16>
    %242 = vector.extract_strided_slice %179 {offsets = [0, 56], sizes = [16, 8], strides = [1, 1]} : vector<16x96xf32> to vector<16x8xf32>
    %243 = arith.truncf %242 : vector<16x8xf32> to vector<16x8xbf16>
    %244 = vector.extract_strided_slice %179 {offsets = [0, 88], sizes = [16, 8], strides = [1, 1]} : vector<16x96xf32> to vector<16x8xf32>
    %245 = arith.truncf %244 : vector<16x8xf32> to vector<16x8xbf16>
    %cst_98 = arith.constant dense<0.000000e+00> : vector<16x16xf32>
    %246 = tpu.matmul %241, %243, %cst_98 {dimension_numbers = #tpu.dot_dimension_numbers<[1], [1], [0], [0], [0, 0, 1, 0], [], []>} : vector<16x8xbf16>, vector<16x8xbf16>, vector<16x16xf32> -> vector<16x16xf32>
    %cst_99 = arith.constant 0.353553385 : f32
    %247 = vector.broadcast %cst_99 : f32 to vector<16x16xf32>
    %248 = arith.mulf %246, %247 : vector<16x16xf32>
    %cst_100 = arith.constant dense<0xFF800000> : vector<16xf32>
    %249 = vector.multi_reduction <maximumf>, %248, %cst_100 [1] : vector<16x16xf32> to vector<16xf32>
    %250 = vector.shape_cast %249 : vector<16xf32> to vector<16x1xf32>
    %251 = vector.broadcast %250 : vector<16x1xf32> to vector<16x16xf32>
    %252 = arith.subf %248, %251 : vector<16x16xf32>
    %253 = math.exp %252 : vector<16x16xf32>
    %cst_101 = arith.constant dense<0.000000e+00> : vector<16xf32>
    %254 = vector.multi_reduction <add>, %253, %cst_101 [1] : vector<16x16xf32> to vector<16xf32>
    %255 = vector.shape_cast %254 : vector<16xf32> to vector<16x1xf32>
    %256 = vector.broadcast %255 : vector<16x1xf32> to vector<16x16xf32>
    %257 = arith.divf %253, %256 : vector<16x16xf32>
    %258 = arith.truncf %257 : vector<16x16xf32> to vector<16x16xbf16>
    %cst_102 = arith.constant dense<0.000000e+00> : vector<16x8xf32>
    %259 = tpu.matmul %258, %245, %cst_102 {dimension_numbers = #tpu.dot_dimension_numbers<[1], [0], [0], [1], [0, 0, 1, 1], [], []>} : vector<16x16xbf16>, vector<16x8xbf16>, vector<16x8xf32> -> vector<16x8xf32>
    %260 = tpu.concatenate %199, %219, %239, %259 in 1 : vector<16x8xf32>, vector<16x8xf32>, vector<16x8xf32>, vector<16x8xf32> -> vector<16x32xf32>
    %261 = arith.truncf %260 : vector<16x32xf32> to vector<16x32xbf16>
    %c1_103 = arith.constant 1 : index
    %c0_104 = arith.constant 0 : index
    %c0_105 = arith.constant 0 : index
    %262 = vector.load %arg8[%c1_103, %c0_104, %c0_105] : memref<4x32x32xbf16, #tpu.memory_space<vmem>>, vector<1x32x32xbf16>
    %263 = vector.shape_cast %262 : vector<1x32x32xbf16> to vector<32x32xbf16>
    %cst_106 = arith.constant dense<0.000000e+00> : vector<16x32xf32>
    %264 = tpu.matmul %261, %263, %cst_106 {dimension_numbers = #tpu.dot_dimension_numbers<[1], [0], [0], [1], [0, 0, 1, 1], [], []>} : vector<16x32xbf16>, vector<32x32xbf16>, vector<16x32xf32> -> vector<16x32xf32>
    %265 = arith.addf %175, %264 : vector<16x32xf32>
    %c1_107 = arith.constant 1 : index
    %c0_108 = arith.constant 0 : index
    %c0_109 = arith.constant 0 : index
    %266 = vector.load %arg9[%c1_107, %c0_108, %c0_109] : memref<4x1x32xf32, #tpu.memory_space<vmem>>, vector<1x1x32xf32>
    %267 = vector.shape_cast %266 : vector<1x1x32xf32> to vector<1x32xf32>
    %c1_110 = arith.constant 1 : index
    %c0_111 = arith.constant 0 : index
    %c0_112 = arith.constant 0 : index
    %268 = vector.load %arg10[%c1_110, %c0_111, %c0_112] : memref<4x1x32xf32, #tpu.memory_space<vmem>>, vector<1x1x32xf32>
    %269 = vector.shape_cast %268 : vector<1x1x32xf32> to vector<1x32xf32>
    %cst_113 = arith.constant dense<0.000000e+00> : vector<16xf32>
    %270 = vector.multi_reduction <add>, %265, %cst_113 [1] : vector<16x32xf32> to vector<16xf32>
    %271 = vector.shape_cast %270 : vector<16xf32> to vector<16x1xf32>
    %cst_114 = arith.constant 3.200000e+01 : f32
    %272 = vector.broadcast %cst_114 : f32 to vector<16x1xf32>
    %273 = arith.divf %271, %272 : vector<16x1xf32>
    %274 = vector.broadcast %273 : vector<16x1xf32> to vector<16x32xf32>
    %275 = arith.subf %265, %274 : vector<16x32xf32>
    %276 = arith.mulf %275, %275 : vector<16x32xf32>
    %cst_115 = arith.constant dense<0.000000e+00> : vector<16xf32>
    %277 = vector.multi_reduction <add>, %276, %cst_115 [1] : vector<16x32xf32> to vector<16xf32>
    %278 = vector.shape_cast %277 : vector<16xf32> to vector<16x1xf32>
    %cst_116 = arith.constant 3.200000e+01 : f32
    %279 = vector.broadcast %cst_116 : f32 to vector<16x1xf32>
    %280 = arith.divf %278, %279 : vector<16x1xf32>
    %281 = vector.broadcast %273 : vector<16x1xf32> to vector<16x32xf32>
    %282 = arith.subf %265, %281 : vector<16x32xf32>
    %cst_117 = arith.constant 9.99999974E-6 : f32
    %283 = vector.broadcast %cst_117 : f32 to vector<16x1xf32>
    %284 = arith.addf %280, %283 : vector<16x1xf32>
    %285 = math.rsqrt %284 : vector<16x1xf32>
    %286 = vector.broadcast %285 : vector<16x1xf32> to vector<16x32xf32>
    %287 = arith.mulf %282, %286 : vector<16x32xf32>
    %288 = vector.broadcast %267 : vector<1x32xf32> to vector<16x32xf32>
    %289 = arith.mulf %287, %288 : vector<16x32xf32>
    %290 = vector.broadcast %269 : vector<1x32xf32> to vector<16x32xf32>
    %291 = arith.addf %289, %290 : vector<16x32xf32>
    %292 = arith.truncf %291 : vector<16x32xf32> to vector<16x32xbf16>
    %c1_118 = arith.constant 1 : index
    %c0_119 = arith.constant 0 : index
    %c0_120 = arith.constant 0 : index
    %293 = vector.load %arg11[%c1_118, %c0_119, %c0_120] : memref<4x32x64xbf16, #tpu.memory_space<vmem>>, vector<1x32x64xbf16>
    %294 = vector.shape_cast %293 : vector<1x32x64xbf16> to vector<32x64xbf16>
    %cst_121 = arith.constant dense<0.000000e+00> : vector<16x64xf32>
    %295 = tpu.matmul %292, %294, %cst_121 {dimension_numbers = #tpu.dot_dimension_numbers<[1], [0], [0], [1], [0, 0, 1, 1], [], []>} : vector<16x32xbf16>, vector<32x64xbf16>, vector<16x64xf32> -> vector<16x64xf32>
    %c1_122 = arith.constant 1 : index
    %c0_123 = arith.constant 0 : index
    %c0_124 = arith.constant 0 : index
    %296 = vector.load %arg12[%c1_122, %c0_123, %c0_124] : memref<4x1x64xf32, #tpu.memory_space<vmem>>, vector<1x1x64xf32>
    %297 = vector.shape_cast %296 : vector<1x1x64xf32> to vector<1x64xf32>
    %298 = vector.broadcast %297 : vector<1x64xf32> to vector<16x64xf32>
    %299 = arith.addf %295, %298 : vector<16x64xf32>
    %cst_125 = arith.constant 0.000000e+00 : f32
    %300 = vector.broadcast %cst_125 : f32 to vector<16x64xf32>
    %301 = arith.maximumf %299, %300 : vector<16x64xf32>
    %302 = arith.truncf %301 : vector<16x64xf32> to vector<16x64xbf16>
    %c1_126 = arith.constant 1 : index
    %c0_127 = arith.constant 0 : index
    %c0_128 = arith.constant 0 : index
    %303 = vector.load %arg13[%c1_126, %c0_127, %c0_128] : memref<4x64x32xbf16, #tpu.memory_space<vmem>>, vector<1x64x32xbf16>
    %304 = vector.shape_cast %303 : vector<1x64x32xbf16> to vector<64x32xbf16>
    %cst_129 = arith.constant dense<0.000000e+00> : vector<16x32xf32>
    %305 = tpu.matmul %302, %304, %cst_129 {dimension_numbers = #tpu.dot_dimension_numbers<[1], [0], [0], [1], [0, 0, 1, 1], [], []>} : vector<16x64xbf16>, vector<64x32xbf16>, vector<16x32xf32> -> vector<16x32xf32>
    %c1_130 = arith.constant 1 : index
    %c0_131 = arith.constant 0 : index
    %c0_132 = arith.constant 0 : index
    %306 = vector.load %arg14[%c1_130, %c0_131, %c0_132] : memref<4x1x32xf32, #tpu.memory_space<vmem>>, vector<1x1x32xf32>
    %307 = vector.shape_cast %306 : vector<1x1x32xf32> to vector<1x32xf32>
    %308 = vector.broadcast %307 : vector<1x32xf32> to vector<16x32xf32>
    %309 = arith.addf %305, %308 : vector<16x32xf32>
    %310 = arith.addf %291, %309 : vector<16x32xf32>
    %c1_133 = arith.constant 1 : index
    %c0_134 = arith.constant 0 : index
    %c0_135 = arith.constant 0 : index
    %311 = vector.load %arg15[%c1_133, %c0_134, %c0_135] : memref<4x1x32xf32, #tpu.memory_space<vmem>>, vector<1x1x32xf32>
    %312 = vector.shape_cast %311 : vector<1x1x32xf32> to vector<1x32xf32>
    %c1_136 = arith.constant 1 : index
    %c0_137 = arith.constant 0 : index
    %c0_138 = arith.constant 0 : index
    %313 = vector.load %arg16[%c1_136, %c0_137, %c0_138] : memref<4x1x32xf32, #tpu.memory_space<vmem>>, vector<1x1x32xf32>
    %314 = vector.shape_cast %313 : vector<1x1x32xf32> to vector<1x32xf32>
    %cst_139 = arith.constant dense<0.000000e+00> : vector<16xf32>
    %315 = vector.multi_reduction <add>, %310, %cst_139 [1] : vector<16x32xf32> to vector<16xf32>
    %316 = vector.shape_cast %315 : vector<16xf32> to vector<16x1xf32>
    %cst_140 = arith.constant 3.200000e+01 : f32
    %317 = vector.broadcast %cst_140 : f32 to vector<16x1xf32>
    %318 = arith.divf %316, %317 : vector<16x1xf32>
    %319 = vector.broadcast %318 : vector<16x1xf32> to vector<16x32xf32>
    %320 = arith.subf %310, %319 : vector<16x32xf32>
    %321 = arith.mulf %320, %320 : vector<16x32xf32>
    %cst_141 = arith.constant dense<0.000000e+00> : vector<16xf32>
    %322 = vector.multi_reduction <add>, %321, %cst_141 [1] : vector<16x32xf32> to vector<16xf32>
    %323 = vector.shape_cast %322 : vector<16xf32> to vector<16x1xf32>
    %cst_142 = arith.constant 3.200000e+01 : f32
    %324 = vector.broadcast %cst_142 : f32 to vector<16x1xf32>
    %325 = arith.divf %323, %324 : vector<16x1xf32>
    %326 = vector.broadcast %318 : vector<16x1xf32> to vector<16x32xf32>
    %327 = arith.subf %310, %326 : vector<16x32xf32>
    %cst_143 = arith.constant 9.99999974E-6 : f32
    %328 = vector.broadcast %cst_143 : f32 to vector<16x1xf32>
    %329 = arith.addf %325, %328 : vector<16x1xf32>
    %330 = math.rsqrt %329 : vector<16x1xf32>
    %331 = vector.broadcast %330 : vector<16x1xf32> to vector<16x32xf32>
    %332 = arith.mulf %327, %331 : vector<16x32xf32>
    %333 = vector.broadcast %312 : vector<1x32xf32> to vector<16x32xf32>
    %334 = arith.mulf %332, %333 : vector<16x32xf32>
    %335 = vector.broadcast %314 : vector<1x32xf32> to vector<16x32xf32>
    %336 = arith.addf %334, %335 : vector<16x32xf32>
    %337 = arith.truncf %12 : vector<3x32xf32> to vector<3x32xbf16>
    %c2 = arith.constant 2 : index
    %c0_144 = arith.constant 0 : index
    %c0_145 = arith.constant 0 : index
    %338 = vector.load %arg7[%c2, %c0_144, %c0_145] : memref<4x32x96xbf16, #tpu.memory_space<vmem>>, vector<1x32x96xbf16>
    %339 = vector.shape_cast %338 : vector<1x32x96xbf16> to vector<32x96xbf16>
    %cst_146 = arith.constant dense<0.000000e+00> : vector<3x96xf32>
    %340 = tpu.matmul %337, %339, %cst_146 {dimension_numbers = #tpu.dot_dimension_numbers<[1], [0], [0], [1], [0, 0, 1, 1], [], []>} : vector<3x32xbf16>, vector<32x96xbf16>, vector<3x96xf32> -> vector<3x96xf32>
    %341 = vector.extract_strided_slice %340 {offsets = [0, 0], sizes = [3, 8], strides = [1, 1]} : vector<3x96xf32> to vector<3x8xf32>
    %342 = arith.truncf %341 : vector<3x8xf32> to vector<3x8xbf16>
    %343 = vector.extract_strided_slice %340 {offsets = [0, 32], sizes = [3, 8], strides = [1, 1]} : vector<3x96xf32> to vector<3x8xf32>
    %344 = arith.truncf %343 : vector<3x8xf32> to vector<3x8xbf16>
    %345 = vector.extract_strided_slice %340 {offsets = [0, 64], sizes = [3, 8], strides = [1, 1]} : vector<3x96xf32> to vector<3x8xf32>
    %346 = arith.truncf %345 : vector<3x8xf32> to vector<3x8xbf16>
    %cst_147 = arith.constant dense<0.000000e+00> : vector<3x3xf32>
    %347 = tpu.matmul %342, %344, %cst_147 {dimension_numbers = #tpu.dot_dimension_numbers<[1], [1], [0], [0], [0, 0, 1, 0], [], []>} : vector<3x8xbf16>, vector<3x8xbf16>, vector<3x3xf32> -> vector<3x3xf32>
    %cst_148 = arith.constant 0.353553385 : f32
    %348 = vector.broadcast %cst_148 : f32 to vector<3x3xf32>
    %349 = arith.mulf %347, %348 : vector<3x3xf32>
    %350 = vector.broadcast %14 : vector<1x3xf32> to vector<3x3xf32>
    %351 = arith.addf %349, %350 : vector<3x3xf32>
    %cst_149 = arith.constant dense<0xFF800000> : vector<3xf32>
    %352 = vector.multi_reduction <maximumf>, %351, %cst_149 [1] : vector<3x3xf32> to vector<3xf32>
    %353 = vector.shape_cast %352 : vector<3xf32> to vector<3x1xf32>
    %354 = vector.broadcast %353 : vector<3x1xf32> to vector<3x3xf32>
    %355 = arith.subf %351, %354 : vector<3x3xf32>
    %356 = math.exp %355 : vector<3x3xf32>
    %cst_150 = arith.constant dense<0.000000e+00> : vector<3xf32>
    %357 = vector.multi_reduction <add>, %356, %cst_150 [1] : vector<3x3xf32> to vector<3xf32>
    %358 = vector.shape_cast %357 : vector<3xf32> to vector<3x1xf32>
    %359 = vector.broadcast %358 : vector<3x1xf32> to vector<3x3xf32>
    %360 = arith.divf %356, %359 : vector<3x3xf32>
    %361 = arith.truncf %360 : vector<3x3xf32> to vector<3x3xbf16>
    %cst_151 = arith.constant dense<0.000000e+00> : vector<3x8xf32>
    %362 = tpu.matmul %361, %346, %cst_151 {dimension_numbers = #tpu.dot_dimension_numbers<[1], [0], [0], [1], [0, 0, 1, 1], [], []>} : vector<3x3xbf16>, vector<3x8xbf16>, vector<3x8xf32> -> vector<3x8xf32>
    %363 = vector.extract_strided_slice %340 {offsets = [0, 8], sizes = [3, 8], strides = [1, 1]} : vector<3x96xf32> to vector<3x8xf32>
    %364 = arith.truncf %363 : vector<3x8xf32> to vector<3x8xbf16>
    %365 = vector.extract_strided_slice %340 {offsets = [0, 40], sizes = [3, 8], strides = [1, 1]} : vector<3x96xf32> to vector<3x8xf32>
    %366 = arith.truncf %365 : vector<3x8xf32> to vector<3x8xbf16>
    %367 = vector.extract_strided_slice %340 {offsets = [0, 72], sizes = [3, 8], strides = [1, 1]} : vector<3x96xf32> to vector<3x8xf32>
    %368 = arith.truncf %367 : vector<3x8xf32> to vector<3x8xbf16>
    %cst_152 = arith.constant dense<0.000000e+00> : vector<3x3xf32>
    %369 = tpu.matmul %364, %366, %cst_152 {dimension_numbers = #tpu.dot_dimension_numbers<[1], [1], [0], [0], [0, 0, 1, 0], [], []>} : vector<3x8xbf16>, vector<3x8xbf16>, vector<3x3xf32> -> vector<3x3xf32>
    %cst_153 = arith.constant 0.353553385 : f32
    %370 = vector.broadcast %cst_153 : f32 to vector<3x3xf32>
    %371 = arith.mulf %369, %370 : vector<3x3xf32>
    %372 = vector.broadcast %14 : vector<1x3xf32> to vector<3x3xf32>
    %373 = arith.addf %371, %372 : vector<3x3xf32>
    %cst_154 = arith.constant dense<0xFF800000> : vector<3xf32>
    %374 = vector.multi_reduction <maximumf>, %373, %cst_154 [1] : vector<3x3xf32> to vector<3xf32>
    %375 = vector.shape_cast %374 : vector<3xf32> to vector<3x1xf32>
    %376 = vector.broadcast %375 : vector<3x1xf32> to vector<3x3xf32>
    %377 = arith.subf %373, %376 : vector<3x3xf32>
    %378 = math.exp %377 : vector<3x3xf32>
    %cst_155 = arith.constant dense<0.000000e+00> : vector<3xf32>
    %379 = vector.multi_reduction <add>, %378, %cst_155 [1] : vector<3x3xf32> to vector<3xf32>
    %380 = vector.shape_cast %379 : vector<3xf32> to vector<3x1xf32>
    %381 = vector.broadcast %380 : vector<3x1xf32> to vector<3x3xf32>
    %382 = arith.divf %378, %381 : vector<3x3xf32>
    %383 = arith.truncf %382 : vector<3x3xf32> to vector<3x3xbf16>
    %cst_156 = arith.constant dense<0.000000e+00> : vector<3x8xf32>
    %384 = tpu.matmul %383, %368, %cst_156 {dimension_numbers = #tpu.dot_dimension_numbers<[1], [0], [0], [1], [0, 0, 1, 1], [], []>} : vector<3x3xbf16>, vector<3x8xbf16>, vector<3x8xf32> -> vector<3x8xf32>
    %385 = vector.extract_strided_slice %340 {offsets = [0, 16], sizes = [3, 8], strides = [1, 1]} : vector<3x96xf32> to vector<3x8xf32>
    %386 = arith.truncf %385 : vector<3x8xf32> to vector<3x8xbf16>
    %387 = vector.extract_strided_slice %340 {offsets = [0, 48], sizes = [3, 8], strides = [1, 1]} : vector<3x96xf32> to vector<3x8xf32>
    %388 = arith.truncf %387 : vector<3x8xf32> to vector<3x8xbf16>
    %389 = vector.extract_strided_slice %340 {offsets = [0, 80], sizes = [3, 8], strides = [1, 1]} : vector<3x96xf32> to vector<3x8xf32>
    %390 = arith.truncf %389 : vector<3x8xf32> to vector<3x8xbf16>
    %cst_157 = arith.constant dense<0.000000e+00> : vector<3x3xf32>
    %391 = tpu.matmul %386, %388, %cst_157 {dimension_numbers = #tpu.dot_dimension_numbers<[1], [1], [0], [0], [0, 0, 1, 0], [], []>} : vector<3x8xbf16>, vector<3x8xbf16>, vector<3x3xf32> -> vector<3x3xf32>
    %cst_158 = arith.constant 0.353553385 : f32
    %392 = vector.broadcast %cst_158 : f32 to vector<3x3xf32>
    %393 = arith.mulf %391, %392 : vector<3x3xf32>
    %394 = vector.broadcast %14 : vector<1x3xf32> to vector<3x3xf32>
    %395 = arith.addf %393, %394 : vector<3x3xf32>
    %cst_159 = arith.constant dense<0xFF800000> : vector<3xf32>
    %396 = vector.multi_reduction <maximumf>, %395, %cst_159 [1] : vector<3x3xf32> to vector<3xf32>
    %397 = vector.shape_cast %396 : vector<3xf32> to vector<3x1xf32>
    %398 = vector.broadcast %397 : vector<3x1xf32> to vector<3x3xf32>
    %399 = arith.subf %395, %398 : vector<3x3xf32>
    %400 = math.exp %399 : vector<3x3xf32>
    %cst_160 = arith.constant dense<0.000000e+00> : vector<3xf32>
    %401 = vector.multi_reduction <add>, %400, %cst_160 [1] : vector<3x3xf32> to vector<3xf32>
    %402 = vector.shape_cast %401 : vector<3xf32> to vector<3x1xf32>
    %403 = vector.broadcast %402 : vector<3x1xf32> to vector<3x3xf32>
    %404 = arith.divf %400, %403 : vector<3x3xf32>
    %405 = arith.truncf %404 : vector<3x3xf32> to vector<3x3xbf16>
    %cst_161 = arith.constant dense<0.000000e+00> : vector<3x8xf32>
    %406 = tpu.matmul %405, %390, %cst_161 {dimension_numbers = #tpu.dot_dimension_numbers<[1], [0], [0], [1], [0, 0, 1, 1], [], []>} : vector<3x3xbf16>, vector<3x8xbf16>, vector<3x8xf32> -> vector<3x8xf32>
    %407 = vector.extract_strided_slice %340 {offsets = [0, 24], sizes = [3, 8], strides = [1, 1]} : vector<3x96xf32> to vector<3x8xf32>
    %408 = arith.truncf %407 : vector<3x8xf32> to vector<3x8xbf16>
    %409 = vector.extract_strided_slice %340 {offsets = [0, 56], sizes = [3, 8], strides = [1, 1]} : vector<3x96xf32> to vector<3x8xf32>
    %410 = arith.truncf %409 : vector<3x8xf32> to vector<3x8xbf16>
    %411 = vector.extract_strided_slice %340 {offsets = [0, 88], sizes = [3, 8], strides = [1, 1]} : vector<3x96xf32> to vector<3x8xf32>
    %412 = arith.truncf %411 : vector<3x8xf32> to vector<3x8xbf16>
    %cst_162 = arith.constant dense<0.000000e+00> : vector<3x3xf32>
    %413 = tpu.matmul %408, %410, %cst_162 {dimension_numbers = #tpu.dot_dimension_numbers<[1], [1], [0], [0], [0, 0, 1, 0], [], []>} : vector<3x8xbf16>, vector<3x8xbf16>, vector<3x3xf32> -> vector<3x3xf32>
    %cst_163 = arith.constant 0.353553385 : f32
    %414 = vector.broadcast %cst_163 : f32 to vector<3x3xf32>
    %415 = arith.mulf %413, %414 : vector<3x3xf32>
    %416 = vector.broadcast %14 : vector<1x3xf32> to vector<3x3xf32>
    %417 = arith.addf %415, %416 : vector<3x3xf32>
    %cst_164 = arith.constant dense<0xFF800000> : vector<3xf32>
    %418 = vector.multi_reduction <maximumf>, %417, %cst_164 [1] : vector<3x3xf32> to vector<3xf32>
    %419 = vector.shape_cast %418 : vector<3xf32> to vector<3x1xf32>
    %420 = vector.broadcast %419 : vector<3x1xf32> to vector<3x3xf32>
    %421 = arith.subf %417, %420 : vector<3x3xf32>
    %422 = math.exp %421 : vector<3x3xf32>
    %cst_165 = arith.constant dense<0.000000e+00> : vector<3xf32>
    %423 = vector.multi_reduction <add>, %422, %cst_165 [1] : vector<3x3xf32> to vector<3xf32>
    %424 = vector.shape_cast %423 : vector<3xf32> to vector<3x1xf32>
    %425 = vector.broadcast %424 : vector<3x1xf32> to vector<3x3xf32>
    %426 = arith.divf %422, %425 : vector<3x3xf32>
    %427 = arith.truncf %426 : vector<3x3xf32> to vector<3x3xbf16>
    %cst_166 = arith.constant dense<0.000000e+00> : vector<3x8xf32>
    %428 = tpu.matmul %427, %412, %cst_166 {dimension_numbers = #tpu.dot_dimension_numbers<[1], [0], [0], [1], [0, 0, 1, 1], [], []>} : vector<3x3xbf16>, vector<3x8xbf16>, vector<3x8xf32> -> vector<3x8xf32>
    %429 = tpu.concatenate %362, %384, %406, %428 in 1 : vector<3x8xf32>, vector<3x8xf32>, vector<3x8xf32>, vector<3x8xf32> -> vector<3x32xf32>
    %430 = arith.truncf %429 : vector<3x32xf32> to vector<3x32xbf16>
    %c2_167 = arith.constant 2 : index
    %c0_168 = arith.constant 0 : index
    %c0_169 = arith.constant 0 : index
    %431 = vector.load %arg8[%c2_167, %c0_168, %c0_169] : memref<4x32x32xbf16, #tpu.memory_space<vmem>>, vector<1x32x32xbf16>
    %432 = vector.shape_cast %431 : vector<1x32x32xbf16> to vector<32x32xbf16>
    %cst_170 = arith.constant dense<0.000000e+00> : vector<3x32xf32>
    %433 = tpu.matmul %430, %432, %cst_170 {dimension_numbers = #tpu.dot_dimension_numbers<[1], [0], [0], [1], [0, 0, 1, 1], [], []>} : vector<3x32xbf16>, vector<32x32xbf16>, vector<3x32xf32> -> vector<3x32xf32>
    %434 = arith.addf %12, %433 : vector<3x32xf32>
    %c2_171 = arith.constant 2 : index
    %c0_172 = arith.constant 0 : index
    %c0_173 = arith.constant 0 : index
    %435 = vector.load %arg9[%c2_171, %c0_172, %c0_173] : memref<4x1x32xf32, #tpu.memory_space<vmem>>, vector<1x1x32xf32>
    %436 = vector.shape_cast %435 : vector<1x1x32xf32> to vector<1x32xf32>
    %c2_174 = arith.constant 2 : index
    %c0_175 = arith.constant 0 : index
    %c0_176 = arith.constant 0 : index
    %437 = vector.load %arg10[%c2_174, %c0_175, %c0_176] : memref<4x1x32xf32, #tpu.memory_space<vmem>>, vector<1x1x32xf32>
    %438 = vector.shape_cast %437 : vector<1x1x32xf32> to vector<1x32xf32>
    %cst_177 = arith.constant dense<0.000000e+00> : vector<3xf32>
    %439 = vector.multi_reduction <add>, %434, %cst_177 [1] : vector<3x32xf32> to vector<3xf32>
    %440 = vector.shape_cast %439 : vector<3xf32> to vector<3x1xf32>
    %cst_178 = arith.constant 3.200000e+01 : f32
    %441 = vector.broadcast %cst_178 : f32 to vector<3x1xf32>
    %442 = arith.divf %440, %441 : vector<3x1xf32>
    %443 = vector.broadcast %442 : vector<3x1xf32> to vector<3x32xf32>
    %444 = arith.subf %434, %443 : vector<3x32xf32>
    %445 = arith.mulf %444, %444 : vector<3x32xf32>
    %cst_179 = arith.constant dense<0.000000e+00> : vector<3xf32>
    %446 = vector.multi_reduction <add>, %445, %cst_179 [1] : vector<3x32xf32> to vector<3xf32>
    %447 = vector.shape_cast %446 : vector<3xf32> to vector<3x1xf32>
    %cst_180 = arith.constant 3.200000e+01 : f32
    %448 = vector.broadcast %cst_180 : f32 to vector<3x1xf32>
    %449 = arith.divf %447, %448 : vector<3x1xf32>
    %450 = vector.broadcast %442 : vector<3x1xf32> to vector<3x32xf32>
    %451 = arith.subf %434, %450 : vector<3x32xf32>
    %cst_181 = arith.constant 9.99999974E-6 : f32
    %452 = vector.broadcast %cst_181 : f32 to vector<3x1xf32>
    %453 = arith.addf %449, %452 : vector<3x1xf32>
    %454 = math.rsqrt %453 : vector<3x1xf32>
    %455 = vector.broadcast %454 : vector<3x1xf32> to vector<3x32xf32>
    %456 = arith.mulf %451, %455 : vector<3x32xf32>
    %457 = vector.broadcast %436 : vector<1x32xf32> to vector<3x32xf32>
    %458 = arith.mulf %456, %457 : vector<3x32xf32>
    %459 = vector.broadcast %438 : vector<1x32xf32> to vector<3x32xf32>
    %460 = arith.addf %458, %459 : vector<3x32xf32>
    %461 = arith.truncf %460 : vector<3x32xf32> to vector<3x32xbf16>
    %c2_182 = arith.constant 2 : index
    %c0_183 = arith.constant 0 : index
    %c0_184 = arith.constant 0 : index
    %462 = vector.load %arg11[%c2_182, %c0_183, %c0_184] : memref<4x32x64xbf16, #tpu.memory_space<vmem>>, vector<1x32x64xbf16>
    %463 = vector.shape_cast %462 : vector<1x32x64xbf16> to vector<32x64xbf16>
    %cst_185 = arith.constant dense<0.000000e+00> : vector<3x64xf32>
    %464 = tpu.matmul %461, %463, %cst_185 {dimension_numbers = #tpu.dot_dimension_numbers<[1], [0], [0], [1], [0, 0, 1, 1], [], []>} : vector<3x32xbf16>, vector<32x64xbf16>, vector<3x64xf32> -> vector<3x64xf32>
    %c2_186 = arith.constant 2 : index
    %c0_187 = arith.constant 0 : index
    %c0_188 = arith.constant 0 : index
    %465 = vector.load %arg12[%c2_186, %c0_187, %c0_188] : memref<4x1x64xf32, #tpu.memory_space<vmem>>, vector<1x1x64xf32>
    %466 = vector.shape_cast %465 : vector<1x1x64xf32> to vector<1x64xf32>
    %467 = vector.broadcast %466 : vector<1x64xf32> to vector<3x64xf32>
    %468 = arith.addf %464, %467 : vector<3x64xf32>
    %cst_189 = arith.constant 0.000000e+00 : f32
    %469 = vector.broadcast %cst_189 : f32 to vector<3x64xf32>
    %470 = arith.maximumf %468, %469 : vector<3x64xf32>
    %471 = arith.truncf %470 : vector<3x64xf32> to vector<3x64xbf16>
    %c2_190 = arith.constant 2 : index
    %c0_191 = arith.constant 0 : index
    %c0_192 = arith.constant 0 : index
    %472 = vector.load %arg13[%c2_190, %c0_191, %c0_192] : memref<4x64x32xbf16, #tpu.memory_space<vmem>>, vector<1x64x32xbf16>
    %473 = vector.shape_cast %472 : vector<1x64x32xbf16> to vector<64x32xbf16>
    %cst_193 = arith.constant dense<0.000000e+00> : vector<3x32xf32>
    %474 = tpu.matmul %471, %473, %cst_193 {dimension_numbers = #tpu.dot_dimension_numbers<[1], [0], [0], [1], [0, 0, 1, 1], [], []>} : vector<3x64xbf16>, vector<64x32xbf16>, vector<3x32xf32> -> vector<3x32xf32>
    %c2_194 = arith.constant 2 : index
    %c0_195 = arith.constant 0 : index
    %c0_196 = arith.constant 0 : index
    %475 = vector.load %arg14[%c2_194, %c0_195, %c0_196] : memref<4x1x32xf32, #tpu.memory_space<vmem>>, vector<1x1x32xf32>
    %476 = vector.shape_cast %475 : vector<1x1x32xf32> to vector<1x32xf32>
    %477 = vector.broadcast %476 : vector<1x32xf32> to vector<3x32xf32>
    %478 = arith.addf %474, %477 : vector<3x32xf32>
    %479 = arith.addf %460, %478 : vector<3x32xf32>
    %c2_197 = arith.constant 2 : index
    %c0_198 = arith.constant 0 : index
    %c0_199 = arith.constant 0 : index
    %480 = vector.load %arg15[%c2_197, %c0_198, %c0_199] : memref<4x1x32xf32, #tpu.memory_space<vmem>>, vector<1x1x32xf32>
    %481 = vector.shape_cast %480 : vector<1x1x32xf32> to vector<1x32xf32>
    %c2_200 = arith.constant 2 : index
    %c0_201 = arith.constant 0 : index
    %c0_202 = arith.constant 0 : index
    %482 = vector.load %arg16[%c2_200, %c0_201, %c0_202] : memref<4x1x32xf32, #tpu.memory_space<vmem>>, vector<1x1x32xf32>
    %483 = vector.shape_cast %482 : vector<1x1x32xf32> to vector<1x32xf32>
    %cst_203 = arith.constant dense<0.000000e+00> : vector<3xf32>
    %484 = vector.multi_reduction <add>, %479, %cst_203 [1] : vector<3x32xf32> to vector<3xf32>
    %485 = vector.shape_cast %484 : vector<3xf32> to vector<3x1xf32>
    %cst_204 = arith.constant 3.200000e+01 : f32
    %486 = vector.broadcast %cst_204 : f32 to vector<3x1xf32>
    %487 = arith.divf %485, %486 : vector<3x1xf32>
    %488 = vector.broadcast %487 : vector<3x1xf32> to vector<3x32xf32>
    %489 = arith.subf %479, %488 : vector<3x32xf32>
    %490 = arith.mulf %489, %489 : vector<3x32xf32>
    %cst_205 = arith.constant dense<0.000000e+00> : vector<3xf32>
    %491 = vector.multi_reduction <add>, %490, %cst_205 [1] : vector<3x32xf32> to vector<3xf32>
    %492 = vector.shape_cast %491 : vector<3xf32> to vector<3x1xf32>
    %cst_206 = arith.constant 3.200000e+01 : f32
    %493 = vector.broadcast %cst_206 : f32 to vector<3x1xf32>
    %494 = arith.divf %492, %493 : vector<3x1xf32>
    %495 = vector.broadcast %487 : vector<3x1xf32> to vector<3x32xf32>
    %496 = arith.subf %479, %495 : vector<3x32xf32>
    %cst_207 = arith.constant 9.99999974E-6 : f32
    %497 = vector.broadcast %cst_207 : f32 to vector<3x1xf32>
    %498 = arith.addf %494, %497 : vector<3x1xf32>
    %499 = math.rsqrt %498 : vector<3x1xf32>
    %500 = vector.broadcast %499 : vector<3x1xf32> to vector<3x32xf32>
    %501 = arith.mulf %496, %500 : vector<3x32xf32>
    %502 = vector.broadcast %481 : vector<1x32xf32> to vector<3x32xf32>
    %503 = arith.mulf %501, %502 : vector<3x32xf32>
    %504 = vector.broadcast %483 : vector<1x32xf32> to vector<3x32xf32>
    %505 = arith.addf %503, %504 : vector<3x32xf32>
    %506 = arith.truncf %505 : vector<3x32xf32> to vector<3x32xbf16>
    %c3 = arith.constant 3 : index
    %c0_208 = arith.constant 0 : index
    %c0_209 = arith.constant 0 : index
    %507 = vector.load %arg7[%c3, %c0_208, %c0_209] : memref<4x32x96xbf16, #tpu.memory_space<vmem>>, vector<1x32x96xbf16>
    %508 = vector.shape_cast %507 : vector<1x32x96xbf16> to vector<32x96xbf16>
    %cst_210 = arith.constant dense<0.000000e+00> : vector<3x96xf32>
    %509 = tpu.matmul %506, %508, %cst_210 {dimension_numbers = #tpu.dot_dimension_numbers<[1], [0], [0], [1], [0, 0, 1, 1], [], []>} : vector<3x32xbf16>, vector<32x96xbf16>, vector<3x96xf32> -> vector<3x96xf32>
    %510 = vector.extract_strided_slice %509 {offsets = [0, 0], sizes = [3, 8], strides = [1, 1]} : vector<3x96xf32> to vector<3x8xf32>
    %511 = arith.truncf %510 : vector<3x8xf32> to vector<3x8xbf16>
    %512 = vector.extract_strided_slice %509 {offsets = [0, 32], sizes = [3, 8], strides = [1, 1]} : vector<3x96xf32> to vector<3x8xf32>
    %513 = arith.truncf %512 : vector<3x8xf32> to vector<3x8xbf16>
    %514 = vector.extract_strided_slice %509 {offsets = [0, 64], sizes = [3, 8], strides = [1, 1]} : vector<3x96xf32> to vector<3x8xf32>
    %515 = arith.truncf %514 : vector<3x8xf32> to vector<3x8xbf16>
    %cst_211 = arith.constant dense<0.000000e+00> : vector<3x3xf32>
    %516 = tpu.matmul %511, %513, %cst_211 {dimension_numbers = #tpu.dot_dimension_numbers<[1], [1], [0], [0], [0, 0, 1, 0], [], []>} : vector<3x8xbf16>, vector<3x8xbf16>, vector<3x3xf32> -> vector<3x3xf32>
    %cst_212 = arith.constant 0.353553385 : f32
    %517 = vector.broadcast %cst_212 : f32 to vector<3x3xf32>
    %518 = arith.mulf %516, %517 : vector<3x3xf32>
    %519 = vector.broadcast %14 : vector<1x3xf32> to vector<3x3xf32>
    %520 = arith.addf %518, %519 : vector<3x3xf32>
    %cst_213 = arith.constant dense<0xFF800000> : vector<3xf32>
    %521 = vector.multi_reduction <maximumf>, %520, %cst_213 [1] : vector<3x3xf32> to vector<3xf32>
    %522 = vector.shape_cast %521 : vector<3xf32> to vector<3x1xf32>
    %523 = vector.broadcast %522 : vector<3x1xf32> to vector<3x3xf32>
    %524 = arith.subf %520, %523 : vector<3x3xf32>
    %525 = math.exp %524 : vector<3x3xf32>
    %cst_214 = arith.constant dense<0.000000e+00> : vector<3xf32>
    %526 = vector.multi_reduction <add>, %525, %cst_214 [1] : vector<3x3xf32> to vector<3xf32>
    %527 = vector.shape_cast %526 : vector<3xf32> to vector<3x1xf32>
    %528 = vector.broadcast %527 : vector<3x1xf32> to vector<3x3xf32>
    %529 = arith.divf %525, %528 : vector<3x3xf32>
    %530 = arith.truncf %529 : vector<3x3xf32> to vector<3x3xbf16>
    %cst_215 = arith.constant dense<0.000000e+00> : vector<3x8xf32>
    %531 = tpu.matmul %530, %515, %cst_215 {dimension_numbers = #tpu.dot_dimension_numbers<[1], [0], [0], [1], [0, 0, 1, 1], [], []>} : vector<3x3xbf16>, vector<3x8xbf16>, vector<3x8xf32> -> vector<3x8xf32>
    %532 = vector.extract_strided_slice %509 {offsets = [0, 8], sizes = [3, 8], strides = [1, 1]} : vector<3x96xf32> to vector<3x8xf32>
    %533 = arith.truncf %532 : vector<3x8xf32> to vector<3x8xbf16>
    %534 = vector.extract_strided_slice %509 {offsets = [0, 40], sizes = [3, 8], strides = [1, 1]} : vector<3x96xf32> to vector<3x8xf32>
    %535 = arith.truncf %534 : vector<3x8xf32> to vector<3x8xbf16>
    %536 = vector.extract_strided_slice %509 {offsets = [0, 72], sizes = [3, 8], strides = [1, 1]} : vector<3x96xf32> to vector<3x8xf32>
    %537 = arith.truncf %536 : vector<3x8xf32> to vector<3x8xbf16>
    %cst_216 = arith.constant dense<0.000000e+00> : vector<3x3xf32>
    %538 = tpu.matmul %533, %535, %cst_216 {dimension_numbers = #tpu.dot_dimension_numbers<[1], [1], [0], [0], [0, 0, 1, 0], [], []>} : vector<3x8xbf16>, vector<3x8xbf16>, vector<3x3xf32> -> vector<3x3xf32>
    %cst_217 = arith.constant 0.353553385 : f32
    %539 = vector.broadcast %cst_217 : f32 to vector<3x3xf32>
    %540 = arith.mulf %538, %539 : vector<3x3xf32>
    %541 = vector.broadcast %14 : vector<1x3xf32> to vector<3x3xf32>
    %542 = arith.addf %540, %541 : vector<3x3xf32>
    %cst_218 = arith.constant dense<0xFF800000> : vector<3xf32>
    %543 = vector.multi_reduction <maximumf>, %542, %cst_218 [1] : vector<3x3xf32> to vector<3xf32>
    %544 = vector.shape_cast %543 : vector<3xf32> to vector<3x1xf32>
    %545 = vector.broadcast %544 : vector<3x1xf32> to vector<3x3xf32>
    %546 = arith.subf %542, %545 : vector<3x3xf32>
    %547 = math.exp %546 : vector<3x3xf32>
    %cst_219 = arith.constant dense<0.000000e+00> : vector<3xf32>
    %548 = vector.multi_reduction <add>, %547, %cst_219 [1] : vector<3x3xf32> to vector<3xf32>
    %549 = vector.shape_cast %548 : vector<3xf32> to vector<3x1xf32>
    %550 = vector.broadcast %549 : vector<3x1xf32> to vector<3x3xf32>
    %551 = arith.divf %547, %550 : vector<3x3xf32>
    %552 = arith.truncf %551 : vector<3x3xf32> to vector<3x3xbf16>
    %cst_220 = arith.constant dense<0.000000e+00> : vector<3x8xf32>
    %553 = tpu.matmul %552, %537, %cst_220 {dimension_numbers = #tpu.dot_dimension_numbers<[1], [0], [0], [1], [0, 0, 1, 1], [], []>} : vector<3x3xbf16>, vector<3x8xbf16>, vector<3x8xf32> -> vector<3x8xf32>
    %554 = vector.extract_strided_slice %509 {offsets = [0, 16], sizes = [3, 8], strides = [1, 1]} : vector<3x96xf32> to vector<3x8xf32>
    %555 = arith.truncf %554 : vector<3x8xf32> to vector<3x8xbf16>
    %556 = vector.extract_strided_slice %509 {offsets = [0, 48], sizes = [3, 8], strides = [1, 1]} : vector<3x96xf32> to vector<3x8xf32>
    %557 = arith.truncf %556 : vector<3x8xf32> to vector<3x8xbf16>
    %558 = vector.extract_strided_slice %509 {offsets = [0, 80], sizes = [3, 8], strides = [1, 1]} : vector<3x96xf32> to vector<3x8xf32>
    %559 = arith.truncf %558 : vector<3x8xf32> to vector<3x8xbf16>
    %cst_221 = arith.constant dense<0.000000e+00> : vector<3x3xf32>
    %560 = tpu.matmul %555, %557, %cst_221 {dimension_numbers = #tpu.dot_dimension_numbers<[1], [1], [0], [0], [0, 0, 1, 0], [], []>} : vector<3x8xbf16>, vector<3x8xbf16>, vector<3x3xf32> -> vector<3x3xf32>
    %cst_222 = arith.constant 0.353553385 : f32
    %561 = vector.broadcast %cst_222 : f32 to vector<3x3xf32>
    %562 = arith.mulf %560, %561 : vector<3x3xf32>
    %563 = vector.broadcast %14 : vector<1x3xf32> to vector<3x3xf32>
    %564 = arith.addf %562, %563 : vector<3x3xf32>
    %cst_223 = arith.constant dense<0xFF800000> : vector<3xf32>
    %565 = vector.multi_reduction <maximumf>, %564, %cst_223 [1] : vector<3x3xf32> to vector<3xf32>
    %566 = vector.shape_cast %565 : vector<3xf32> to vector<3x1xf32>
    %567 = vector.broadcast %566 : vector<3x1xf32> to vector<3x3xf32>
    %568 = arith.subf %564, %567 : vector<3x3xf32>
    %569 = math.exp %568 : vector<3x3xf32>
    %cst_224 = arith.constant dense<0.000000e+00> : vector<3xf32>
    %570 = vector.multi_reduction <add>, %569, %cst_224 [1] : vector<3x3xf32> to vector<3xf32>
    %571 = vector.shape_cast %570 : vector<3xf32> to vector<3x1xf32>
    %572 = vector.broadcast %571 : vector<3x1xf32> to vector<3x3xf32>
    %573 = arith.divf %569, %572 : vector<3x3xf32>
    %574 = arith.truncf %573 : vector<3x3xf32> to vector<3x3xbf16>
    %cst_225 = arith.constant dense<0.000000e+00> : vector<3x8xf32>
    %575 = tpu.matmul %574, %559, %cst_225 {dimension_numbers = #tpu.dot_dimension_numbers<[1], [0], [0], [1], [0, 0, 1, 1], [], []>} : vector<3x3xbf16>, vector<3x8xbf16>, vector<3x8xf32> -> vector<3x8xf32>
    %576 = vector.extract_strided_slice %509 {offsets = [0, 24], sizes = [3, 8], strides = [1, 1]} : vector<3x96xf32> to vector<3x8xf32>
    %577 = arith.truncf %576 : vector<3x8xf32> to vector<3x8xbf16>
    %578 = vector.extract_strided_slice %509 {offsets = [0, 56], sizes = [3, 8], strides = [1, 1]} : vector<3x96xf32> to vector<3x8xf32>
    %579 = arith.truncf %578 : vector<3x8xf32> to vector<3x8xbf16>
    %580 = vector.extract_strided_slice %509 {offsets = [0, 88], sizes = [3, 8], strides = [1, 1]} : vector<3x96xf32> to vector<3x8xf32>
    %581 = arith.truncf %580 : vector<3x8xf32> to vector<3x8xbf16>
    %cst_226 = arith.constant dense<0.000000e+00> : vector<3x3xf32>
    %582 = tpu.matmul %577, %579, %cst_226 {dimension_numbers = #tpu.dot_dimension_numbers<[1], [1], [0], [0], [0, 0, 1, 0], [], []>} : vector<3x8xbf16>, vector<3x8xbf16>, vector<3x3xf32> -> vector<3x3xf32>
    %cst_227 = arith.constant 0.353553385 : f32
    %583 = vector.broadcast %cst_227 : f32 to vector<3x3xf32>
    %584 = arith.mulf %582, %583 : vector<3x3xf32>
    %585 = vector.broadcast %14 : vector<1x3xf32> to vector<3x3xf32>
    %586 = arith.addf %584, %585 : vector<3x3xf32>
    %cst_228 = arith.constant dense<0xFF800000> : vector<3xf32>
    %587 = vector.multi_reduction <maximumf>, %586, %cst_228 [1] : vector<3x3xf32> to vector<3xf32>
    %588 = vector.shape_cast %587 : vector<3xf32> to vector<3x1xf32>
    %589 = vector.broadcast %588 : vector<3x1xf32> to vector<3x3xf32>
    %590 = arith.subf %586, %589 : vector<3x3xf32>
    %591 = math.exp %590 : vector<3x3xf32>
    %cst_229 = arith.constant dense<0.000000e+00> : vector<3xf32>
    %592 = vector.multi_reduction <add>, %591, %cst_229 [1] : vector<3x3xf32> to vector<3xf32>
    %593 = vector.shape_cast %592 : vector<3xf32> to vector<3x1xf32>
    %594 = vector.broadcast %593 : vector<3x1xf32> to vector<3x3xf32>
    %595 = arith.divf %591, %594 : vector<3x3xf32>
    %596 = arith.truncf %595 : vector<3x3xf32> to vector<3x3xbf16>
    %cst_230 = arith.constant dense<0.000000e+00> : vector<3x8xf32>
    %597 = tpu.matmul %596, %581, %cst_230 {dimension_numbers = #tpu.dot_dimension_numbers<[1], [0], [0], [1], [0, 0, 1, 1], [], []>} : vector<3x3xbf16>, vector<3x8xbf16>, vector<3x8xf32> -> vector<3x8xf32>
    %598 = tpu.concatenate %531, %553, %575, %597 in 1 : vector<3x8xf32>, vector<3x8xf32>, vector<3x8xf32>, vector<3x8xf32> -> vector<3x32xf32>
    %599 = arith.truncf %598 : vector<3x32xf32> to vector<3x32xbf16>
    %c3_231 = arith.constant 3 : index
    %c0_232 = arith.constant 0 : index
    %c0_233 = arith.constant 0 : index
    %600 = vector.load %arg8[%c3_231, %c0_232, %c0_233] : memref<4x32x32xbf16, #tpu.memory_space<vmem>>, vector<1x32x32xbf16>
    %601 = vector.shape_cast %600 : vector<1x32x32xbf16> to vector<32x32xbf16>
    %cst_234 = arith.constant dense<0.000000e+00> : vector<3x32xf32>
    %602 = tpu.matmul %599, %601, %cst_234 {dimension_numbers = #tpu.dot_dimension_numbers<[1], [0], [0], [1], [0, 0, 1, 1], [], []>} : vector<3x32xbf16>, vector<32x32xbf16>, vector<3x32xf32> -> vector<3x32xf32>
    %603 = arith.addf %505, %602 : vector<3x32xf32>
    %c3_235 = arith.constant 3 : index
    %c0_236 = arith.constant 0 : index
    %c0_237 = arith.constant 0 : index
    %604 = vector.load %arg9[%c3_235, %c0_236, %c0_237] : memref<4x1x32xf32, #tpu.memory_space<vmem>>, vector<1x1x32xf32>
    %605 = vector.shape_cast %604 : vector<1x1x32xf32> to vector<1x32xf32>
    %c3_238 = arith.constant 3 : index
    %c0_239 = arith.constant 0 : index
    %c0_240 = arith.constant 0 : index
    %606 = vector.load %arg10[%c3_238, %c0_239, %c0_240] : memref<4x1x32xf32, #tpu.memory_space<vmem>>, vector<1x1x32xf32>
    %607 = vector.shape_cast %606 : vector<1x1x32xf32> to vector<1x32xf32>
    %cst_241 = arith.constant dense<0.000000e+00> : vector<3xf32>
    %608 = vector.multi_reduction <add>, %603, %cst_241 [1] : vector<3x32xf32> to vector<3xf32>
    %609 = vector.shape_cast %608 : vector<3xf32> to vector<3x1xf32>
    %cst_242 = arith.constant 3.200000e+01 : f32
    %610 = vector.broadcast %cst_242 : f32 to vector<3x1xf32>
    %611 = arith.divf %609, %610 : vector<3x1xf32>
    %612 = vector.broadcast %611 : vector<3x1xf32> to vector<3x32xf32>
    %613 = arith.subf %603, %612 : vector<3x32xf32>
    %614 = arith.mulf %613, %613 : vector<3x32xf32>
    %cst_243 = arith.constant dense<0.000000e+00> : vector<3xf32>
    %615 = vector.multi_reduction <add>, %614, %cst_243 [1] : vector<3x32xf32> to vector<3xf32>
    %616 = vector.shape_cast %615 : vector<3xf32> to vector<3x1xf32>
    %cst_244 = arith.constant 3.200000e+01 : f32
    %617 = vector.broadcast %cst_244 : f32 to vector<3x1xf32>
    %618 = arith.divf %616, %617 : vector<3x1xf32>
    %619 = vector.broadcast %611 : vector<3x1xf32> to vector<3x32xf32>
    %620 = arith.subf %603, %619 : vector<3x32xf32>
    %cst_245 = arith.constant 9.99999974E-6 : f32
    %621 = vector.broadcast %cst_245 : f32 to vector<3x1xf32>
    %622 = arith.addf %618, %621 : vector<3x1xf32>
    %623 = math.rsqrt %622 : vector<3x1xf32>
    %624 = vector.broadcast %623 : vector<3x1xf32> to vector<3x32xf32>
    %625 = arith.mulf %620, %624 : vector<3x32xf32>
    %626 = vector.broadcast %605 : vector<1x32xf32> to vector<3x32xf32>
    %627 = arith.mulf %625, %626 : vector<3x32xf32>
    %628 = vector.broadcast %607 : vector<1x32xf32> to vector<3x32xf32>
    %629 = arith.addf %627, %628 : vector<3x32xf32>
    %630 = arith.truncf %629 : vector<3x32xf32> to vector<3x32xbf16>
    %c3_246 = arith.constant 3 : index
    %c0_247 = arith.constant 0 : index
    %c0_248 = arith.constant 0 : index
    %631 = vector.load %arg11[%c3_246, %c0_247, %c0_248] : memref<4x32x64xbf16, #tpu.memory_space<vmem>>, vector<1x32x64xbf16>
    %632 = vector.shape_cast %631 : vector<1x32x64xbf16> to vector<32x64xbf16>
    %cst_249 = arith.constant dense<0.000000e+00> : vector<3x64xf32>
    %633 = tpu.matmul %630, %632, %cst_249 {dimension_numbers = #tpu.dot_dimension_numbers<[1], [0], [0], [1], [0, 0, 1, 1], [], []>} : vector<3x32xbf16>, vector<32x64xbf16>, vector<3x64xf32> -> vector<3x64xf32>
    %c3_250 = arith.constant 3 : index
    %c0_251 = arith.constant 0 : index
    %c0_252 = arith.constant 0 : index
    %634 = vector.load %arg12[%c3_250, %c0_251, %c0_252] : memref<4x1x64xf32, #tpu.memory_space<vmem>>, vector<1x1x64xf32>
    %635 = vector.shape_cast %634 : vector<1x1x64xf32> to vector<1x64xf32>
    %636 = vector.broadcast %635 : vector<1x64xf32> to vector<3x64xf32>
    %637 = arith.addf %633, %636 : vector<3x64xf32>
    %cst_253 = arith.constant 0.000000e+00 : f32
    %638 = vector.broadcast %cst_253 : f32 to vector<3x64xf32>
    %639 = arith.maximumf %637, %638 : vector<3x64xf32>
    %640 = arith.truncf %639 : vector<3x64xf32> to vector<3x64xbf16>
    %c3_254 = arith.constant 3 : index
    %c0_255 = arith.constant 0 : index
    %c0_256 = arith.constant 0 : index
    %641 = vector.load %arg13[%c3_254, %c0_255, %c0_256] : memref<4x64x32xbf16, #tpu.memory_space<vmem>>, vector<1x64x32xbf16>
    %642 = vector.shape_cast %641 : vector<1x64x32xbf16> to vector<64x32xbf16>
    %cst_257 = arith.constant dense<0.000000e+00> : vector<3x32xf32>
    %643 = tpu.matmul %640, %642, %cst_257 {dimension_numbers = #tpu.dot_dimension_numbers<[1], [0], [0], [1], [0, 0, 1, 1], [], []>} : vector<3x64xbf16>, vector<64x32xbf16>, vector<3x32xf32> -> vector<3x32xf32>
    %c3_258 = arith.constant 3 : index
    %c0_259 = arith.constant 0 : index
    %c0_260 = arith.constant 0 : index
    %644 = vector.load %arg14[%c3_258, %c0_259, %c0_260] : memref<4x1x32xf32, #tpu.memory_space<vmem>>, vector<1x1x32xf32>
    %645 = vector.shape_cast %644 : vector<1x1x32xf32> to vector<1x32xf32>
    %646 = vector.broadcast %645 : vector<1x32xf32> to vector<3x32xf32>
    %647 = arith.addf %643, %646 : vector<3x32xf32>
    %648 = arith.addf %629, %647 : vector<3x32xf32>
    %c3_261 = arith.constant 3 : index
    %c0_262 = arith.constant 0 : index
    %c0_263 = arith.constant 0 : index
    %649 = vector.load %arg15[%c3_261, %c0_262, %c0_263] : memref<4x1x32xf32, #tpu.memory_space<vmem>>, vector<1x1x32xf32>
    %650 = vector.shape_cast %649 : vector<1x1x32xf32> to vector<1x32xf32>
    %c3_264 = arith.constant 3 : index
    %c0_265 = arith.constant 0 : index
    %c0_266 = arith.constant 0 : index
    %651 = vector.load %arg16[%c3_264, %c0_265, %c0_266] : memref<4x1x32xf32, #tpu.memory_space<vmem>>, vector<1x1x32xf32>
    %652 = vector.shape_cast %651 : vector<1x1x32xf32> to vector<1x32xf32>
    %cst_267 = arith.constant dense<0.000000e+00> : vector<3xf32>
    %653 = vector.multi_reduction <add>, %648, %cst_267 [1] : vector<3x32xf32> to vector<3xf32>
    %654 = vector.shape_cast %653 : vector<3xf32> to vector<3x1xf32>
    %cst_268 = arith.constant 3.200000e+01 : f32
    %655 = vector.broadcast %cst_268 : f32 to vector<3x1xf32>
    %656 = arith.divf %654, %655 : vector<3x1xf32>
    %657 = vector.broadcast %656 : vector<3x1xf32> to vector<3x32xf32>
    %658 = arith.subf %648, %657 : vector<3x32xf32>
    %659 = arith.mulf %658, %658 : vector<3x32xf32>
    %cst_269 = arith.constant dense<0.000000e+00> : vector<3xf32>
    %660 = vector.multi_reduction <add>, %659, %cst_269 [1] : vector<3x32xf32> to vector<3xf32>
    %661 = vector.shape_cast %660 : vector<3xf32> to vector<3x1xf32>
    %cst_270 = arith.constant 3.200000e+01 : f32
    %662 = vector.broadcast %cst_270 : f32 to vector<3x1xf32>
    %663 = arith.divf %661, %662 : vector<3x1xf32>
    %664 = vector.broadcast %656 : vector<3x1xf32> to vector<3x32xf32>
    %665 = arith.subf %648, %664 : vector<3x32xf32>
    %cst_271 = arith.constant 9.99999974E-6 : f32
    %666 = vector.broadcast %cst_271 : f32 to vector<3x1xf32>
    %667 = arith.addf %663, %666 : vector<3x1xf32>
    %668 = math.rsqrt %667 : vector<3x1xf32>
    %669 = vector.broadcast %668 : vector<3x1xf32> to vector<3x32xf32>
    %670 = arith.mulf %665, %669 : vector<3x32xf32>
    %671 = vector.broadcast %650 : vector<1x32xf32> to vector<3x32xf32>
    %672 = arith.mulf %670, %671 : vector<3x32xf32>
    %673 = vector.broadcast %652 : vector<1x32xf32> to vector<3x32xf32>
    %674 = arith.addf %672, %673 : vector<3x32xf32>
    %c0_272 = arith.constant 0 : index
    %c0_273 = arith.constant 0 : index
    %c0_274 = arith.constant 0 : index
    %675 = vector.load %arg17[%c0_272, %c0_273, %c0_274] : memref<1x16x32xf32, #tpu.memory_space<vmem>>, vector<1x16x32xf32>
    %676 = vector.shape_cast %675 : vector<1x16x32xf32> to vector<16x32xf32>
    %677 = vector.shape_cast %336 : vector<16x32xf32> to vector<1x16x32xf32>
    tpu.vector_store %arg17[%c0_272, %c0_273, %c0_274], %677 {strides = array<i32>} : memref<1x16x32xf32, #tpu.memory_space<vmem>>, vector<1x16x32xf32>,
    %c0_275 = arith.constant 0 : index
    %c0_276 = arith.constant 0 : index
    %c0_277 = arith.constant 0 : index
    %678 = vector.load %arg19[%c0_275, %c0_276, %c0_277] : memref<1x3x32xf32, #tpu.memory_space<vmem>>, vector<1x3x32xf32>
    %679 = vector.shape_cast %678 : vector<1x3x32xf32> to vector<3x32xf32>
    %680 = vector.shape_cast %674 : vector<3x32xf32> to vector<1x3x32xf32>
    tpu.vector_store %arg19[%c0_275, %c0_276, %c0_277], %680 {strides = array<i32>} : memref<1x3x32xf32, #tpu.memory_space<vmem>>, vector<1x3x32xf32>,
    %cst_278 = arith.constant dense<0.000000e+00> : vector<32xf32>
    %681 = vector.multi_reduction <add>, %336, %cst_278 [0] : vector<16x32xf32> to vector<32xf32>
    %682 = vector.shape_cast %681 : vector<32xf32> to vector<1x32xf32>
    %cst_279 = arith.constant 1.600000e+01 : f32
    %683 = vector.broadcast %cst_279 : f32 to vector<1x32xf32>
    %684 = arith.divf %682, %683 : vector<1x32xf32>
    %c0_280 = arith.constant 0 : index
    %c0_281 = arith.constant 0 : index
    %c0_282 = arith.constant 0 : index
    %685 = vector.load %arg18[%c0_280, %c0_281, %c0_282] : memref<1x1x32xf32, #tpu.memory_space<vmem>>, vector<1x1x32xf32>
    %686 = vector.shape_cast %685 : vector<1x1x32xf32> to vector<1x32xf32>
    %687 = vector.shape_cast %684 : vector<1x32xf32> to vector<1x1x32xf32>
    tpu.vector_store %arg18[%c0_280, %c0_281, %c0_282], %687 {strides = array<i32>} : memref<1x1x32xf32, #tpu.memory_space<vmem>>, vector<1x1x32xf32>,
    return
  }
  func.func @transform_0(%arg0: i32) -> (i32, i32, i32) {
    %c0_i32 = arith.constant 0 : i32
    %c0_i32_0 = arith.constant 0 : i32
    %c0_i32_1 = arith.constant 0 : i32
    return %arg0, %c0_i32, %c0_i32_0 : i32, i32, i32
  }
  func.func @transform_1(%arg0: i32) -> (i32, i32, i32) {
    %c0_i32 = arith.constant 0 : i32
    %c0_i32_0 = arith.constant 0 : i32
    %c0_i32_1 = arith.constant 0 : i32
    return %arg0, %c0_i32, %c0_i32_0 : i32, i32, i32
  }
  func.func @transform_2(%arg0: i32) -> (i32, i32, i32) {
    %c0_i32 = arith.constant 0 : i32
    %c0_i32_0 = arith.constant 0 : i32
    %c0_i32_1 = arith.constant 0 : i32
    return %arg0, %c0_i32, %c0_i32_0 : i32, i32, i32
  }
  func.func @transform_3(%arg0: i32) -> (i32, i32) {
    %c0_i32 = arith.constant 0 : i32
    %c0_i32_0 = arith.constant 0 : i32
    %c0_i32_1 = arith.constant 0 : i32
    return %c0_i32, %c0_i32_0 : i32, i32
  }
  func.func @transform_4(%arg0: i32) -> (i32, i32) {
    %c0_i32 = arith.constant 0 : i32
    %c0_i32_0 = arith.constant 0 : i32
    %c0_i32_1 = arith.constant 0 : i32
    return %c0_i32, %c0_i32_0 : i32, i32
  }
  func.func @transform_5(%arg0: i32) -> (i32, i32) {
    %c0_i32 = arith.constant 0 : i32
    %c0_i32_0 = arith.constant 0 : i32
    %c0_i32_1 = arith.constant 0 : i32
    return %c0_i32, %c0_i32_0 : i32, i32
  }
  func.func @transform_6(%arg0: i32) -> (i32, i32, i32) {
    %c0_i32 = arith.constant 0 : i32
    %c0_i32_0 = arith.constant 0 : i32
    %c0_i32_1 = arith.constant 0 : i32
    %c0_i32_2 = arith.constant 0 : i32
    return %c0_i32, %c0_i32_0, %c0_i32_1 : i32, i32, i32
  }
  func.func @transform_7(%arg0: i32) -> (i32, i32, i32) {
    %c0_i32 = arith.constant 0 : i32
    %c0_i32_0 = arith.constant 0 : i32
    %c0_i32_1 = arith.constant 0 : i32
    %c0_i32_2 = arith.constant 0 : i32
    return %c0_i32, %c0_i32_0, %c0_i32_1 : i32, i32, i32
  }
  func.func @transform_8(%arg0: i32) -> (i32, i32, i32) {
    %c0_i32 = arith.constant 0 : i32
    %c0_i32_0 = arith.constant 0 : i32
    %c0_i32_1 = arith.constant 0 : i32
    %c0_i32_2 = arith.constant 0 : i32
    return %c0_i32, %c0_i32_0, %c0_i32_1 : i32, i32, i32
  }
  func.func @transform_9(%arg0: i32) -> (i32, i32, i32) {
    %c0_i32 = arith.constant 0 : i32
    %c0_i32_0 = arith.constant 0 : i32
    %c0_i32_1 = arith.constant 0 : i32
    %c0_i32_2 = arith.constant 0 : i32
    return %c0_i32, %c0_i32_0, %c0_i32_1 : i32, i32, i32
  }
  func.func @transform_10(%arg0: i32) -> (i32, i32, i32) {
    %c0_i32 = arith.constant 0 : i32
    %c0_i32_0 = arith.constant 0 : i32
    %c0_i32_1 = arith.constant 0 : i32
    %c0_i32_2 = arith.constant 0 : i32
    return %c0_i32, %c0_i32_0, %c0_i32_1 : i32, i32, i32
  }
  func.func @transform_11(%arg0: i32) -> (i32, i32, i32) {
    %c0_i32 = arith.constant 0 : i32
    %c0_i32_0 = arith.constant 0 : i32
    %c0_i32_1 = arith.constant 0 : i32
    %c0_i32_2 = arith.constant 0 : i32
    return %c0_i32, %c0_i32_0, %c0_i32_1 : i32, i32, i32
  }
  func.func @transform_12(%arg0: i32) -> (i32, i32, i32) {
    %c0_i32 = arith.constant 0 : i32
    %c0_i32_0 = arith.constant 0 : i32
    %c0_i32_1 = arith.constant 0 : i32
    %c0_i32_2 = arith.constant 0 : i32
    return %c0_i32, %c0_i32_0, %c0_i32_1 : i32, i32, i32
  }
  func.func @transform_13(%arg0: i32) -> (i32, i32, i32) {
    %c0_i32 = arith.constant 0 : i32
    %c0_i32_0 = arith.constant 0 : i32
    %c0_i32_1 = arith.constant 0 : i32
    %c0_i32_2 = arith.constant 0 : i32
    return %c0_i32, %c0_i32_0, %c0_i32_1 : i32, i32, i32
  }
  func.func @transform_14(%arg0: i32) -> (i32, i32, i32) {
    %c0_i32 = arith.constant 0 : i32
    %c0_i32_0 = arith.constant 0 : i32
    %c0_i32_1 = arith.constant 0 : i32
    %c0_i32_2 = arith.constant 0 : i32
    return %c0_i32, %c0_i32_0, %c0_i32_1 : i32, i32, i32
  }
  func.func @transform_15(%arg0: i32) -> (i32, i32, i32) {
    %c0_i32 = arith.constant 0 : i32
    %c0_i32_0 = arith.constant 0 : i32
    %c0_i32_1 = arith.constant 0 : i32
    %c0_i32_2 = arith.constant 0 : i32
    return %c0_i32, %c0_i32_0, %c0_i32_1 : i32, i32, i32
  }
  func.func @transform_16(%arg0: i32) -> (i32, i32, i32) {
    %c0_i32 = arith.constant 0 : i32
    %c0_i32_0 = arith.constant 0 : i32
    %c0_i32_1 = arith.constant 0 : i32
    return %arg0, %c0_i32, %c0_i32_0 : i32, i32, i32
  }
  func.func @transform_17(%arg0: i32) -> (i32, i32, i32) {
    %c0_i32 = arith.constant 0 : i32
    %c0_i32_0 = arith.constant 0 : i32
    %c0_i32_1 = arith.constant 0 : i32
    return %arg0, %c0_i32, %c0_i32_0 : i32, i32, i32
  }
  func.func @transform_18(%arg0: i32) -> (i32, i32, i32) {
    %c0_i32 = arith.constant 0 : i32
    %c0_i32_0 = arith.constant 0 : i32
    %c0_i32_1 = arith.constant 0 : i32
    return %arg0, %c0_i32, %c0_i32_0 : i32, i32, i32
  }
}

</mosaic_0001>

<llo_original>
// kernel: graph_attention_encoder.1
$region0: #{graph_attention_encoder.1}
  #allocation0 [shape = 'u32[]', space=smem, size = 0x4, offset = 0x4, fixed_abs, tag = 'smem constant byte address 0x4 - core index']
  #allocation1 [shape = 'u32[144,128]{1,0:T(1,128)}', space=vmem, size = 0x12000, scoped, tag = 'internal scratch']
  %s0 = inlined_call_operand.vmem [shape: f32[2,16,8], index: 0, kind: input, shape index: {}]
  %s1 = inlined_call_operand.vmem [shape: f32[2,3,64], index: 1, kind: input, shape index: {}]
  %s2 = inlined_call_operand.vmem [shape: f32[2,1,3], index: 2, kind: input, shape index: {}]
  %s3 = inlined_call_operand.vmem [shape: bf16[8,32], index: 3, kind: input, shape index: {}]
  %s4 = inlined_call_operand.vmem [shape: bf16[64,32], index: 4, kind: input, shape index: {}]
  %s5 = inlined_call_operand.vmem [shape: f32[1,32], index: 5, kind: input, shape index: {}]
  %s6 = inlined_call_operand.vmem [shape: bf16[4,32,96], index: 6, kind: input, shape index: {}]
  %s7 = inlined_call_operand.vmem [shape: bf16[4,32,32], index: 7, kind: input, shape index: {}]
  %s8 = inlined_call_operand.vmem [shape: f32[4,1,32], index: 8, kind: input, shape index: {}]
  %s9 = inlined_call_operand.vmem [shape: f32[4,1,32], index: 9, kind: input, shape index: {}]
  %s10 = inlined_call_operand.vmem [shape: bf16[4,32,64], index: 10, kind: input, shape index: {}]
  %s11 = inlined_call_operand.vmem [shape: f32[4,1,64], index: 11, kind: input, shape index: {}]
  %s12 = inlined_call_operand.vmem [shape: bf16[4,64,32], index: 12, kind: input, shape index: {}]
  %s13 = inlined_call_operand.vmem [shape: f32[4,1,32], index: 13, kind: input, shape index: {}]
  %s14 = inlined_call_operand.vmem [shape: f32[4,1,32], index: 14, kind: input, shape index: {}]
  %s15 = inlined_call_operand.vmem [shape: f32[4,1,32], index: 15, kind: input, shape index: {}]
  %s16 = inlined_call_operand.hbm [shape: f32[2,16,32], index: 16, kind: output, shape index: {0}]
  %s17 = inlined_call_operand.hbm [shape: f32[2,1,32], index: 17, kind: output, shape index: {1}]
  %s18 = inlined_call_operand.vmem [shape: f32[2,3,32], index: 18, kind: output, shape index: {2}]
  %19 = xla_tuple %s16, %s17, %s18
  %s20 = sld [smem:[#allocation0]]
  $region113: #{graph_attention_encoder.1} parent=0
    _
  %s22 = ssub.s32 1, %s20
  %s23 = scalar_select 0, %s22, %s20
  $region1: #{graph_attention_encoder.1} parent=0
    #allocation2 [shape = 'u8[16384]{0}', space=vmem, size = 0x4000, scoped, tag = 'output window, operand 0']
    #allocation3 [shape = 's32[2]{0}', space=sflag, size = 0x8, scoped, tag = 'scoped memory for graph_attention_encoder.1']
    #allocation4 [shape = 'u8[1024]{0}', space=vmem, size = 0x400, scoped, tag = 'output window, operand 1']
    #allocation5 [shape = 's32[2]{0}', space=sflag, size = 0x8, scoped, tag = 'scoped memory for graph_attention_encoder.1']
    %24 = vsyncpa [#allocation3], 0
    %s25 = scalar_lea.sflag [#allocation3], 1
    %26 = vsyncpa %s25, 0
    %27 = vsyncpa [#allocation5], 0
    %s28 = scalar_lea.sflag [#allocation5], 1
    %29 = vsyncpa %s28, 0
    loop: start=0, step=1, limit=4
    $region2: #{graph_attention_encoder.1} parent=1 // loop_pre_header
      _
    $region3: #{graph_attention_encoder.1} parent=1 // loop_header
      %s31 = sphi 0, %s35
      %p32 = scmp.ge.s32.totalorder %s31, 4
      %s41 = sphi 0, %s43
      %s44 = sphi 0, %s41
      %s45 = sphi 0, %s44
      %s61 = sphi 0, %s45
      %s67 = sphi 0, %s69
      %s70 = sphi 0, %s67
      %s71 = sphi 0, %s70
      %s87 = sphi 0, %s71
      %s93 = sphi 0, %s95
      %s96 = sphi 0, %s93
      %s97 = sphi 0, %s96
      %s113 = sphi 0, %s97
      %s117 = sphi 0, %s117
      %s119 = sphi 0, %s117
      %s120 = sphi 0, %s119
      %s134 = sphi 0, %s120
      %s138 = sphi 0, %s138
      %s140 = sphi 0, %s138
      %s141 = sphi 0, %s140
      %s155 = sphi 0, %s141
      %s159 = sphi 0, %s159
      %s161 = sphi 0, %s159
      %s162 = sphi 0, %s161
      %s176 = sphi 0, %s162
      %s180 = sphi 0, %s180
      %s182 = sphi 0, %s180
      %s183 = sphi 0, %s182
      %s197 = sphi 0, %s183
      %s201 = sphi 0, %s201
      %s203 = sphi 0, %s201
      %s204 = sphi 0, %s203
      %s218 = sphi 0, %s204
      %s222 = sphi 0, %s222
      %s224 = sphi 0, %s222
      %s225 = sphi 0, %s224
      %s239 = sphi 0, %s225
      %s243 = sphi 0, %s243
      %s245 = sphi 0, %s243
      %s246 = sphi 0, %s245
      %s260 = sphi 0, %s246
      %s264 = sphi 0, %s264
      %s266 = sphi 0, %s264
      %s267 = sphi 0, %s266
      %s281 = sphi 0, %s267
      %s285 = sphi 0, %s285
      %s287 = sphi 0, %s285
      %s288 = sphi 0, %s287
      %s302 = sphi 0, %s288
      %s306 = sphi 0, %s306
      %s308 = sphi 0, %s306
      %s309 = sphi 0, %s308
      %s323 = sphi 0, %s309
      %s327 = sphi 0, %s327
      %s329 = sphi 0, %s327
      %s330 = sphi 0, %s329
      %s344 = sphi 0, %s330
      %s348 = sphi 0, %s348
      %s350 = sphi 0, %s348
      %s351 = sphi 0, %s350
      %s365 = sphi 0, %s351
      %s369 = sphi 0, %s369
      %s371 = sphi 0, %s369
      %s372 = sphi 0, %s371
      %s386 = sphi 0, %s372
      %s392 = sphi 0, %s394
      %s395 = sphi 0, %s392
      %s396 = sphi 0, %s395
      %s412 = sphi 0, %s396
      %s418 = sphi 0, %s420
      %s421 = sphi 0, %s418
      %s422 = sphi 0, %s421
      %s438 = sphi 0, %s422
      %s444 = sphi 0, %s446
      %s447 = sphi 0, %s444
      %s448 = sphi 0, %s447
      %s464 = sphi 0, %s448
    $region4: #{graph_attention_encoder.1} parent=1 // loop_header_branch
      %34 = sbr.rel (%p32) target = $region8
    $region5: #{graph_attention_encoder.1} parent=1 // loop_body
      %s36 = ssub.s32 %s31, 1
      %s37 = ssub.s32 %s31, 2
      %s38 = sadd.s32 %s31, 1
      %s39 = ssub.s32 %s31, %s38
      %p40 = scmp.eq.s32.totalorder %s39, 0
      %s42 = sadd.s32 %s41, 1
      %s43 = scalar_select %p40, %s41, %s42
      %p46 = pneg %p40
      %p47 = scmp.eq.s32.totalorder %s31, 1
      %p48 = por %p46, %p47
      %p49 = scmp.ne.s32.totalorder %s41, %s44
      %p50 = scmp.eq.s32.totalorder %s31, 0
      %p51 = por %p49, %p50
      %p52 = scmp.ne.s32.totalorder %s41, %s44
      %p53 = scmp.eq.s32.totalorder %s36, 1
      %p54 = por %p52, %p53
      %p55 = scmp.ne.s32.totalorder %s44, %s45
      %p56 = scmp.eq.s32.totalorder %s36, 0
      %p57 = por %p55, %p56
      %p58 = scmp.ne.s32.totalorder %s44, %s45
      %p59 = scmp.eq.s32.totalorder %s37, 1
      %p60 = por %p58, %p59
      %p62 = scmp.ne.s32.totalorder %s45, %s61
      %p63 = scmp.eq.s32.totalorder %s37, 0
      %p64 = por %p62, %p63
      %s65 = ssub.s32 %s31, %s38
      %p66 = scmp.eq.s32.totalorder %s65, 0
      %s68 = sadd.s32 %s67, 1
      %s69 = scalar_select %p66, %s67, %s68
      %p72 = pneg %p66
      %p73 = scmp.eq.s32.totalorder %s31, 1
      %p74 = por %p72, %p73
      %p75 = scmp.ne.s32.totalorder %s67, %s70
      %p76 = scmp.eq.s32.totalorder %s31, 0
      %p77 = por %p75, %p76
      %p78 = scmp.ne.s32.totalorder %s67, %s70
      %p79 = scmp.eq.s32.totalorder %s36, 1
      %p80 = por %p78, %p79
      %p81 = scmp.ne.s32.totalorder %s70, %s71
      %p82 = scmp.eq.s32.totalorder %s36, 0
      %p83 = por %p81, %p82
      %p84 = scmp.ne.s32.totalorder %s70, %s71
      %p85 = scmp.eq.s32.totalorder %s37, 1
      %p86 = por %p84, %p85
      %p88 = scmp.ne.s32.totalorder %s71, %s87
      %p89 = scmp.eq.s32.totalorder %s37, 0
      %p90 = por %p88, %p89
      %s91 = ssub.s32 %s31, %s38
      %p92 = scmp.eq.s32.totalorder %s91, 0
      %s94 = sadd.s32 %s93, 1
      %s95 = scalar_select %p92, %s93, %s94
      %p98 = pneg %p92
      %p99 = scmp.eq.s32.totalorder %s31, 1
      %p100 = por %p98, %p99
      %p101 = scmp.ne.s32.totalorder %s93, %s96
      %p102 = scmp.eq.s32.totalorder %s31, 0
      %p103 = por %p101, %p102
      %p104 = scmp.ne.s32.totalorder %s93, %s96
      %p105 = scmp.eq.s32.totalorder %s36, 1
      %p106 = por %p104, %p105
      %p107 = scmp.ne.s32.totalorder %s96, %s97
      %p108 = scmp.eq.s32.totalorder %s36, 0
      %p109 = por %p107, %p108
      %p110 = scmp.ne.s32.totalorder %s96, %s97
      %p111 = scmp.eq.s32.totalorder %s37, 1
      %p112 = por %p110, %p111
      %p114 = scmp.ne.s32.totalorder %s97, %s113
      %p115 = scmp.eq.s32.totalorder %s37, 0
      %p116 = por %p114, %p115
      %s118 = sadd.s32 %s117, 1
      %p121 = scmp.eq.s32.totalorder %s31, 1
      %p122 = scmp.ne.s32.totalorder %s117, %s119
      %p123 = scmp.eq.s32.totalorder %s31, 0
      %p124 = por %p122, %p123
      %p125 = scmp.ne.s32.totalorder %s117, %s119
      %p126 = scmp.eq.s32.totalorder %s36, 1
      %p127 = por %p125, %p126
      %p128 = scmp.ne.s32.totalorder %s119, %s120
      %p129 = scmp.eq.s32.totalorder %s36, 0
      %p130 = por %p128, %p129
      %p131 = scmp.ne.s32.totalorder %s119, %s120
      %p132 = scmp.eq.s32.totalorder %s37, 1
      %p133 = por %p131, %p132
      %p135 = scmp.ne.s32.totalorder %s120, %s134
      %p136 = scmp.eq.s32.totalorder %s37, 0
      %p137 = por %p135, %p136
      %s139 = sadd.s32 %s138, 1
      %p142 = scmp.eq.s32.totalorder %s31, 1
      %p143 = scmp.ne.s32.totalorder %s138, %s140
      %p144 = scmp.eq.s32.totalorder %s31, 0
      %p145 = por %p143, %p144
      %p146 = scmp.ne.s32.totalorder %s138, %s140
      %p147 = scmp.eq.s32.totalorder %s36, 1
      %p148 = por %p146, %p147
      %p149 = scmp.ne.s32.totalorder %s140, %s141
      %p150 = scmp.eq.s32.totalorder %s36, 0
      %p151 = por %p149, %p150
      %p152 = scmp.ne.s32.totalorder %s140, %s141
      %p153 = scmp.eq.s32.totalorder %s37, 1
      %p154 = por %p152, %p153
      %p156 = scmp.ne.s32.totalorder %s141, %s155
      %p157 = scmp.eq.s32.totalorder %s37, 0
      %p158 = por %p156, %p157
      %s160 = sadd.s32 %s159, 1
      %p163 = scmp.eq.s32.totalorder %s31, 1
      %p164 = scmp.ne.s32.totalorder %s159, %s161
      %p165 = scmp.eq.s32.totalorder %s31, 0
      %p166 = por %p164, %p165
      %p167 = scmp.ne.s32.totalorder %s159, %s161
      %p168 = scmp.eq.s32.totalorder %s36, 1
      %p169 = por %p167, %p168
      %p170 = scmp.ne.s32.totalorder %s161, %s162
      %p171 = scmp.eq.s32.totalorder %s36, 0
      %p172 = por %p170, %p171
      %p173 = scmp.ne.s32.totalorder %s161, %s162
      %p174 = scmp.eq.s32.totalorder %s37, 1
      %p175 = por %p173, %p174
      %p177 = scmp.ne.s32.totalorder %s162, %s176
      %p178 = scmp.eq.s32.totalorder %s37, 0
      %p179 = por %p177, %p178
      %s181 = sadd.s32 %s180, 1
      %p184 = scmp.eq.s32.totalorder %s31, 1
      %p185 = scmp.ne.s32.totalorder %s180, %s182
      %p186 = scmp.eq.s32.totalorder %s31, 0
      %p187 = por %p185, %p186
      %p188 = scmp.ne.s32.totalorder %s180, %s182
      %p189 = scmp.eq.s32.totalorder %s36, 1
      %p190 = por %p188, %p189
      %p191 = scmp.ne.s32.totalorder %s182, %s183
      %p192 = scmp.eq.s32.totalorder %s36, 0
      %p193 = por %p191, %p192
      %p194 = scmp.ne.s32.totalorder %s182, %s183
      %p195 = scmp.eq.s32.totalorder %s37, 1
      %p196 = por %p194, %p195
      %p198 = scmp.ne.s32.totalorder %s183, %s197
      %p199 = scmp.eq.s32.totalorder %s37, 0
      %p200 = por %p198, %p199
      %s202 = sadd.s32 %s201, 1
      %p205 = scmp.eq.s32.totalorder %s31, 1
      %p206 = scmp.ne.s32.totalorder %s201, %s203
      %p207 = scmp.eq.s32.totalorder %s31, 0
      %p208 = por %p206, %p207
      %p209 = scmp.ne.s32.totalorder %s201, %s203
      %p210 = scmp.eq.s32.totalorder %s36, 1
      %p211 = por %p209, %p210
      %p212 = scmp.ne.s32.totalorder %s203, %s204
      %p213 = scmp.eq.s32.totalorder %s36, 0
      %p214 = por %p212, %p213
      %p215 = scmp.ne.s32.totalorder %s203, %s204
      %p216 = scmp.eq.s32.totalorder %s37, 1
      %p217 = por %p215, %p216
      %p219 = scmp.ne.s32.totalorder %s204, %s218
      %p220 = scmp.eq.s32.totalorder %s37, 0
      %p221 = por %p219, %p220
      %s223 = sadd.s32 %s222, 1
      %p226 = scmp.eq.s32.totalorder %s31, 1
      %p227 = scmp.ne.s32.totalorder %s222, %s224
      %p228 = scmp.eq.s32.totalorder %s31, 0
      %p229 = por %p227, %p228
      %p230 = scmp.ne.s32.totalorder %s222, %s224
      %p231 = scmp.eq.s32.totalorder %s36, 1
      %p232 = por %p230, %p231
      %p233 = scmp.ne.s32.totalorder %s224, %s225
      %p234 = scmp.eq.s32.totalorder %s36, 0
      %p235 = por %p233, %p234
      %p236 = scmp.ne.s32.totalorder %s224, %s225
      %p237 = scmp.eq.s32.totalorder %s37, 1
      %p238 = por %p236, %p237
      %p240 = scmp.ne.s32.totalorder %s225, %s239
      %p241 = scmp.eq.s32.totalorder %s37, 0
      %p242 = por %p240, %p241
      %s244 = sadd.s32 %s243, 1
      %p247 = scmp.eq.s32.totalorder %s31, 1
      %p248 = scmp.ne.s32.totalorder %s243, %s245
      %p249 = scmp.eq.s32.totalorder %s31, 0
      %p250 = por %p248, %p249
      %p251 = scmp.ne.s32.totalorder %s243, %s245
      %p252 = scmp.eq.s32.totalorder %s36, 1
      %p253 = por %p251, %p252
      %p254 = scmp.ne.s32.totalorder %s245, %s246
      %p255 = scmp.eq.s32.totalorder %s36, 0
      %p256 = por %p254, %p255
      %p257 = scmp.ne.s32.totalorder %s245, %s246
      %p258 = scmp.eq.s32.totalorder %s37, 1
      %p259 = por %p257, %p258
      %p261 = scmp.ne.s32.totalorder %s246, %s260
      %p262 = scmp.eq.s32.totalorder %s37, 0
      %p263 = por %p261, %p262
      %s265 = sadd.s32 %s264, 1
      %p268 = scmp.eq.s32.totalorder %s31, 1
      %p269 = scmp.ne.s32.totalorder %s264, %s266
      %p270 = scmp.eq.s32.totalorder %s31, 0
      %p271 = por %p269, %p270
      %p272 = scmp.ne.s32.totalorder %s264, %s266
      %p273 = scmp.eq.s32.totalorder %s36, 1
      %p274 = por %p272, %p273
      %p275 = scmp.ne.s32.totalorder %s266, %s267
      %p276 = scmp.eq.s32.totalorder %s36, 0
      %p277 = por %p275, %p276
      %p278 = scmp.ne.s32.totalorder %s266, %s267
      %p279 = scmp.eq.s32.totalorder %s37, 1
      %p280 = por %p278, %p279
      %p282 = scmp.ne.s32.totalorder %s267, %s281
      %p283 = scmp.eq.s32.totalorder %s37, 0
      %p284 = por %p282, %p283
      %s286 = sadd.s32 %s285, 1
      %p289 = scmp.eq.s32.totalorder %s31, 1
      %p290 = scmp.ne.s32.totalorder %s285, %s287
      %p291 = scmp.eq.s32.totalorder %s31, 0
      %p292 = por %p290, %p291
      %p293 = scmp.ne.s32.totalorder %s285, %s287
      %p294 = scmp.eq.s32.totalorder %s36, 1
      %p295 = por %p293, %p294
      %p296 = scmp.ne.s32.totalorder %s287, %s288
      %p297 = scmp.eq.s32.totalorder %s36, 0
      %p298 = por %p296, %p297
      %p299 = scmp.ne.s32.totalorder %s287, %s288
      %p300 = scmp.eq.s32.totalorder %s37, 1
      %p301 = por %p299, %p300
      %p303 = scmp.ne.s32.totalorder %s288, %s302
      %p304 = scmp.eq.s32.totalorder %s37, 0
      %p305 = por %p303, %p304
      %s307 = sadd.s32 %s306, 1
      %p310 = scmp.eq.s32.totalorder %s31, 1
      %p311 = scmp.ne.s32.totalorder %s306, %s308
      %p312 = scmp.eq.s32.totalorder %s31, 0
      %p313 = por %p311, %p312
      %p314 = scmp.ne.s32.totalorder %s306, %s308
      %p315 = scmp.eq.s32.totalorder %s36, 1
      %p316 = por %p314, %p315
      %p317 = scmp.ne.s32.totalorder %s308, %s309
      %p318 = scmp.eq.s32.totalorder %s36, 0
      %p319 = por %p317, %p318
      %p320 = scmp.ne.s32.totalorder %s308, %s309
      %p321 = scmp.eq.s32.totalorder %s37, 1
      %p322 = por %p320, %p321
      %p324 = scmp.ne.s32.totalorder %s309, %s323
      %p325 = scmp.eq.s32.totalorder %s37, 0
      %p326 = por %p324, %p325
      %s328 = sadd.s32 %s327, 1
      %p331 = scmp.eq.s32.totalorder %s31, 1
      %p332 = scmp.ne.s32.totalorder %s327, %s329
      %p333 = scmp.eq.s32.totalorder %s31, 0
      %p334 = por %p332, %p333
      %p335 = scmp.ne.s32.totalorder %s327, %s329
      %p336 = scmp.eq.s32.totalorder %s36, 1
      %p337 = por %p335, %p336
      %p338 = scmp.ne.s32.totalorder %s329, %s330
      %p339 = scmp.eq.s32.totalorder %s36, 0
      %p340 = por %p338, %p339
      %p341 = scmp.ne.s32.totalorder %s329, %s330
      %p342 = scmp.eq.s32.totalorder %s37, 1
      %p343 = por %p341, %p342
      %p345 = scmp.ne.s32.totalorder %s330, %s344
      %p346 = scmp.eq.s32.totalorder %s37, 0
      %p347 = por %p345, %p346
      %s349 = sadd.s32 %s348, 1
      %p352 = scmp.eq.s32.totalorder %s31, 1
      %p353 = scmp.ne.s32.totalorder %s348, %s350
      %p354 = scmp.eq.s32.totalorder %s31, 0
      %p355 = por %p353, %p354
      %p356 = scmp.ne.s32.totalorder %s348, %s350
      %p357 = scmp.eq.s32.totalorder %s36, 1
      %p358 = por %p356, %p357
      %p359 = scmp.ne.s32.totalorder %s350, %s351
      %p360 = scmp.eq.s32.totalorder %s36, 0
      %p361 = por %p359, %p360
      %p362 = scmp.ne.s32.totalorder %s350, %s351
      %p363 = scmp.eq.s32.totalorder %s37, 1
      %p364 = por %p362, %p363
      %p366 = scmp.ne.s32.totalorder %s351, %s365
      %p367 = scmp.eq.s32.totalorder %s37, 0
      %p368 = por %p366, %p367
      %s370 = sadd.s32 %s369, 1
      %p373 = scmp.eq.s32.totalorder %s31, 1
      %p374 = scmp.ne.s32.totalorder %s369, %s371
      %p375 = scmp.eq.s32.totalorder %s31, 0
      %p376 = por %p374, %p375
      %p377 = scmp.ne.s32.totalorder %s369, %s371
      %p378 = scmp.eq.s32.totalorder %s36, 1
      %p379 = por %p377, %p378
      %p380 = scmp.ne.s32.totalorder %s371, %s372
      %p381 = scmp.eq.s32.totalorder %s36, 0
      %p382 = por %p380, %p381
      %p383 = scmp.ne.s32.totalorder %s371, %s372
      %p384 = scmp.eq.s32.totalorder %s37, 1
      %p385 = por %p383, %p384
      %p387 = scmp.ne.s32.totalorder %s372, %s386
      %p388 = scmp.eq.s32.totalorder %s37, 0
      %p389 = por %p387, %p388
      %s390 = ssub.s32 %s31, %s38
      %p391 = scmp.eq.s32.totalorder %s390, 0
      %s393 = sadd.s32 %s392, 1
      %s394 = scalar_select %p391, %s392, %s393
      %p397 = pneg %p391
      %p398 = scmp.eq.s32.totalorder %s31, 1
      %p399 = por %p397, %p398
      %p400 = scmp.ne.s32.totalorder %s392, %s395
      %p401 = scmp.eq.s32.totalorder %s31, 0
      %p402 = por %p400, %p401
      %p403 = scmp.ne.s32.totalorder %s392, %s395
      %p404 = scmp.eq.s32.totalorder %s36, 1
      %p405 = por %p403, %p404
      %p406 = scmp.ne.s32.totalorder %s395, %s396
      %p407 = scmp.eq.s32.totalorder %s36, 0
      %p408 = por %p406, %p407
      %p409 = scmp.ne.s32.totalorder %s395, %s396
      %p410 = scmp.eq.s32.totalorder %s37, 1
      %p411 = por %p409, %p410
      %p413 = scmp.ne.s32.totalorder %s396, %s412
      %p414 = scmp.eq.s32.totalorder %s37, 0
      %p415 = por %p413, %p414
      %s416 = ssub.s32 %s31, %s38
      %p417 = scmp.eq.s32.totalorder %s416, 0
      %s419 = sadd.s32 %s418, 1
      %s420 = scalar_select %p417, %s418, %s419
      %p423 = pneg %p417
      %p424 = scmp.eq.s32.totalorder %s31, 1
      %p425 = por %p423, %p424
      %p426 = scmp.ne.s32.totalorder %s418, %s421
      %p427 = scmp.eq.s32.totalorder %s31, 0
      %p428 = por %p426, %p427
      %p429 = scmp.ne.s32.totalorder %s418, %s421
      %p430 = scmp.eq.s32.totalorder %s36, 1
      %p431 = por %p429, %p430
      %p432 = scmp.ne.s32.totalorder %s421, %s422
      %p433 = scmp.eq.s32.totalorder %s36, 0
      %p434 = por %p432, %p433
      %p435 = scmp.ne.s32.totalorder %s421, %s422
      %p436 = scmp.eq.s32.totalorder %s37, 1
      %p437 = por %p435, %p436
      %p439 = scmp.ne.s32.totalorder %s422, %s438
      %p440 = scmp.eq.s32.totalorder %s37, 0
      %p441 = por %p439, %p440
      %s442 = ssub.s32 %s31, %s38
      %p443 = scmp.eq.s32.totalorder %s442, 0
      %s445 = sadd.s32 %s444, 1
      %s446 = scalar_select %p443, %s444, %s445
      %p449 = pneg %p443
      %p450 = scmp.eq.s32.totalorder %s31, 1
      %p451 = por %p449, %p450
      %p452 = scmp.ne.s32.totalorder %s444, %s447
      %p453 = scmp.eq.s32.totalorder %s31, 0
      %p454 = por %p452, %p453
      %p455 = scmp.ne.s32.totalorder %s444, %s447
      %p456 = scmp.eq.s32.totalorder %s36, 1
      %p457 = por %p455, %p456
      %p458 = scmp.ne.s32.totalorder %s447, %s448
      %p459 = scmp.eq.s32.totalorder %s36, 0
      %p460 = por %p458, %p459
      %p461 = scmp.ne.s32.totalorder %s447, %s448
      %p462 = scmp.eq.s32.totalorder %s37, 1
      %p463 = por %p461, %p462
      %p465 = scmp.ne.s32.totalorder %s448, %s464
      %p466 = scmp.eq.s32.totalorder %s37, 0
      %p467 = por %p465, %p466
      %p468 = scmp.le.s32.totalorder 1, %s31
      %p469 = scmp.lt.s32.totalorder %s31, 3
      %p470 = pnand %p468, %p469
      %p471 = pneg %p470
      // Predicated region
      $region9: #{graph_attention_encoder.1} parent=5 // pred_check
        _
      $region10: #{graph_attention_encoder.1} parent=5 // pred_check_branch
        %473 = sbr.rel (%p470) target = $region12
      $region11: #{graph_attention_encoder.1} parent=5 // pred_region
        %s474 = ssub.s32 %s31, 1
        // Predicated region
        $region13: #{graph_attention_encoder.1} parent=11 // pred_check
          %p475 = pneg %p130
        $region14: #{graph_attention_encoder.1} parent=11 // pred_check_branch
          %477 = sbr.rel (%p475) target = $region16
        $region15: #{graph_attention_encoder.1} parent=11 // pred_region
          _
        $region16: #{graph_attention_encoder.1} parent=11 // pred_fallthru
          _
        // Predicated region
        $region17: #{graph_attention_encoder.1} parent=11 // pred_check
          %p478 = pneg %p151
        $region18: #{graph_attention_encoder.1} parent=11 // pred_check_branch
          %480 = sbr.rel (%p478) target = $region20
        $region19: #{graph_attention_encoder.1} parent=11 // pred_region
          _
        $region20: #{graph_attention_encoder.1} parent=11 // pred_fallthru
          _
        // Predicated region
        $region21: #{graph_attention_encoder.1} parent=11 // pred_check
          %p481 = pneg %p172
        $region22: #{graph_attention_encoder.1} parent=11 // pred_check_branch
          %483 = sbr.rel (%p481) target = $region24
        $region23: #{graph_attention_encoder.1} parent=11 // pred_region
          _
        $region24: #{graph_attention_encoder.1} parent=11 // pred_fallthru
          _
        // Predicated region
        $region25: #{graph_attention_encoder.1} parent=11 // pred_check
          %p484 = pneg %p193
        $region26: #{graph_attention_encoder.1} parent=11 // pred_check_branch
          %486 = sbr.rel (%p484) target = $region28
        $region27: #{graph_attention_encoder.1} parent=11 // pred_region
          _
        $region28: #{graph_attention_encoder.1} parent=11 // pred_fallthru
          _
        // Predicated region
        $region29: #{graph_attention_encoder.1} parent=11 // pred_check
          %p487 = pneg %p214
        $region30: #{graph_attention_encoder.1} parent=11 // pred_check_branch
          %489 = sbr.rel (%p487) target = $region32
        $region31: #{graph_attention_encoder.1} parent=11 // pred_region
          _
        $region32: #{graph_attention_encoder.1} parent=11 // pred_fallthru
          _
        // Predicated region
        $region33: #{graph_attention_encoder.1} parent=11 // pred_check
          %p490 = pneg %p235
        $region34: #{graph_attention_encoder.1} parent=11 // pred_check_branch
          %492 = sbr.rel (%p490) target = $region36
        $region35: #{graph_attention_encoder.1} parent=11 // pred_region
          _
        $region36: #{graph_attention_encoder.1} parent=11 // pred_fallthru
          _
        // Predicated region
        $region37: #{graph_attention_encoder.1} parent=11 // pred_check
          %p493 = pneg %p256
        $region38: #{graph_attention_encoder.1} parent=11 // pred_check_branch
          %495 = sbr.rel (%p493) target = $region40
        $region39: #{graph_attention_encoder.1} parent=11 // pred_region
          _
        $region40: #{graph_attention_encoder.1} parent=11 // pred_fallthru
          _
        // Predicated region
        $region41: #{graph_attention_encoder.1} parent=11 // pred_check
          %p496 = pneg %p277
        $region42: #{graph_attention_encoder.1} parent=11 // pred_check_branch
          %498 = sbr.rel (%p496) target = $region44
        $region43: #{graph_attention_encoder.1} parent=11 // pred_region
          _
        $region44: #{graph_attention_encoder.1} parent=11 // pred_fallthru
          _
        // Predicated region
        $region45: #{graph_attention_encoder.1} parent=11 // pred_check
          %p499 = pneg %p298
        $region46: #{graph_attention_encoder.1} parent=11 // pred_check_branch
          %501 = sbr.rel (%p499) target = $region48
        $region47: #{graph_attention_encoder.1} parent=11 // pred_region
          _
        $region48: #{graph_attention_encoder.1} parent=11 // pred_fallthru
          _
        // Predicated region
        $region49: #{graph_attention_encoder.1} parent=11 // pred_check
          %p502 = pneg %p319
        $region50: #{graph_attention_encoder.1} parent=11 // pred_check_branch
          %504 = sbr.rel (%p502) target = $region52
        $region51: #{graph_attention_encoder.1} parent=11 // pred_region
          _
        $region52: #{graph_attention_encoder.1} parent=11 // pred_fallthru
          _
        // Predicated region
        $region53: #{graph_attention_encoder.1} parent=11 // pred_check
          %p505 = pneg %p340
        $region54: #{graph_attention_encoder.1} parent=11 // pred_check_branch
          %507 = sbr.rel (%p505) target = $region56
        $region55: #{graph_attention_encoder.1} parent=11 // pred_region
          _
        $region56: #{graph_attention_encoder.1} parent=11 // pred_fallthru
          _
        // Predicated region
        $region57: #{graph_attention_encoder.1} parent=11 // pred_check
          %p508 = pneg %p361
        $region58: #{graph_attention_encoder.1} parent=11 // pred_check_branch
          %510 = sbr.rel (%p508) target = $region60
        $region59: #{graph_attention_encoder.1} parent=11 // pred_region
          _
        $region60: #{graph_attention_encoder.1} parent=11 // pred_fallthru
          _
        // Predicated region
        $region61: #{graph_attention_encoder.1} parent=11 // pred_check
          %p511 = pneg %p382
        $region62: #{graph_attention_encoder.1} parent=11 // pred_check_branch
          %513 = sbr.rel (%p511) target = $region64
        $region63: #{graph_attention_encoder.1} parent=11 // pred_region
          _
        $region64: #{graph_attention_encoder.1} parent=11 // pred_fallthru
          _
      $region12: #{graph_attention_encoder.1} parent=5 // pred_fallthru
        _
      %p514 = scmp.lt.s32.totalorder %s31, 2
      // Predicated region
      $region65: #{graph_attention_encoder.1} parent=5 // pred_check
        %p515 = pneg %p514
      $region66: #{graph_attention_encoder.1} parent=5 // pred_check_branch
        %517 = sbr.rel (%p515) target = $region68
      $region67: #{graph_attention_encoder.1} parent=5 // pred_region
        // Predicated region
        $region69: #{graph_attention_encoder.1} parent=67 // pred_check
          %p518 = pneg %p51
        $region70: #{graph_attention_encoder.1} parent=67 // pred_check_branch
          %520 = sbr.rel (%p518) target = $region72
        $region71: #{graph_attention_encoder.1} parent=67 // pred_region
          %p521 = scmp.lt.s32.totalorder %s31, 1
          %s522 = scalar_select %p521, %s31, 1
          %s523 = smul.addr %s522, 2
          %s524 = smul.addr %s523, 8
          %s525 = scalar_lea.vmem %s0, %s524
        $region72: #{graph_attention_encoder.1} parent=67 // pred_fallthru
          _
        // Predicated region
        $region73: #{graph_attention_encoder.1} parent=67 // pred_check
          %p526 = pneg %p77
        $region74: #{graph_attention_encoder.1} parent=67 // pred_check_branch
          %528 = sbr.rel (%p526) target = $region76
        $region75: #{graph_attention_encoder.1} parent=67 // pred_region
          %p529 = scmp.lt.s32.totalorder %s31, 1
          %s530 = scalar_select %p529, %s31, 1
          %s531 = smul.addr %s530, 4
          %s532 = scalar_lea.vmem %s1, %s531
        $region76: #{graph_attention_encoder.1} parent=67 // pred_fallthru
          _
        // Predicated region
        $region77: #{graph_attention_encoder.1} parent=67 // pred_check
          %p533 = pneg %p103
        $region78: #{graph_attention_encoder.1} parent=67 // pred_check_branch
          %535 = sbr.rel (%p533) target = $region80
        $region79: #{graph_attention_encoder.1} parent=67 // pred_region
          %p536 = scmp.lt.s32.totalorder %s31, 1
          %s537 = scalar_select %p536, %s31, 1
          %s538 = scalar_lea.vmem %s2, %s537
        $region80: #{graph_attention_encoder.1} parent=67 // pred_fallthru
          _
      $region68: #{graph_attention_encoder.1} parent=5 // pred_fallthru
        _
      %p539 = scmp.le.s32.totalorder 1, %s31
      %p540 = scmp.lt.s32.totalorder %s31, 3
      %p541 = pnand %p539, %p540
      %p542 = pneg %p541
      // Predicated region
      $region81: #{graph_attention_encoder.1} parent=5 // pred_check
        _
      $region82: #{graph_attention_encoder.1} parent=5 // pred_check_branch
        %544 = sbr.rel (%p541) target = $region84
      $region83: #{graph_attention_encoder.1} parent=5 // pred_region
        %s545 = ssub.s32 %s31, 1
        %p546 = scmp.lt.s32.totalorder %s36, 1
        %s547 = scalar_select %p546, %s36, 1
        %s548 = smul.addr %s547, 2
        %s549 = smul.addr %s548, 8
        %s550 = scalar_lea.vmem %s0, %s549
        %p551 = pneg %p57
        %p552 = pneg %p54
        %p553 = scmp.lt.s32.totalorder %s36, 1
        %s554 = scalar_select %p553, %s36, 1
        %s555 = smul.addr %s554, 4
        %s556 = scalar_lea.vmem %s1, %s555
        %p557 = pneg %p83
        %p558 = pneg %p80
        %p559 = scmp.lt.s32.totalorder %s36, 1
        %s560 = scalar_select %p559, %s36, 1
        %s561 = scalar_lea.vmem %s2, %s560
        %p562 = pneg %p109
        %p563 = pneg %p106
        %p564 = pneg %p130
        %p565 = pneg %p127
        %p566 = pneg %p151
        %p567 = pneg %p148
        %p568 = pneg %p172
        %p569 = pneg %p169
        %p570 = pneg %p193
        %p571 = pneg %p190
        %p572 = pneg %p214
        %p573 = pneg %p211
        %p574 = pneg %p235
        %p575 = pneg %p232
        %p576 = pneg %p256
        %p577 = pneg %p253
        %p578 = pneg %p277
        %p579 = pneg %p274
        %p580 = pneg %p298
        %p581 = pneg %p295
        %p582 = pneg %p319
        %p583 = pneg %p316
        %p584 = pneg %p340
        %p585 = pneg %p337
        %p586 = pneg %p361
        %p587 = pneg %p358
        %p588 = pneg %p382
        %p589 = pneg %p379
        %p590 = pneg %p408
        %p591 = pneg %p405
        %s592 = sand.u32 %s395, 1
        %s593 = scalar_lea.sflag [#allocation3], %s592
        %s594 = sand.u32 %s395, 1
        %s595 = smul.addr %s594, 16
        %s596 = scalar_lea.vmem [#allocation2], %s595
        %p597 = pneg %p434
        %p598 = pneg %p431
        %s599 = sand.u32 %s421, 1
        %s600 = scalar_lea.sflag [#allocation5], %s599
        %s601 = sand.u32 %s421, 1
        %s602 = scalar_lea.vmem [#allocation4], %s601
        %p603 = pneg %p460
        %p604 = pneg %p457
        %p605 = scmp.lt.s32.totalorder %s36, 1
        %s606 = scalar_select %p605, %s36, 1
        %s607 = smul.addr %s606, 4
        %s608 = scalar_lea.vmem %s18, %s607
        %p609 = scmp.lt.s32.totalorder %s36, 1
        %s610 = scalar_select %p609, %s36, 1
        %s611 = smul.addr %s610, 2
        %s612 = smul.addr %s611, 8
        %s613 = scalar_lea.vmem %s0, %s612
        %p614 = scmp.lt.s32.totalorder %s36, 1
        %s615 = scalar_select %p614, %s36, 1
        %s616 = smul.addr %s615, 4
        %s617 = scalar_lea.vmem %s1, %s616
        %p618 = scmp.lt.s32.totalorder %s36, 1
        %s619 = scalar_select %p618, %s36, 1
        %s620 = scalar_lea.vmem %s2, %s619
        %p621 = scmp.lt.s32.totalorder %s36, 1
        %s622 = scalar_select %p621, %s36, 1
        %s623 = smul.addr %s622, 4
        %s624 = scalar_lea.vmem %s18, %s623
        %v626 = vld [vmem:[%s613] sm:$0xff]
        %v627 = vld [vmem:[%s613 + $0x8] sm:$0xff]
        %v628 = vpack.c.bf16 %v627, %v626
        %v629 = vld [vmem:[%s3] sm:$0xf]
        %vm630 = vcmask 64512
        %v632 = vsel %vm630, %v628, 0
        %vm634 = vcmask 1043456
        %v636 = vsel %vm634, %v629, 0
        %638 = vmatprep.subr.bf16.mxu0 0
        %639 = vmatpush1.bf16.msra.mxu0 0
        %640 = vmatprep.subr.bf16.mxu0 0
        %641 = vmatpush1.bf16.msra.mxu0 0
        %642 = vmatprep.subr.bf16.mxu0 0
        %643 = vmatpush1.bf16.msra.mxu0 0
        %644 = vmatprep.subr.bf16.mxu0 0
        %645 = vmatpush1.bf16.msra.mxu0 0
        %646 = vmatprep.subr.bf16.mxu0 0
        %647 = vmatpush1.bf16.msra.mxu0 0
        %648 = vmatprep.subr.bf16.mxu0 0
        %649 = vmatpush1.bf16.msra.mxu0 0
        %650 = vmatprep.subr.bf16.mxu0 0
        %651 = vmatpush1.bf16.msra.mxu0 0
        %652 = vmatprep.subr.bf16.mxu0 0
        %653 = vmatpush1.bf16.msra.mxu0 %v636
        %654 = vmatprep.subr.bf16.mxu0 0
        %655 = vmatpush2.bf16.msra.mxu0 0
        %656 = vmatprep.subr.bf16.mxu0 0
        %657 = vmatpush2.bf16.msra.mxu0 0
        %658 = vmatprep.subr.bf16.mxu0 0
        %659 = vmatpush2.bf16.msra.mxu0 0
        %660 = vmatprep.subr.bf16.mxu0 0
        %661 = vmatpush2.bf16.msra.mxu0 0
        %662 = vmatprep.subr.bf16.mxu0 0
        %663 = vmatpush2.bf16.msra.mxu0 0
        %664 = vmatprep.subr.bf16.mxu0 0
        %665 = vmatpush2.bf16.msra.mxu0 0
        %666 = vmatprep.subr.bf16.mxu0 0
        %667 = vmatpush2.bf16.msra.mxu0 0
        %668 = vmatprep.subr.bf16.mxu0 0
        %669 = vmatpush2.bf16.msra.mxu0 0
        %670 = vmatprep.mubr.bf16.mxu0 0
        %671 = vmatmul.mubr.bf16.gmra.mxu0 %v632
        %v672 = vpop.f32.mrf.mxu0
        %v673 = vadd.f32 0.0, %v672
        %v674 = vpop.f32.mrf.mxu0
        %v675 = vpop.f32.mrf.mxu0
        %v676 = vadd.f32 0.0, %v675
        %v677 = vpop.f32.mrf.mxu0
        %678 = vdwg.mxu0
        %v679 = vld [vmem:[%s617] sm:$0x7]
        %v680 = vpack.c.bf16 %v679, %v679
        %v681 = vld [vmem:[%s4] sm:$0xf]
        %v682 = vld [vmem:[%s4 + $0x4] sm:$0xf]
        %v683 = vld [vmem:[%s4 + $0x8] sm:$0xf]
        %v684 = vld [vmem:[%s4 + $0xc] sm:$0xf]
        %v685 = vld [vmem:[%s4 + $0x10] sm:$0xf]
        %v686 = vld [vmem:[%s4 + $0x14] sm:$0xf]
        %v687 = vld [vmem:[%s4 + $0x18] sm:$0xf]
        %v688 = vld [vmem:[%s4 + $0x1c] sm:$0xf]
        %v689 = vld [vmem:[%s5] sm:$0x1]
        %v691 = vlaneseq
        %v692 = vshrl.u32 %v691, 7
        %v693 = vsub.s32 0, %v692
        %v694 = vrot.slane %v689, %v693
        %v704 = vunpack.c.l.b16 %v681
        %v705 = vunpack.c.l.b16 %v682
        %v706 = vunpack.c.l.b16 %v683
        %v707 = vunpack.c.l.b16 %v684
        %v708 = vunpack.c.l.b16 %v685
        %v709 = vunpack.c.l.b16 %v686
        %v710 = vunpack.c.l.b16 %v687
        %v711 = vunpack.c.l.b16 %v688
        %v712 = vpack.c.b16 %v705, %v704
        %v713 = vpack.c.b16 %v707, %v706
        %v714 = vpack.c.b16 %v709, %v708
        %v715 = vpack.c.b16 %v711, %v710
        %vm720 = vcmask 523264
        %v722 = vsel %vm720, %v680, 0
        %724 = vmatprep.subr.bf16.mxu0 0
        %725 = vmatpush1.bf16.msra.mxu0 0
        %726 = vmatprep.subr.bf16.mxu0 0
        %727 = vmatpush1.bf16.msra.mxu0 0
        %728 = vmatprep.subr.bf16.mxu0 0
        %729 = vmatpush1.bf16.msra.mxu0 0
        %730 = vmatprep.subr.bf16.mxu0 0
        %731 = vmatpush1.bf16.msra.mxu0 0
        %732 = vmatprep.subr.bf16.mxu0 0
        %733 = vmatpush1.bf16.msra.mxu0 %v715
        %734 = vmatprep.subr.bf16.mxu0 0
        %735 = vmatpush1.bf16.msra.mxu0 %v714
        %736 = vmatprep.subr.bf16.mxu0 0
        %737 = vmatpush1.bf16.msra.mxu0 %v713
        %738 = vmatprep.subr.bf16.mxu0 0
        %739 = vmatpush1.bf16.msra.mxu0 %v712
        %740 = vmatprep.subr.bf16.mxu0 0
        %741 = vmatpush2.bf16.msra.mxu0 0
        %742 = vmatprep.subr.bf16.mxu0 0
        %743 = vmatpush2.bf16.msra.mxu0 0
        %744 = vmatprep.subr.bf16.mxu0 0
        %745 = vmatpush2.bf16.msra.mxu0 0
        %746 = vmatprep.subr.bf16.mxu0 0
        %747 = vmatpush2.bf16.msra.mxu0 0
        %748 = vmatprep.subr.bf16.mxu0 0
        %749 = vmatpush2.bf16.msra.mxu0 0
        %750 = vmatprep.subr.bf16.mxu0 0
        %751 = vmatpush2.bf16.msra.mxu0 0
        %752 = vmatprep.subr.bf16.mxu0 0
        %753 = vmatpush2.bf16.msra.mxu0 0
        %754 = vmatprep.subr.bf16.mxu0 0
        %755 = vmatpush2.bf16.msra.mxu0 0
        %756 = vmatprep.mubr.bf16.mxu0 0
        %757 = vmatmul.mubr.bf16.gmra.mxu0 %v722
        %v758 = vpop.f32.mrf.mxu0
        %v759 = vadd.f32 %v694, %v758
        %v760 = vpop.f32.mrf.mxu0
        %v761 = vpop.f32.mrf.mxu0
        %v762 = vpop.f32.mrf.mxu0
        %763 = vdwg.mxu0
        %v764 = vld [vmem:[%s620] sm:$0x1]
        %v765 = vpack.c.bf16 %v676, %v673
        %v766 = vld [vmem:[%s6] sm:$0xf]
        %v767 = vld [vmem:[%s6 + $0x4] sm:$0xf]
        %v768 = vld [vmem:[%s6 + $0x8] sm:$0xf]
        %v769 = vld [vmem:[%s6 + $0xc] sm:$0xf]
        %v774 = vunpack.c.l.b16 %v766
        %v775 = vunpack.c.l.b16 %v767
        %v776 = vunpack.c.l.b16 %v768
        %v777 = vunpack.c.l.b16 %v769
        %v778 = vpack.c.b16 %v775, %v774
        %v779 = vpack.c.b16 %v777, %v776
        %vm782 = vcmask 261120
        %v784 = vsel %vm782, %v765, 0
        %786 = vmatprep.subr.bf16.mxu0 0
        %787 = vmatpush1.bf16.msra.mxu0 0
        %788 = vmatprep.subr.bf16.mxu0 0
        %789 = vmatpush1.bf16.msra.mxu0 0
        %790 = vmatprep.subr.bf16.mxu0 0
        %791 = vmatpush1.bf16.msra.mxu0 0
        %792 = vmatprep.subr.bf16.mxu0 0
        %793 = vmatpush1.bf16.msra.mxu0 0
        %794 = vmatprep.subr.bf16.mxu0 0
        %795 = vmatpush1.bf16.msra.mxu0 0
        %796 = vmatprep.subr.bf16.mxu0 0
        %797 = vmatpush1.bf16.msra.mxu0 0
        %798 = vmatprep.subr.bf16.mxu0 0
        %799 = vmatpush1.bf16.msra.mxu0 %v779
        %800 = vmatprep.subr.bf16.mxu0 0
        %801 = vmatpush1.bf16.msra.mxu0 %v778
        %802 = vmatprep.subr.bf16.mxu0 0
        %803 = vmatpush2.bf16.msra.mxu0 0
        %804 = vmatprep.subr.bf16.mxu0 0
        %805 = vmatpush2.bf16.msra.mxu0 0
        %806 = vmatprep.subr.bf16.mxu0 0
        %807 = vmatpush2.bf16.msra.mxu0 0
        %808 = vmatprep.subr.bf16.mxu0 0
        %809 = vmatpush2.bf16.msra.mxu0 0
        %810 = vmatprep.subr.bf16.mxu0 0
        %811 = vmatpush2.bf16.msra.mxu0 0
        %812 = vmatprep.subr.bf16.mxu0 0
        %813 = vmatpush2.bf16.msra.mxu0 0
        %814 = vmatprep.subr.bf16.mxu0 0
        %815 = vmatpush2.bf16.msra.mxu0 0
        %816 = vmatprep.subr.bf16.mxu0 0
        %817 = vmatpush2.bf16.msra.mxu0 0
        %818 = vmatprep.mubr.bf16.mxu0 0
        %819 = vmatmul.mubr.bf16.gmra.mxu0 %v784
        %v820 = vpop.f32.mrf.mxu0
        %v821 = vadd.f32 0.0, %v820
        %v822 = vpop.f32.mrf.mxu0
        %v823 = vpop.f32.mrf.mxu0
        %v824 = vadd.f32 0.0, %v823
        %v825 = vpop.f32.mrf.mxu0
        %826 = vdwg.mxu0
        %v827 = vpack.c.bf16 %v824, %v821
        %829 = vrot.lane.b32.xlu0 %v827, 96
        %v830 = vpop.permute.xlu0 %829
        %v832 = vsel %vm630, %v827, 0
        %v835 = vsel %vm630, %v830, 0
        %837 = vmatprep.subr.bf16.mxu0 0
        %838 = vmatpush1.bf16.xpose.msra.mxu0 0
        %839 = vmatprep.subr.bf16.mxu0 0
        %840 = vmatpush1.bf16.xpose.msra.mxu0 0
        %841 = vmatprep.subr.bf16.mxu0 0
        %842 = vmatpush1.bf16.xpose.msra.mxu0 0
        %843 = vmatprep.subr.bf16.mxu0 0
        %844 = vmatpush1.bf16.xpose.msra.mxu0 0
        %845 = vmatprep.subr.bf16.mxu0 0
        %846 = vmatpush1.bf16.xpose.msra.mxu0 0
        %847 = vmatprep.subr.bf16.mxu0 0
        %848 = vmatpush1.bf16.xpose.msra.mxu0 0
        %849 = vmatprep.subr.bf16.mxu0 0
        %850 = vmatpush1.bf16.xpose.msra.mxu0 0
        %851 = vmatprep.subr.bf16.mxu0 0
        %852 = vmatpush1.bf16.xpose.msra.mxu0 %v835
        %853 = vmatprep.subr.bf16.mxu0 0
        %854 = vmatpush2.bf16.xpose.msra.mxu0 0
        %855 = vmatprep.subr.bf16.mxu0 0
        %856 = vmatpush2.bf16.xpose.msra.mxu0 0
        %857 = vmatprep.subr.bf16.mxu0 0
        %858 = vmatpush2.bf16.xpose.msra.mxu0 0
        %859 = vmatprep.subr.bf16.mxu0 0
        %860 = vmatpush2.bf16.xpose.msra.mxu0 0
        %861 = vmatprep.subr.bf16.mxu0 0
        %862 = vmatpush2.bf16.xpose.msra.mxu0 0
        %863 = vmatprep.subr.bf16.mxu0 0
        %864 = vmatpush2.bf16.xpose.msra.mxu0 0
        %865 = vmatprep.subr.bf16.mxu0 0
        %866 = vmatpush2.bf16.xpose.msra.mxu0 0
        %867 = vmatprep.subr.bf16.mxu0 0
        %868 = vmatpush2.bf16.xpose.msra.mxu0 0
        %869 = vmatprep.mubr.bf16.mxu0 0
        %870 = vmatmul.mubr.bf16.gmra.mxu0 %v832
        %v871 = vpop.f32.mrf.mxu0
        %v872 = vadd.f32 0.0, %v871
        %v873 = vpop.f32.mrf.mxu0
        %v874 = vpop.f32.mrf.mxu0
        %v875 = vadd.f32 0.0, %v874
        %v876 = vpop.f32.mrf.mxu0
        %877 = vdwg.mxu0
        %v878 = vmul.f32 %v872, 0.35355338
        %v879 = vmul.f32 %v875, 0.35355338
        %vm880 = vcmask 130048
        %v881 = vsel %vm880, %v878, -inf
        %882 = vmax.xlane.f32.xlu0 %v881
        %v883 = vpop.xlane.xlu0 %882
        %v884 = vsel %vm880, %v879, -inf
        %885 = vmax.xlane.f32.xlu0 %v884
        %v886 = vpop.xlane.xlu0 %885
        %v887 = vsub.f32 %v878, %v883
        %v888 = vsub.f32 %v879, %v886
        %v889 = vmul.f32 %v887, 1.442695
        %v890 = vpow.pop %v889
        %v891 = vmul.f32 %v888, 1.442695
        %v892 = vpow.pop %v891
        %v893 = vsel %vm880, %v890, 0.0
        %894 = vadd.xlane.f32.xlu0 %v893
        %v895 = vpop.xlane.xlu0 %894
        %v896 = vsel %vm880, %v892, 0.0
        %897 = vadd.xlane.f32.xlu0 %v896
        %v898 = vpop.xlane.xlu0 %897
        %v899 = vrcp.pop %v895
        %v900 = vmul.f32 %v890, %v899
        %v901 = vrcp.pop %v898
        %v902 = vmul.f32 %v892, %v901
        %v903 = vpack.c.bf16 %v902, %v900
        %904 = vrot.lane.b32.xlu0 %v827, 64
        %v905 = vpop.permute.xlu0 %904
        %v908 = vsel %vm880, %v903, 0
        %910 = vmatprep.subr.bf16.mxu0 0
        %911 = vmatpush1.bf16.msra.mxu0 0
        %912 = vmatprep.subr.bf16.mxu0 0
        %913 = vmatpush1.bf16.msra.mxu0 0
        %914 = vmatprep.subr.bf16.mxu0 0
        %915 = vmatpush1.bf16.msra.mxu0 0
        %916 = vmatprep.subr.bf16.mxu0 0
        %917 = vmatpush1.bf16.msra.mxu0 0
        %918 = vmatprep.subr.bf16.mxu0 0
        %919 = vmatpush1.bf16.msra.mxu0 0
        %920 = vmatprep.subr.bf16.mxu0 0
        %921 = vmatpush1.bf16.msra.mxu0 0
        %922 = vmatprep.subr.bf16.mxu0 0
        %923 = vmatpush1.bf16.msra.mxu0 0
        %924 = vmatprep.subr.bf16.mxu0 0
        %925 = vmatpush1.bf16.msra.mxu0 %v905
        %926 = vmatprep.subr.bf16.mxu0 0
        %927 = vmatpush2.bf16.msra.mxu0 0
        %928 = vmatprep.subr.bf16.mxu0 0
        %929 = vmatpush2.bf16.msra.mxu0 0
        %930 = vmatprep.subr.bf16.mxu0 0
        %931 = vmatpush2.bf16.msra.mxu0 0
        %932 = vmatprep.subr.bf16.mxu0 0
        %933 = vmatpush2.bf16.msra.mxu0 0
        %934 = vmatprep.subr.bf16.mxu0 0
        %935 = vmatpush2.bf16.msra.mxu0 0
        %936 = vmatprep.subr.bf16.mxu0 0
        %937 = vmatpush2.bf16.msra.mxu0 0
        %938 = vmatprep.subr.bf16.mxu0 0
        %939 = vmatpush2.bf16.msra.mxu0 0
        %940 = vmatprep.subr.bf16.mxu0 0
        %941 = vmatpush2.bf16.msra.mxu0 0
        %942 = vmatprep.mubr.bf16.mxu0 0
        %943 = vmatmul.mubr.bf16.gmra.mxu0 %v908
        %v944 = vpop.f32.mrf.mxu0
        %v945 = vadd.f32 0.0, %v944
        %v946 = vpop.f32.mrf.mxu0
        %v947 = vpop.f32.mrf.mxu0
        %v948 = vadd.f32 0.0, %v947
        %v949 = vpop.f32.mrf.mxu0
        %950 = vdwg.mxu0
        %951 = vrot.lane.b32.xlu0 %v827, 120
        %v952 = vpop.permute.xlu0 %951
        %953 = vrot.lane.b32.xlu0 %v827, 88
        %v954 = vpop.permute.xlu0 %953
        %v956 = vsel %vm630, %v952, 0
        %v959 = vsel %vm630, %v954, 0
        %961 = vmatprep.subr.bf16.mxu0 0
        %962 = vmatpush1.bf16.xpose.msra.mxu0 0
        %963 = vmatprep.subr.bf16.mxu0 0
        %964 = vmatpush1.bf16.xpose.msra.mxu0 0
        %965 = vmatprep.subr.bf16.mxu0 0
        %966 = vmatpush1.bf16.xpose.msra.mxu0 0
        %967 = vmatprep.subr.bf16.mxu0 0
        %968 = vmatpush1.bf16.xpose.msra.mxu0 0
        %969 = vmatprep.subr.bf16.mxu0 0
        %970 = vmatpush1.bf16.xpose.msra.mxu0 0
        %971 = vmatprep.subr.bf16.mxu0 0
        %972 = vmatpush1.bf16.xpose.msra.mxu0 0
        %973 = vmatprep.subr.bf16.mxu0 0
        %974 = vmatpush1.bf16.xpose.msra.mxu0 0
        %975 = vmatprep.subr.bf16.mxu0 0
        %976 = vmatpush1.bf16.xpose.msra.mxu0 %v959
        %977 = vmatprep.subr.bf16.mxu0 0
        %978 = vmatpush2.bf16.xpose.msra.mxu0 0
        %979 = vmatprep.subr.bf16.mxu0 0
        %980 = vmatpush2.bf16.xpose.msra.mxu0 0
        %981 = vmatprep.subr.bf16.mxu0 0
        %982 = vmatpush2.bf16.xpose.msra.mxu0 0
        %983 = vmatprep.subr.bf16.mxu0 0
        %984 = vmatpush2.bf16.xpose.msra.mxu0 0
        %985 = vmatprep.subr.bf16.mxu0 0
        %986 = vmatpush2.bf16.xpose.msra.mxu0 0
        %987 = vmatprep.subr.bf16.mxu0 0
        %988 = vmatpush2.bf16.xpose.msra.mxu0 0
        %989 = vmatprep.subr.bf16.mxu0 0
        %990 = vmatpush2.bf16.xpose.msra.mxu0 0
        %991 = vmatprep.subr.bf16.mxu0 0
        %992 = vmatpush2.bf16.xpose.msra.mxu0 0
        %993 = vmatprep.mubr.bf16.mxu0 0
        %994 = vmatmul.mubr.bf16.gmra.mxu0 %v956
        %v995 = vpop.f32.mrf.mxu0
        %v996 = vadd.f32 0.0, %v995
        %v997 = vpop.f32.mrf.mxu0
        %v998 = vpop.f32.mrf.mxu0
        %v999 = vadd.f32 0.0, %v998
        %v1000 = vpop.f32.mrf.mxu0
        %1001 = vdwg.mxu0
        %v1002 = vmul.f32 %v996, 0.35355338
        %v1003 = vmul.f32 %v999, 0.35355338
        %v1004 = vsel %vm880, %v1002, -inf
        %1005 = vmax.xlane.f32.xlu0 %v1004
        %v1006 = vpop.xlane.xlu0 %1005
        %v1007 = vsel %vm880, %v1003, -inf
        %1008 = vmax.xlane.f32.xlu0 %v1007
        %v1009 = vpop.xlane.xlu0 %1008
        %v1010 = vsub.f32 %v1002, %v1006
        %v1011 = vsub.f32 %v1003, %v1009
        %v1012 = vmul.f32 %v1010, 1.442695
        %v1013 = vpow.pop %v1012
        %v1014 = vmul.f32 %v1011, 1.442695
        %v1015 = vpow.pop %v1014
        %v1016 = vsel %vm880, %v1013, 0.0
        %1017 = vadd.xlane.f32.xlu0 %v1016
        %v1018 = vpop.xlane.xlu0 %1017
        %v1019 = vsel %vm880, %v1015, 0.0
        %1020 = vadd.xlane.f32.xlu0 %v1019
        %v1021 = vpop.xlane.xlu0 %1020
        %v1022 = vrcp.pop %v1018
        %v1023 = vmul.f32 %v1013, %v1022
        %v1024 = vrcp.pop %v1021
        %v1025 = vmul.f32 %v1015, %v1024
        %v1026 = vpack.c.bf16 %v1025, %v1023
        %1027 = vrot.lane.b32.xlu0 %v827, 56
        %v1028 = vpop.permute.xlu0 %1027
        %v1031 = vsel %vm880, %v1026, 0
        %1033 = vmatprep.subr.bf16.mxu0 0
        %1034 = vmatpush1.bf16.msra.mxu0 0
        %1035 = vmatprep.subr.bf16.mxu0 0
        %1036 = vmatpush1.bf16.msra.mxu0 0
        %1037 = vmatprep.subr.bf16.mxu0 0
        %1038 = vmatpush1.bf16.msra.mxu0 0
        %1039 = vmatprep.subr.bf16.mxu0 0
        %1040 = vmatpush1.bf16.msra.mxu0 0
        %1041 = vmatprep.subr.bf16.mxu0 0
        %1042 = vmatpush1.bf16.msra.mxu0 0
        %1043 = vmatprep.subr.bf16.mxu0 0
        %1044 = vmatpush1.bf16.msra.mxu0 0
        %1045 = vmatprep.subr.bf16.mxu0 0
        %1046 = vmatpush1.bf16.msra.mxu0 0
        %1047 = vmatprep.subr.bf16.mxu0 0
        %1048 = vmatpush1.bf16.msra.mxu0 %v1028
        %1049 = vmatprep.subr.bf16.mxu0 0
        %1050 = vmatpush2.bf16.msra.mxu0 0
        %1051 = vmatprep.subr.bf16.mxu0 0
        %1052 = vmatpush2.bf16.msra.mxu0 0
        %1053 = vmatprep.subr.bf16.mxu0 0
        %1054 = vmatpush2.bf16.msra.mxu0 0
        %1055 = vmatprep.subr.bf16.mxu0 0
        %1056 = vmatpush2.bf16.msra.mxu0 0
        %1057 = vmatprep.subr.bf16.mxu0 0
        %1058 = vmatpush2.bf16.msra.mxu0 0
        %1059 = vmatprep.subr.bf16.mxu0 0
        %1060 = vmatpush2.bf16.msra.mxu0 0
        %1061 = vmatprep.subr.bf16.mxu0 0
        %1062 = vmatpush2.bf16.msra.mxu0 0
        %1063 = vmatprep.subr.bf16.mxu0 0
        %1064 = vmatpush2.bf16.msra.mxu0 0
        %1065 = vmatprep.mubr.bf16.mxu0 0
        %1066 = vmatmul.mubr.bf16.gmra.mxu0 %v1031
        %v1067 = vpop.f32.mrf.mxu0
        %v1068 = vadd.f32 0.0, %v1067
        %v1069 = vpop.f32.mrf.mxu0
        %v1070 = vpop.f32.mrf.mxu0
        %v1071 = vadd.f32 0.0, %v1070
        %v1072 = vpop.f32.mrf.mxu0
        %1073 = vdwg.mxu0
        %1074 = vrot.lane.b32.xlu0 %v827, 112
        %v1075 = vpop.permute.xlu0 %1074
        %1076 = vrot.lane.b32.xlu0 %v827, 80
        %v1077 = vpop.permute.xlu0 %1076
        %v1079 = vsel %vm630, %v1075, 0
        %v1082 = vsel %vm630, %v1077, 0
        %1084 = vmatprep.subr.bf16.mxu0 0
        %1085 = vmatpush1.bf16.xpose.msra.mxu0 0
        %1086 = vmatprep.subr.bf16.mxu0 0
        %1087 = vmatpush1.bf16.xpose.msra.mxu0 0
        %1088 = vmatprep.subr.bf16.mxu0 0
        %1089 = vmatpush1.bf16.xpose.msra.mxu0 0
        %1090 = vmatprep.subr.bf16.mxu0 0
        %1091 = vmatpush1.bf16.xpose.msra.mxu0 0
        %1092 = vmatprep.subr.bf16.mxu0 0
        %1093 = vmatpush1.bf16.xpose.msra.mxu0 0
        %1094 = vmatprep.subr.bf16.mxu0 0
        %1095 = vmatpush1.bf16.xpose.msra.mxu0 0
        %1096 = vmatprep.subr.bf16.mxu0 0
        %1097 = vmatpush1.bf16.xpose.msra.mxu0 0
        %1098 = vmatprep.subr.bf16.mxu0 0
        %1099 = vmatpush1.bf16.xpose.msra.mxu0 %v1082
        %1100 = vmatprep.subr.bf16.mxu0 0
        %1101 = vmatpush2.bf16.xpose.msra.mxu0 0
        %1102 = vmatprep.subr.bf16.mxu0 0
        %1103 = vmatpush2.bf16.xpose.msra.mxu0 0
        %1104 = vmatprep.subr.bf16.mxu0 0
        %1105 = vmatpush2.bf16.xpose.msra.mxu0 0
        %1106 = vmatprep.subr.bf16.mxu0 0
        %1107 = vmatpush2.bf16.xpose.msra.mxu0 0
        %1108 = vmatprep.subr.bf16.mxu0 0
        %1109 = vmatpush2.bf16.xpose.msra.mxu0 0
        %1110 = vmatprep.subr.bf16.mxu0 0
        %1111 = vmatpush2.bf16.xpose.msra.mxu0 0
        %1112 = vmatprep.subr.bf16.mxu0 0
        %1113 = vmatpush2.bf16.xpose.msra.mxu0 0
        %1114 = vmatprep.subr.bf16.mxu0 0
        %1115 = vmatpush2.bf16.xpose.msra.mxu0 0
        %1116 = vmatprep.mubr.bf16.mxu0 0
        %1117 = vmatmul.mubr.bf16.gmra.mxu0 %v1079
        %v1118 = vpop.f32.mrf.mxu0
        %v1119 = vadd.f32 0.0, %v1118
        %v1120 = vpop.f32.mrf.mxu0
        %v1121 = vpop.f32.mrf.mxu0
        %v1122 = vadd.f32 0.0, %v1121
        %v1123 = vpop.f32.mrf.mxu0
        %1124 = vdwg.mxu0
        %v1125 = vmul.f32 %v1119, 0.35355338
        %v1126 = vmul.f32 %v1122, 0.35355338
        %v1127 = vsel %vm880, %v1125, -inf
        %1128 = vmax.xlane.f32.xlu0 %v1127
        %v1129 = vpop.xlane.xlu0 %1128
        %v1130 = vsel %vm880, %v1126, -inf
        %1131 = vmax.xlane.f32.xlu0 %v1130
        %v1132 = vpop.xlane.xlu0 %1131
        %v1133 = vsub.f32 %v1125, %v1129
        %v1134 = vsub.f32 %v1126, %v1132
        %v1135 = vmul.f32 %v1133, 1.442695
        %v1136 = vpow.pop %v1135
        %v1137 = vmul.f32 %v1134, 1.442695
        %v1138 = vpow.pop %v1137
        %v1139 = vsel %vm880, %v1136, 0.0
        %1140 = vadd.xlane.f32.xlu0 %v1139
        %v1141 = vpop.xlane.xlu0 %1140
        %v1142 = vsel %vm880, %v1138, 0.0
        %1143 = vadd.xlane.f32.xlu0 %v1142
        %v1144 = vpop.xlane.xlu0 %1143
        %v1145 = vrcp.pop %v1141
        %v1146 = vmul.f32 %v1136, %v1145
        %v1147 = vrcp.pop %v1144
        %v1148 = vmul.f32 %v1138, %v1147
        %v1149 = vpack.c.bf16 %v1148, %v1146
        %1150 = vrot.lane.b32.xlu0 %v827, 48
        %v1151 = vpop.permute.xlu0 %1150
        %v1154 = vsel %vm880, %v1149, 0
        %1156 = vmatprep.subr.bf16.mxu0 0
        %1157 = vmatpush1.bf16.msra.mxu0 0
        %1158 = vmatprep.subr.bf16.mxu0 0
        %1159 = vmatpush1.bf16.msra.mxu0 0
        %1160 = vmatprep.subr.bf16.mxu0 0
        %1161 = vmatpush1.bf16.msra.mxu0 0
        %1162 = vmatprep.subr.bf16.mxu0 0
        %1163 = vmatpush1.bf16.msra.mxu0 0
        %1164 = vmatprep.subr.bf16.mxu0 0
        %1165 = vmatpush1.bf16.msra.mxu0 0
        %1166 = vmatprep.subr.bf16.mxu0 0
        %1167 = vmatpush1.bf16.msra.mxu0 0
        %1168 = vmatprep.subr.bf16.mxu0 0
        %1169 = vmatpush1.bf16.msra.mxu0 0
        %1170 = vmatprep.subr.bf16.mxu0 0
        %1171 = vmatpush1.bf16.msra.mxu0 %v1151
        %1172 = vmatprep.subr.bf16.mxu0 0
        %1173 = vmatpush2.bf16.msra.mxu0 0
        %1174 = vmatprep.subr.bf16.mxu0 0
        %1175 = vmatpush2.bf16.msra.mxu0 0
        %1176 = vmatprep.subr.bf16.mxu0 0
        %1177 = vmatpush2.bf16.msra.mxu0 0
        %1178 = vmatprep.subr.bf16.mxu0 0
        %1179 = vmatpush2.bf16.msra.mxu0 0
        %1180 = vmatprep.subr.bf16.mxu0 0
        %1181 = vmatpush2.bf16.msra.mxu0 0
        %1182 = vmatprep.subr.bf16.mxu0 0
        %1183 = vmatpush2.bf16.msra.mxu0 0
        %1184 = vmatprep.subr.bf16.mxu0 0
        %1185 = vmatpush2.bf16.msra.mxu0 0
        %1186 = vmatprep.subr.bf16.mxu0 0
        %1187 = vmatpush2.bf16.msra.mxu0 0
        %1188 = vmatprep.mubr.bf16.mxu0 0
        %1189 = vmatmul.mubr.bf16.gmra.mxu0 %v1154
        %v1190 = vpop.f32.mrf.mxu0
        %v1191 = vadd.f32 0.0, %v1190
        %v1192 = vpop.f32.mrf.mxu0
        %v1193 = vpop.f32.mrf.mxu0
        %v1194 = vadd.f32 0.0, %v1193
        %v1195 = vpop.f32.mrf.mxu0
        %1196 = vdwg.mxu0
        %1197 = vrot.lane.b32.xlu0 %v827, 104
        %v1198 = vpop.permute.xlu0 %1197
        %1199 = vrot.lane.b32.xlu0 %v827, 72
        %v1200 = vpop.permute.xlu0 %1199
        %v1202 = vsel %vm630, %v1198, 0
        %v1205 = vsel %vm630, %v1200, 0
        %1207 = vmatprep.subr.bf16.mxu0 0
        %1208 = vmatpush1.bf16.xpose.msra.mxu0 0
        %1209 = vmatprep.subr.bf16.mxu0 0
        %1210 = vmatpush1.bf16.xpose.msra.mxu0 0
        %1211 = vmatprep.subr.bf16.mxu0 0
        %1212 = vmatpush1.bf16.xpose.msra.mxu0 0
        %1213 = vmatprep.subr.bf16.mxu0 0
        %1214 = vmatpush1.bf16.xpose.msra.mxu0 0
        %1215 = vmatprep.subr.bf16.mxu0 0
        %1216 = vmatpush1.bf16.xpose.msra.mxu0 0
        %1217 = vmatprep.subr.bf16.mxu0 0
        %1218 = vmatpush1.bf16.xpose.msra.mxu0 0
        %1219 = vmatprep.subr.bf16.mxu0 0
        %1220 = vmatpush1.bf16.xpose.msra.mxu0 0
        %1221 = vmatprep.subr.bf16.mxu0 0
        %1222 = vmatpush1.bf16.xpose.msra.mxu0 %v1205
        %1223 = vmatprep.subr.bf16.mxu0 0
        %1224 = vmatpush2.bf16.xpose.msra.mxu0 0
        %1225 = vmatprep.subr.bf16.mxu0 0
        %1226 = vmatpush2.bf16.xpose.msra.mxu0 0
        %1227 = vmatprep.subr.bf16.mxu0 0
        %1228 = vmatpush2.bf16.xpose.msra.mxu0 0
        %1229 = vmatprep.subr.bf16.mxu0 0
        %1230 = vmatpush2.bf16.xpose.msra.mxu0 0
        %1231 = vmatprep.subr.bf16.mxu0 0
        %1232 = vmatpush2.bf16.xpose.msra.mxu0 0
        %1233 = vmatprep.subr.bf16.mxu0 0
        %1234 = vmatpush2.bf16.xpose.msra.mxu0 0
        %1235 = vmatprep.subr.bf16.mxu0 0
        %1236 = vmatpush2.bf16.xpose.msra.mxu0 0
        %1237 = vmatprep.subr.bf16.mxu0 0
        %1238 = vmatpush2.bf16.xpose.msra.mxu0 0
        %1239 = vmatprep.mubr.bf16.mxu0 0
        %1240 = vmatmul.mubr.bf16.gmra.mxu0 %v1202
        %v1241 = vpop.f32.mrf.mxu0
        %v1242 = vadd.f32 0.0, %v1241
        %v1243 = vpop.f32.mrf.mxu0
        %v1244 = vpop.f32.mrf.mxu0
        %v1245 = vadd.f32 0.0, %v1244
        %v1246 = vpop.f32.mrf.mxu0
        %1247 = vdwg.mxu0
        %v1248 = vmul.f32 %v1242, 0.35355338
        %v1249 = vmul.f32 %v1245, 0.35355338
        %v1250 = vsel %vm880, %v1248, -inf
        %1251 = vmax.xlane.f32.xlu0 %v1250
        %v1252 = vpop.xlane.xlu0 %1251
        %v1253 = vsel %vm880, %v1249, -inf
        %1254 = vmax.xlane.f32.xlu0 %v1253
        %v1255 = vpop.xlane.xlu0 %1254
        %v1256 = vsub.f32 %v1248, %v1252
        %v1257 = vsub.f32 %v1249, %v1255
        %v1258 = vmul.f32 %v1256, 1.442695
        %v1259 = vpow.pop %v1258
        %v1260 = vmul.f32 %v1257, 1.442695
        %v1261 = vpow.pop %v1260
        %v1262 = vsel %vm880, %v1259, 0.0
        %1263 = vadd.xlane.f32.xlu0 %v1262
        %v1264 = vpop.xlane.xlu0 %1263
        %v1265 = vsel %vm880, %v1261, 0.0
        %1266 = vadd.xlane.f32.xlu0 %v1265
        %v1267 = vpop.xlane.xlu0 %1266
        %v1268 = vrcp.pop %v1264
        %v1269 = vmul.f32 %v1259, %v1268
        %v1270 = vrcp.pop %v1267
        %v1271 = vmul.f32 %v1261, %v1270
        %v1272 = vpack.c.bf16 %v1271, %v1269
        %1273 = vrot.lane.b32.xlu0 %v827, 40
        %v1274 = vpop.permute.xlu0 %1273
        %v1277 = vsel %vm880, %v1272, 0
        %1279 = vmatprep.subr.bf16.mxu0 0
        %1280 = vmatpush1.bf16.msra.mxu0 0
        %1281 = vmatprep.subr.bf16.mxu0 0
        %1282 = vmatpush1.bf16.msra.mxu0 0
        %1283 = vmatprep.subr.bf16.mxu0 0
        %1284 = vmatpush1.bf16.msra.mxu0 0
        %1285 = vmatprep.subr.bf16.mxu0 0
        %1286 = vmatpush1.bf16.msra.mxu0 0
        %1287 = vmatprep.subr.bf16.mxu0 0
        %1288 = vmatpush1.bf16.msra.mxu0 0
        %1289 = vmatprep.subr.bf16.mxu0 0
        %1290 = vmatpush1.bf16.msra.mxu0 0
        %1291 = vmatprep.subr.bf16.mxu0 0
        %1292 = vmatpush1.bf16.msra.mxu0 0
        %1293 = vmatprep.subr.bf16.mxu0 0
        %1294 = vmatpush1.bf16.msra.mxu0 %v1274
        %1295 = vmatprep.subr.bf16.mxu0 0
        %1296 = vmatpush2.bf16.msra.mxu0 0
        %1297 = vmatprep.subr.bf16.mxu0 0
        %1298 = vmatpush2.bf16.msra.mxu0 0
        %1299 = vmatprep.subr.bf16.mxu0 0
        %1300 = vmatpush2.bf16.msra.mxu0 0
        %1301 = vmatprep.subr.bf16.mxu0 0
        %1302 = vmatpush2.bf16.msra.mxu0 0
        %1303 = vmatprep.subr.bf16.mxu0 0
        %1304 = vmatpush2.bf16.msra.mxu0 0
        %1305 = vmatprep.subr.bf16.mxu0 0
        %1306 = vmatpush2.bf16.msra.mxu0 0
        %1307 = vmatprep.subr.bf16.mxu0 0
        %1308 = vmatpush2.bf16.msra.mxu0 0
        %1309 = vmatprep.subr.bf16.mxu0 0
        %1310 = vmatpush2.bf16.msra.mxu0 0
        %1311 = vmatprep.mubr.bf16.mxu0 0
        %1312 = vmatmul.mubr.bf16.gmra.mxu0 %v1277
        %v1313 = vpop.f32.mrf.mxu0
        %v1314 = vadd.f32 0.0, %v1313
        %v1315 = vpop.f32.mrf.mxu0
        %v1316 = vpop.f32.mrf.mxu0
        %v1317 = vadd.f32 0.0, %v1316
        %v1318 = vpop.f32.mrf.mxu0
        %1319 = vdwg.mxu0
        %1322 = vrot.lane.b32.xlu0 %v1068, 8
        %v1323 = vpop.permute.xlu0 %1322
        %1324 = vrot.lane.b32.xlu0 %v1071, 8
        %v1325 = vpop.permute.xlu0 %1324
        %1330 = vrot.lane.b32.xlu0 %v1191, 16
        %v1331 = vpop.permute.xlu0 %1330
        %1332 = vrot.lane.b32.xlu0 %v1194, 16
        %v1333 = vpop.permute.xlu0 %1332
        %1338 = vrot.lane.b32.xlu0 %v1314, 24
        %v1339 = vpop.permute.xlu0 %1338
        %1340 = vrot.lane.b32.xlu0 %v1317, 24
        %v1341 = vpop.permute.xlu0 %1340
        %v1344 = vsel %vm630, %v945, %v1323
        %v1345 = vsel %vm630, %v948, %v1325
        %v1346 = vsel %vm880, %v1344, %v1331
        %v1347 = vsel %vm880, %v1345, %v1333
        %vm1348 = vcmask 195584
        %v1349 = vsel %vm1348, %v1346, %v1339
        %v1350 = vsel %vm1348, %v1347, %v1341
        %v1351 = vpack.c.bf16 %v1350, %v1349
        %v1352 = vld [vmem:[%s7] sm:$0xf]
        %v1353 = vld [vmem:[%s7 + $0x4] sm:$0xf]
        %v1354 = vld [vmem:[%s7 + $0x8] sm:$0xf]
        %v1355 = vld [vmem:[%s7 + $0xc] sm:$0xf]
        %v1360 = vunpack.c.l.b16 %v1352
        %v1361 = vunpack.c.l.b16 %v1353
        %v1362 = vunpack.c.l.b16 %v1354
        %v1363 = vunpack.c.l.b16 %v1355
        %v1364 = vpack.c.b16 %v1361, %v1360
        %v1365 = vpack.c.b16 %v1363, %v1362
        %v1369 = vsel %vm782, %v1351, 0
        %1371 = vmatprep.subr.bf16.mxu0 0
        %1372 = vmatpush1.bf16.msra.mxu0 0
        %1373 = vmatprep.subr.bf16.mxu0 0
        %1374 = vmatpush1.bf16.msra.mxu0 0
        %1375 = vmatprep.subr.bf16.mxu0 0
        %1376 = vmatpush1.bf16.msra.mxu0 0
        %1377 = vmatprep.subr.bf16.mxu0 0
        %1378 = vmatpush1.bf16.msra.mxu0 0
        %1379 = vmatprep.subr.bf16.mxu0 0
        %1380 = vmatpush1.bf16.msra.mxu0 0
        %1381 = vmatprep.subr.bf16.mxu0 0
        %1382 = vmatpush1.bf16.msra.mxu0 0
        %1383 = vmatprep.subr.bf16.mxu0 0
        %1384 = vmatpush1.bf16.msra.mxu0 %v1365
        %1385 = vmatprep.subr.bf16.mxu0 0
        %1386 = vmatpush1.bf16.msra.mxu0 %v1364
        %1387 = vmatprep.subr.bf16.mxu0 0
        %1388 = vmatpush2.bf16.msra.mxu0 0
        %1389 = vmatprep.subr.bf16.mxu0 0
        %1390 = vmatpush2.bf16.msra.mxu0 0
        %1391 = vmatprep.subr.bf16.mxu0 0
        %1392 = vmatpush2.bf16.msra.mxu0 0
        %1393 = vmatprep.subr.bf16.mxu0 0
        %1394 = vmatpush2.bf16.msra.mxu0 0
        %1395 = vmatprep.subr.bf16.mxu0 0
        %1396 = vmatpush2.bf16.msra.mxu0 0
        %1397 = vmatprep.subr.bf16.mxu0 0
        %1398 = vmatpush2.bf16.msra.mxu0 0
        %1399 = vmatprep.subr.bf16.mxu0 0
        %1400 = vmatpush2.bf16.msra.mxu0 0
        %1401 = vmatprep.subr.bf16.mxu0 0
        %1402 = vmatpush2.bf16.msra.mxu0 0
        %1403 = vmatprep.mubr.bf16.mxu0 0
        %1404 = vmatmul.mubr.bf16.gmra.mxu0 %v1369
        %v1405 = vpop.f32.mrf.mxu0
        %v1406 = vadd.f32 0.0, %v1405
        %v1407 = vpop.f32.mrf.mxu0
        %v1408 = vpop.f32.mrf.mxu0
        %v1409 = vadd.f32 0.0, %v1408
        %v1410 = vpop.f32.mrf.mxu0
        %1411 = vdwg.mxu0
        %v1412 = vadd.f32 %v673, %v1406
        %v1413 = vadd.f32 %v676, %v1409
        %v1414 = vld [vmem:[%s8] sm:$0x1]
        %v1415 = vld [vmem:[%s9] sm:$0x1]
        %v1416 = vsel %vm782, %v1412, 0.0
        %1417 = vadd.xlane.f32.xlu0 %v1416
        %v1418 = vpop.xlane.xlu0 %1417
        %v1419 = vsel %vm782, %v1413, 0.0
        %1420 = vadd.xlane.f32.xlu0 %v1419
        %v1421 = vpop.xlane.xlu0 %1420
        %v1422 = vrcp.pop 32.0
        %v1423 = vmul.f32 %v1418, %v1422
        %v1424 = vmul.f32 %v1421, %v1422
        %v1425 = vsub.f32 %v1412, %v1423
        %v1426 = vsub.f32 %v1413, %v1424
        %v1427 = vmul.f32 %v1425, %v1425
        %v1428 = vmul.f32 %v1426, %v1426
        %v1429 = vsel %vm782, %v1427, 0.0
        %1430 = vadd.xlane.f32.xlu0 %v1429
        %v1431 = vpop.xlane.xlu0 %1430
        %v1432 = vsel %vm782, %v1428, 0.0
        %1433 = vadd.xlane.f32.xlu0 %v1432
        %v1434 = vpop.xlane.xlu0 %1433
        %v1435 = vmul.f32 %v1431, %v1422
        %v1436 = vmul.f32 %v1434, %v1422
        %v1437 = vadd.f32 %v1435, 1e-05
        %v1438 = vadd.f32 %v1436, 1e-05
        %v1439 = vrsqrt.pop %v1437
        %v1440 = vrsqrt.pop %v1438
        %v1441 = vmul.f32 %v1425, %v1439
        %v1442 = vmul.f32 %v1426, %v1440
        %v1444 = vlaneseq
        %v1445 = vshrl.u32 %v1444, 7
        %v1446 = vsub.s32 0, %v1445
        %v1447 = vrot.slane %v1414, %v1446
        %v1449 = vmul.f32 %v1441, %v1447
        %v1450 = vmul.f32 %v1442, %v1447
        %v1452 = vlaneseq
        %v1453 = vshrl.u32 %v1452, 7
        %v1454 = vsub.s32 0, %v1453
        %v1455 = vrot.slane %v1415, %v1454
        %v1457 = vadd.f32 %v1449, %v1455
        %v1458 = vadd.f32 %v1450, %v1455
        %v1459 = vpack.c.bf16 %v1458, %v1457
        %v1460 = vld [vmem:[%s10] sm:$0xf]
        %v1461 = vld [vmem:[%s10 + $0x4] sm:$0xf]
        %v1462 = vld [vmem:[%s10 + $0x8] sm:$0xf]
        %v1463 = vld [vmem:[%s10 + $0xc] sm:$0xf]
        %v1464 = vld [vmem:[%s11] sm:$0x1]
        %v1466 = vlaneseq
        %v1467 = vshrl.u32 %v1466, 7
        %v1468 = vsub.s32 0, %v1467
        %v1469 = vrot.slane %v1464, %v1468
        %v1475 = vunpack.c.l.b16 %v1460
        %v1476 = vunpack.c.l.b16 %v1461
        %v1477 = vunpack.c.l.b16 %v1462
        %v1478 = vunpack.c.l.b16 %v1463
        %v1479 = vpack.c.b16 %v1476, %v1475
        %v1480 = vpack.c.b16 %v1478, %v1477
        %v1484 = vsel %vm782, %v1459, 0
        %1486 = vmatprep.subr.bf16.mxu0 0
        %1487 = vmatpush1.bf16.msra.mxu0 0
        %1488 = vmatprep.subr.bf16.mxu0 0
        %1489 = vmatpush1.bf16.msra.mxu0 0
        %1490 = vmatprep.subr.bf16.mxu0 0
        %1491 = vmatpush1.bf16.msra.mxu0 0
        %1492 = vmatprep.subr.bf16.mxu0 0
        %1493 = vmatpush1.bf16.msra.mxu0 0
        %1494 = vmatprep.subr.bf16.mxu0 0
        %1495 = vmatpush1.bf16.msra.mxu0 0
        %1496 = vmatprep.subr.bf16.mxu0 0
        %1497 = vmatpush1.bf16.msra.mxu0 0
        %1498 = vmatprep.subr.bf16.mxu0 0
        %1499 = vmatpush1.bf16.msra.mxu0 %v1480
        %1500 = vmatprep.subr.bf16.mxu0 0
        %1501 = vmatpush1.bf16.msra.mxu0 %v1479
        %1502 = vmatprep.subr.bf16.mxu0 0
        %1503 = vmatpush2.bf16.msra.mxu0 0
        %1504 = vmatprep.subr.bf16.mxu0 0
        %1505 = vmatpush2.bf16.msra.mxu0 0
        %1506 = vmatprep.subr.bf16.mxu0 0
        %1507 = vmatpush2.bf16.msra.mxu0 0
        %1508 = vmatprep.subr.bf16.mxu0 0
        %1509 = vmatpush2.bf16.msra.mxu0 0
        %1510 = vmatprep.subr.bf16.mxu0 0
        %1511 = vmatpush2.bf16.msra.mxu0 0
        %1512 = vmatprep.subr.bf16.mxu0 0
        %1513 = vmatpush2.bf16.msra.mxu0 0
        %1514 = vmatprep.subr.bf16.mxu0 0
        %1515 = vmatpush2.bf16.msra.mxu0 0
        %1516 = vmatprep.subr.bf16.mxu0 0
        %1517 = vmatpush2.bf16.msra.mxu0 0
        %1518 = vmatprep.mubr.bf16.mxu0 0
        %1519 = vmatmul.mubr.bf16.gmra.mxu0 %v1484
        %v1520 = vpop.f32.mrf.mxu0
        %v1521 = vadd.f32 %v1469, %v1520
        %v1522 = vpop.f32.mrf.mxu0
        %v1523 = vpop.f32.mrf.mxu0
        %v1524 = vadd.f32 %v1469, %v1523
        %v1525 = vpop.f32.mrf.mxu0
        %1526 = vdwg.mxu0
        %v1527 = vmax.f32 %v1521, 0.0
        %v1528 = vmax.f32 %v1524, 0.0
        %v1529 = vpack.c.bf16 %v1528, %v1527
        %v1530 = vld [vmem:[%s12] sm:$0xf]
        %v1531 = vld [vmem:[%s12 + $0x4] sm:$0xf]
        %v1532 = vld [vmem:[%s12 + $0x8] sm:$0xf]
        %v1533 = vld [vmem:[%s12 + $0xc] sm:$0xf]
        %v1534 = vld [vmem:[%s12 + $0x10] sm:$0xf]
        %v1535 = vld [vmem:[%s12 + $0x14] sm:$0xf]
        %v1536 = vld [vmem:[%s12 + $0x18] sm:$0xf]
        %v1537 = vld [vmem:[%s12 + $0x1c] sm:$0xf]
        %v1538 = vld [vmem:[%s13] sm:$0x1]
        %v1540 = vlaneseq
        %v1541 = vshrl.u32 %v1540, 7
        %v1542 = vsub.s32 0, %v1541
        %v1543 = vrot.slane %v1538, %v1542
        %v1553 = vunpack.c.l.b16 %v1530
        %v1554 = vunpack.c.l.b16 %v1531
        %v1555 = vunpack.c.l.b16 %v1532
        %v1556 = vunpack.c.l.b16 %v1533
        %v1557 = vunpack.c.l.b16 %v1534
        %v1558 = vunpack.c.l.b16 %v1535
        %v1559 = vunpack.c.l.b16 %v1536
        %v1560 = vunpack.c.l.b16 %v1537
        %v1561 = vpack.c.b16 %v1554, %v1553
        %v1562 = vpack.c.b16 %v1556, %v1555
        %v1563 = vpack.c.b16 %v1558, %v1557
        %v1564 = vpack.c.b16 %v1560, %v1559
        %v1570 = vsel %vm720, %v1529, 0
        %1572 = vmatprep.subr.bf16.mxu0 0
        %1573 = vmatpush1.bf16.msra.mxu0 0
        %1574 = vmatprep.subr.bf16.mxu0 0
        %1575 = vmatpush1.bf16.msra.mxu0 0
        %1576 = vmatprep.subr.bf16.mxu0 0
        %1577 = vmatpush1.bf16.msra.mxu0 0
        %1578 = vmatprep.subr.bf16.mxu0 0
        %1579 = vmatpush1.bf16.msra.mxu0 0
        %1580 = vmatprep.subr.bf16.mxu0 0
        %1581 = vmatpush1.bf16.msra.mxu0 %v1564
        %1582 = vmatprep.subr.bf16.mxu0 0
        %1583 = vmatpush1.bf16.msra.mxu0 %v1563
        %1584 = vmatprep.subr.bf16.mxu0 0
        %1585 = vmatpush1.bf16.msra.mxu0 %v1562
        %1586 = vmatprep.subr.bf16.mxu0 0
        %1587 = vmatpush1.bf16.msra.mxu0 %v1561
        %1588 = vmatprep.subr.bf16.mxu0 0
        %1589 = vmatpush2.bf16.msra.mxu0 0
        %1590 = vmatprep.subr.bf16.mxu0 0
        %1591 = vmatpush2.bf16.msra.mxu0 0
        %1592 = vmatprep.subr.bf16.mxu0 0
        %1593 = vmatpush2.bf16.msra.mxu0 0
        %1594 = vmatprep.subr.bf16.mxu0 0
        %1595 = vmatpush2.bf16.msra.mxu0 0
        %1596 = vmatprep.subr.bf16.mxu0 0
        %1597 = vmatpush2.bf16.msra.mxu0 0
        %1598 = vmatprep.subr.bf16.mxu0 0
        %1599 = vmatpush2.bf16.msra.mxu0 0
        %1600 = vmatprep.subr.bf16.mxu0 0
        %1601 = vmatpush2.bf16.msra.mxu0 0
        %1602 = vmatprep.subr.bf16.mxu0 0
        %1603 = vmatpush2.bf16.msra.mxu0 0
        %1604 = vmatprep.mubr.bf16.mxu0 0
        %1605 = vmatmul.mubr.bf16.gmra.mxu0 %v1570
        %v1606 = vpop.f32.mrf.mxu0
        %v1607 = vadd.f32 %v1543, %v1606
        %v1608 = vpop.f32.mrf.mxu0
        %v1609 = vpop.f32.mrf.mxu0
        %v1610 = vadd.f32 %v1543, %v1609
        %v1611 = vpop.f32.mrf.mxu0
        %1612 = vdwg.mxu0
        %v1613 = vadd.f32 %v1457, %v1607
        %v1614 = vadd.f32 %v1458, %v1610
        %v1615 = vld [vmem:[%s14] sm:$0x1]
        %v1616 = vld [vmem:[%s15] sm:$0x1]
        %v1617 = vsel %vm782, %v1613, 0.0
        %1618 = vadd.xlane.f32.xlu0 %v1617
        %v1619 = vpop.xlane.xlu0 %1618
        %v1620 = vsel %vm782, %v1614, 0.0
        %1621 = vadd.xlane.f32.xlu0 %v1620
        %v1622 = vpop.xlane.xlu0 %1621
        %v1623 = vmul.f32 %v1619, %v1422
        %v1624 = vmul.f32 %v1622, %v1422
        %v1625 = vsub.f32 %v1613, %v1623
        %v1626 = vsub.f32 %v1614, %v1624
        %v1627 = vmul.f32 %v1625, %v1625
        %v1628 = vmul.f32 %v1626, %v1626
        %v1629 = vsel %vm782, %v1627, 0.0
        %1630 = vadd.xlane.f32.xlu0 %v1629
        %v1631 = vpop.xlane.xlu0 %1630
        %v1632 = vsel %vm782, %v1628, 0.0
        %1633 = vadd.xlane.f32.xlu0 %v1632
        %v1634 = vpop.xlane.xlu0 %1633
        %v1635 = vmul.f32 %v1631, %v1422
        %v1636 = vmul.f32 %v1634, %v1422
        %v1637 = vadd.f32 %v1635, 1e-05
        %v1638 = vadd.f32 %v1636, 1e-05
        %v1639 = vrsqrt.pop %v1637
        %v1640 = vrsqrt.pop %v1638
        %v1641 = vmul.f32 %v1625, %v1639
        %v1642 = vmul.f32 %v1626, %v1640
        %v1644 = vlaneseq
        %v1645 = vshrl.u32 %v1644, 7
        %v1646 = vsub.s32 0, %v1645
        %v1647 = vrot.slane %v1615, %v1646
        %v1649 = vmul.f32 %v1641, %v1647
        %v1650 = vmul.f32 %v1642, %v1647
        %v1652 = vlaneseq
        %v1653 = vshrl.u32 %v1652, 7
        %v1654 = vsub.s32 0, %v1653
        %v1655 = vrot.slane %v1616, %v1654
        %v1657 = vadd.f32 %v1649, %v1655
        %v1658 = vadd.f32 %v1650, %v1655
        %v1659 = vpack.c.bf16 %v1658, %v1657
        %s1660 = scalar_lea.vmem %s6, 16
        %v1661 = vld [vmem:[%s1660] sm:$0xf]
        %v1662 = vld [vmem:[%s1660 + $0x4] sm:$0xf]
        %v1663 = vld [vmem:[%s1660 + $0x8] sm:$0xf]
        %v1664 = vld [vmem:[%s1660 + $0xc] sm:$0xf]
        %v1669 = vunpack.c.l.b16 %v1661
        %v1670 = vunpack.c.l.b16 %v1662
        %v1671 = vunpack.c.l.b16 %v1663
        %v1672 = vunpack.c.l.b16 %v1664
        %v1673 = vpack.c.b16 %v1670, %v1669
        %v1674 = vpack.c.b16 %v1672, %v1671
        %v1678 = vsel %vm782, %v1659, 0
        %1680 = vmatprep.subr.bf16.mxu0 0
        %1681 = vmatpush1.bf16.msra.mxu0 0
        %1682 = vmatprep.subr.bf16.mxu0 0
        %1683 = vmatpush1.bf16.msra.mxu0 0
        %1684 = vmatprep.subr.bf16.mxu0 0
        %1685 = vmatpush1.bf16.msra.mxu0 0
        %1686 = vmatprep.subr.bf16.mxu0 0
        %1687 = vmatpush1.bf16.msra.mxu0 0
        %1688 = vmatprep.subr.bf16.mxu0 0
        %1689 = vmatpush1.bf16.msra.mxu0 0
        %1690 = vmatprep.subr.bf16.mxu0 0
        %1691 = vmatpush1.bf16.msra.mxu0 0
        %1692 = vmatprep.subr.bf16.mxu0 0
        %1693 = vmatpush1.bf16.msra.mxu0 %v1674
        %1694 = vmatprep.subr.bf16.mxu0 0
        %1695 = vmatpush1.bf16.msra.mxu0 %v1673
        %1696 = vmatprep.subr.bf16.mxu0 0
        %1697 = vmatpush2.bf16.msra.mxu0 0
        %1698 = vmatprep.subr.bf16.mxu0 0
        %1699 = vmatpush2.bf16.msra.mxu0 0
        %1700 = vmatprep.subr.bf16.mxu0 0
        %1701 = vmatpush2.bf16.msra.mxu0 0
        %1702 = vmatprep.subr.bf16.mxu0 0
        %1703 = vmatpush2.bf16.msra.mxu0 0
        %1704 = vmatprep.subr.bf16.mxu0 0
        %1705 = vmatpush2.bf16.msra.mxu0 0
        %1706 = vmatprep.subr.bf16.mxu0 0
        %1707 = vmatpush2.bf16.msra.mxu0 0
        %1708 = vmatprep.subr.bf16.mxu0 0
        %1709 = vmatpush2.bf16.msra.mxu0 0
        %1710 = vmatprep.subr.bf16.mxu0 0
        %1711 = vmatpush2.bf16.msra.mxu0 0
        %1712 = vmatprep.mubr.bf16.mxu0 0
        %1713 = vmatmul.mubr.bf16.gmra.mxu0 %v1678
        %v1714 = vpop.f32.mrf.mxu0
        %v1715 = vadd.f32 0.0, %v1714
        %v1716 = vpop.f32.mrf.mxu0
        %v1717 = vpop.f32.mrf.mxu0
        %v1718 = vadd.f32 0.0, %v1717
        %v1719 = vpop.f32.mrf.mxu0
        %1720 = vdwg.mxu0
        %v1721 = vpack.c.bf16 %v1718, %v1715
        %1723 = vrot.lane.b32.xlu0 %v1721, 96
        %v1724 = vpop.permute.xlu0 %1723
        %v1726 = vsel %vm630, %v1721, 0
        %v1729 = vsel %vm630, %v1724, 0
        %1731 = vmatprep.subr.bf16.mxu0 0
        %1732 = vmatpush1.bf16.xpose.msra.mxu0 0
        %1733 = vmatprep.subr.bf16.mxu0 0
        %1734 = vmatpush1.bf16.xpose.msra.mxu0 0
        %1735 = vmatprep.subr.bf16.mxu0 0
        %1736 = vmatpush1.bf16.xpose.msra.mxu0 0
        %1737 = vmatprep.subr.bf16.mxu0 0
        %1738 = vmatpush1.bf16.xpose.msra.mxu0 0
        %1739 = vmatprep.subr.bf16.mxu0 0
        %1740 = vmatpush1.bf16.xpose.msra.mxu0 0
        %1741 = vmatprep.subr.bf16.mxu0 0
        %1742 = vmatpush1.bf16.xpose.msra.mxu0 0
        %1743 = vmatprep.subr.bf16.mxu0 0
        %1744 = vmatpush1.bf16.xpose.msra.mxu0 0
        %1745 = vmatprep.subr.bf16.mxu0 0
        %1746 = vmatpush1.bf16.xpose.msra.mxu0 %v1729
        %1747 = vmatprep.subr.bf16.mxu0 0
        %1748 = vmatpush2.bf16.xpose.msra.mxu0 0
        %1749 = vmatprep.subr.bf16.mxu0 0
        %1750 = vmatpush2.bf16.xpose.msra.mxu0 0
        %1751 = vmatprep.subr.bf16.mxu0 0
        %1752 = vmatpush2.bf16.xpose.msra.mxu0 0
        %1753 = vmatprep.subr.bf16.mxu0 0
        %1754 = vmatpush2.bf16.xpose.msra.mxu0 0
        %1755 = vmatprep.subr.bf16.mxu0 0
        %1756 = vmatpush2.bf16.xpose.msra.mxu0 0
        %1757 = vmatprep.subr.bf16.mxu0 0
        %1758 = vmatpush2.bf16.xpose.msra.mxu0 0
        %1759 = vmatprep.subr.bf16.mxu0 0
        %1760 = vmatpush2.bf16.xpose.msra.mxu0 0
        %1761 = vmatprep.subr.bf16.mxu0 0
        %1762 = vmatpush2.bf16.xpose.msra.mxu0 0
        %1763 = vmatprep.mubr.bf16.mxu0 0
        %1764 = vmatmul.mubr.bf16.gmra.mxu0 %v1726
        %v1765 = vpop.f32.mrf.mxu0
        %v1766 = vadd.f32 0.0, %v1765
        %v1767 = vpop.f32.mrf.mxu0
        %v1768 = vpop.f32.mrf.mxu0
        %v1769 = vadd.f32 0.0, %v1768
        %v1770 = vpop.f32.mrf.mxu0
        %1771 = vdwg.mxu0
        %v1772 = vmul.f32 %v1766, 0.35355338
        %v1773 = vmul.f32 %v1769, 0.35355338
        %v1774 = vsel %vm880, %v1772, -inf
        %1775 = vmax.xlane.f32.xlu0 %v1774
        %v1776 = vpop.xlane.xlu0 %1775
        %v1777 = vsel %vm880, %v1773, -inf
        %1778 = vmax.xlane.f32.xlu0 %v1777
        %v1779 = vpop.xlane.xlu0 %1778
        %v1780 = vsub.f32 %v1772, %v1776
        %v1781 = vsub.f32 %v1773, %v1779
        %v1782 = vmul.f32 %v1780, 1.442695
        %v1783 = vpow.pop %v1782
        %v1784 = vmul.f32 %v1781, 1.442695
        %v1785 = vpow.pop %v1784
        %v1786 = vsel %vm880, %v1783, 0.0
        %1787 = vadd.xlane.f32.xlu0 %v1786
        %v1788 = vpop.xlane.xlu0 %1787
        %v1789 = vsel %vm880, %v1785, 0.0
        %1790 = vadd.xlane.f32.xlu0 %v1789
        %v1791 = vpop.xlane.xlu0 %1790
        %v1792 = vrcp.pop %v1788
        %v1793 = vmul.f32 %v1783, %v1792
        %v1794 = vrcp.pop %v1791
        %v1795 = vmul.f32 %v1785, %v1794
        %v1796 = vpack.c.bf16 %v1795, %v1793
        %1797 = vrot.lane.b32.xlu0 %v1721, 64
        %v1798 = vpop.permute.xlu0 %1797
        %v1801 = vsel %vm880, %v1796, 0
        %1803 = vmatprep.subr.bf16.mxu0 0
        %1804 = vmatpush1.bf16.msra.mxu0 0
        %1805 = vmatprep.subr.bf16.mxu0 0
        %1806 = vmatpush1.bf16.msra.mxu0 0
        %1807 = vmatprep.subr.bf16.mxu0 0
        %1808 = vmatpush1.bf16.msra.mxu0 0
        %1809 = vmatprep.subr.bf16.mxu0 0
        %1810 = vmatpush1.bf16.msra.mxu0 0
        %1811 = vmatprep.subr.bf16.mxu0 0
        %1812 = vmatpush1.bf16.msra.mxu0 0
        %1813 = vmatprep.subr.bf16.mxu0 0
        %1814 = vmatpush1.bf16.msra.mxu0 0
        %1815 = vmatprep.subr.bf16.mxu0 0
        %1816 = vmatpush1.bf16.msra.mxu0 0
        %1817 = vmatprep.subr.bf16.mxu0 0
        %1818 = vmatpush1.bf16.msra.mxu0 %v1798
        %1819 = vmatprep.subr.bf16.mxu0 0
        %1820 = vmatpush2.bf16.msra.mxu0 0
        %1821 = vmatprep.subr.bf16.mxu0 0
        %1822 = vmatpush2.bf16.msra.mxu0 0
        %1823 = vmatprep.subr.bf16.mxu0 0
        %1824 = vmatpush2.bf16.msra.mxu0 0
        %1825 = vmatprep.subr.bf16.mxu0 0
        %1826 = vmatpush2.bf16.msra.mxu0 0
        %1827 = vmatprep.subr.bf16.mxu0 0
        %1828 = vmatpush2.bf16.msra.mxu0 0
        %1829 = vmatprep.subr.bf16.mxu0 0
        %1830 = vmatpush2.bf16.msra.mxu0 0
        %1831 = vmatprep.subr.bf16.mxu0 0
        %1832 = vmatpush2.bf16.msra.mxu0 0
        %1833 = vmatprep.subr.bf16.mxu0 0
        %1834 = vmatpush2.bf16.msra.mxu0 0
        %1835 = vmatprep.mubr.bf16.mxu0 0
        %1836 = vmatmul.mubr.bf16.gmra.mxu0 %v1801
        %v1837 = vpop.f32.mrf.mxu0
        %v1838 = vadd.f32 0.0, %v1837
        %v1839 = vpop.f32.mrf.mxu0
        %v1840 = vpop.f32.mrf.mxu0
        %v1841 = vadd.f32 0.0, %v1840
        %v1842 = vpop.f32.mrf.mxu0
        %1843 = vdwg.mxu0
        %1844 = vrot.lane.b32.xlu0 %v1721, 120
        %v1845 = vpop.permute.xlu0 %1844
        %1846 = vrot.lane.b32.xlu0 %v1721, 88
        %v1847 = vpop.permute.xlu0 %1846
        %v1849 = vsel %vm630, %v1845, 0
        %v1852 = vsel %vm630, %v1847, 0
        %1854 = vmatprep.subr.bf16.mxu0 0
        %1855 = vmatpush1.bf16.xpose.msra.mxu0 0
        %1856 = vmatprep.subr.bf16.mxu0 0
        %1857 = vmatpush1.bf16.xpose.msra.mxu0 0
        %1858 = vmatprep.subr.bf16.mxu0 0
        %1859 = vmatpush1.bf16.xpose.msra.mxu0 0
        %1860 = vmatprep.subr.bf16.mxu0 0
        %1861 = vmatpush1.bf16.xpose.msra.mxu0 0
        %1862 = vmatprep.subr.bf16.mxu0 0
        %1863 = vmatpush1.bf16.xpose.msra.mxu0 0
        %1864 = vmatprep.subr.bf16.mxu0 0
        %1865 = vmatpush1.bf16.xpose.msra.mxu0 0
        %1866 = vmatprep.subr.bf16.mxu0 0
        %1867 = vmatpush1.bf16.xpose.msra.mxu0 0
        %1868 = vmatprep.subr.bf16.mxu0 0
        %1869 = vmatpush1.bf16.xpose.msra.mxu0 %v1852
        %1870 = vmatprep.subr.bf16.mxu0 0
        %1871 = vmatpush2.bf16.xpose.msra.mxu0 0
        %1872 = vmatprep.subr.bf16.mxu0 0
        %1873 = vmatpush2.bf16.xpose.msra.mxu0 0
        %1874 = vmatprep.subr.bf16.mxu0 0
        %1875 = vmatpush2.bf16.xpose.msra.mxu0 0
        %1876 = vmatprep.subr.bf16.mxu0 0
        %1877 = vmatpush2.bf16.xpose.msra.mxu0 0
        %1878 = vmatprep.subr.bf16.mxu0 0
        %1879 = vmatpush2.bf16.xpose.msra.mxu0 0
        %1880 = vmatprep.subr.bf16.mxu0 0
        %1881 = vmatpush2.bf16.xpose.msra.mxu0 0
        %1882 = vmatprep.subr.bf16.mxu0 0
        %1883 = vmatpush2.bf16.xpose.msra.mxu0 0
        %1884 = vmatprep.subr.bf16.mxu0 0
        %1885 = vmatpush2.bf16.xpose.msra.mxu0 0
        %1886 = vmatprep.mubr.bf16.mxu0 0
        %1887 = vmatmul.mubr.bf16.gmra.mxu0 %v1849
        %v1888 = vpop.f32.mrf.mxu0
        %v1889 = vadd.f32 0.0, %v1888
        %v1890 = vpop.f32.mrf.mxu0
        %v1891 = vpop.f32.mrf.mxu0
        %v1892 = vadd.f32 0.0, %v1891
        %v1893 = vpop.f32.mrf.mxu0
        %1894 = vdwg.mxu0
        %v1895 = vmul.f32 %v1889, 0.35355338
        %v1896 = vmul.f32 %v1892, 0.35355338
        %v1897 = vsel %vm880, %v1895, -inf
        %1898 = vmax.xlane.f32.xlu0 %v1897
        %v1899 = vpop.xlane.xlu0 %1898
        %v1900 = vsel %vm880, %v1896, -inf
        %1901 = vmax.xlane.f32.xlu0 %v1900
        %v1902 = vpop.xlane.xlu0 %1901
        %v1903 = vsub.f32 %v1895, %v1899
        %v1904 = vsub.f32 %v1896, %v1902
        %v1905 = vmul.f32 %v1903, 1.442695
        %v1906 = vpow.pop %v1905
        %v1907 = vmul.f32 %v1904, 1.442695
        %v1908 = vpow.pop %v1907
        %v1909 = vsel %vm880, %v1906, 0.0
        %1910 = vadd.xlane.f32.xlu0 %v1909
        %v1911 = vpop.xlane.xlu0 %1910
        %v1912 = vsel %vm880, %v1908, 0.0
        %1913 = vadd.xlane.f32.xlu0 %v1912
        %v1914 = vpop.xlane.xlu0 %1913
        %v1915 = vrcp.pop %v1911
        %v1916 = vmul.f32 %v1906, %v1915
        %v1917 = vrcp.pop %v1914
        %v1918 = vmul.f32 %v1908, %v1917
        %v1919 = vpack.c.bf16 %v1918, %v1916
        %1920 = vrot.lane.b32.xlu0 %v1721, 56
        %v1921 = vpop.permute.xlu0 %1920
        %v1924 = vsel %vm880, %v1919, 0
        %1926 = vmatprep.subr.bf16.mxu0 0
        %1927 = vmatpush1.bf16.msra.mxu0 0
        %1928 = vmatprep.subr.bf16.mxu0 0
        %1929 = vmatpush1.bf16.msra.mxu0 0
        %1930 = vmatprep.subr.bf16.mxu0 0
        %1931 = vmatpush1.bf16.msra.mxu0 0
        %1932 = vmatprep.subr.bf16.mxu0 0
        %1933 = vmatpush1.bf16.msra.mxu0 0
        %1934 = vmatprep.subr.bf16.mxu0 0
        %1935 = vmatpush1.bf16.msra.mxu0 0
        %1936 = vmatprep.subr.bf16.mxu0 0
        %1937 = vmatpush1.bf16.msra.mxu0 0
        %1938 = vmatprep.subr.bf16.mxu0 0
        %1939 = vmatpush1.bf16.msra.mxu0 0
        %1940 = vmatprep.subr.bf16.mxu0 0
        %1941 = vmatpush1.bf16.msra.mxu0 %v1921
        %1942 = vmatprep.subr.bf16.mxu0 0
        %1943 = vmatpush2.bf16.msra.mxu0 0
        %1944 = vmatprep.subr.bf16.mxu0 0
        %1945 = vmatpush2.bf16.msra.mxu0 0
        %1946 = vmatprep.subr.bf16.mxu0 0
        %1947 = vmatpush2.bf16.msra.mxu0 0
        %1948 = vmatprep.subr.bf16.mxu0 0
        %1949 = vmatpush2.bf16.msra.mxu0 0
        %1950 = vmatprep.subr.bf16.mxu0 0
        %1951 = vmatpush2.bf16.msra.mxu0 0
        %1952 = vmatprep.subr.bf16.mxu0 0
        %1953 = vmatpush2.bf16.msra.mxu0 0
        %1954 = vmatprep.subr.bf16.mxu0 0
        %1955 = vmatpush2.bf16.msra.mxu0 0
        %1956 = vmatprep.subr.bf16.mxu0 0
        %1957 = vmatpush2.bf16.msra.mxu0 0
        %1958 = vmatprep.mubr.bf16.mxu0 0
        %1959 = vmatmul.mubr.bf16.gmra.mxu0 %v1924
        %v1960 = vpop.f32.mrf.mxu0
        %v1961 = vadd.f32 0.0, %v1960
        %v1962 = vpop.f32.mrf.mxu0
        %v1963 = vpop.f32.mrf.mxu0
        %v1964 = vadd.f32 0.0, %v1963
        %v1965 = vpop.f32.mrf.mxu0
        %1966 = vdwg.mxu0
        %1967 = vrot.lane.b32.xlu0 %v1721, 112
        %v1968 = vpop.permute.xlu0 %1967
        %1969 = vrot.lane.b32.xlu0 %v1721, 80
        %v1970 = vpop.permute.xlu0 %1969
        %v1972 = vsel %vm630, %v1968, 0
        %v1975 = vsel %vm630, %v1970, 0
        %1977 = vmatprep.subr.bf16.mxu0 0
        %1978 = vmatpush1.bf16.xpose.msra.mxu0 0
        %1979 = vmatprep.subr.bf16.mxu0 0
        %1980 = vmatpush1.bf16.xpose.msra.mxu0 0
        %1981 = vmatprep.subr.bf16.mxu0 0
        %1982 = vmatpush1.bf16.xpose.msra.mxu0 0
        %1983 = vmatprep.subr.bf16.mxu0 0
        %1984 = vmatpush1.bf16.xpose.msra.mxu0 0
        %1985 = vmatprep.subr.bf16.mxu0 0
        %1986 = vmatpush1.bf16.xpose.msra.mxu0 0
        %1987 = vmatprep.subr.bf16.mxu0 0
        %1988 = vmatpush1.bf16.xpose.msra.mxu0 0
        %1989 = vmatprep.subr.bf16.mxu0 0
        %1990 = vmatpush1.bf16.xpose.msra.mxu0 0
        %1991 = vmatprep.subr.bf16.mxu0 0
        %1992 = vmatpush1.bf16.xpose.msra.mxu0 %v1975
        %1993 = vmatprep.subr.bf16.mxu0 0
        %1994 = vmatpush2.bf16.xpose.msra.mxu0 0
        %1995 = vmatprep.subr.bf16.mxu0 0
        %1996 = vmatpush2.bf16.xpose.msra.mxu0 0
        %1997 = vmatprep.subr.bf16.mxu0 0
        %1998 = vmatpush2.bf16.xpose.msra.mxu0 0
        %1999 = vmatprep.subr.bf16.mxu0 0
        %2000 = vmatpush2.bf16.xpose.msra.mxu0 0
        %2001 = vmatprep.subr.bf16.mxu0 0
        %2002 = vmatpush2.bf16.xpose.msra.mxu0 0
        %2003 = vmatprep.subr.bf16.mxu0 0
        %2004 = vmatpush2.bf16.xpose.msra.mxu0 0
        %2005 = vmatprep.subr.bf16.mxu0 0
        %2006 = vmatpush2.bf16.xpose.msra.mxu0 0
        %2007 = vmatprep.subr.bf16.mxu0 0
        %2008 = vmatpush2.bf16.xpose.msra.mxu0 0
        %2009 = vmatprep.mubr.bf16.mxu0 0
        %2010 = vmatmul.mubr.bf16.gmra.mxu0 %v1972
        %v2011 = vpop.f32.mrf.mxu0
        %v2012 = vadd.f32 0.0, %v2011
        %v2013 = vpop.f32.mrf.mxu0
        %v2014 = vpop.f32.mrf.mxu0
        %v2015 = vadd.f32 0.0, %v2014
        %v2016 = vpop.f32.mrf.mxu0
        %2017 = vdwg.mxu0
        %v2018 = vmul.f32 %v2012, 0.35355338
        %v2019 = vmul.f32 %v2015, 0.35355338
        %v2020 = vsel %vm880, %v2018, -inf
        %2021 = vmax.xlane.f32.xlu0 %v2020
        %v2022 = vpop.xlane.xlu0 %2021
        %v2023 = vsel %vm880, %v2019, -inf
        %2024 = vmax.xlane.f32.xlu0 %v2023
        %v2025 = vpop.xlane.xlu0 %2024
        %v2026 = vsub.f32 %v2018, %v2022
        %v2027 = vsub.f32 %v2019, %v2025
        %v2028 = vmul.f32 %v2026, 1.442695
        %v2029 = vpow.pop %v2028
        %v2030 = vmul.f32 %v2027, 1.442695
        %v2031 = vpow.pop %v2030
        %v2032 = vsel %vm880, %v2029, 0.0
        %2033 = vadd.xlane.f32.xlu0 %v2032
        %v2034 = vpop.xlane.xlu0 %2033
        %v2035 = vsel %vm880, %v2031, 0.0
        %2036 = vadd.xlane.f32.xlu0 %v2035
        %v2037 = vpop.xlane.xlu0 %2036
        %v2038 = vrcp.pop %v2034
        %v2039 = vmul.f32 %v2029, %v2038
        %v2040 = vrcp.pop %v2037
        %v2041 = vmul.f32 %v2031, %v2040
        %v2042 = vpack.c.bf16 %v2041, %v2039
        %2043 = vrot.lane.b32.xlu0 %v1721, 48
        %v2044 = vpop.permute.xlu0 %2043
        %v2047 = vsel %vm880, %v2042, 0
        %2049 = vmatprep.subr.bf16.mxu0 0
        %2050 = vmatpush1.bf16.msra.mxu0 0
        %2051 = vmatprep.subr.bf16.mxu0 0
        %2052 = vmatpush1.bf16.msra.mxu0 0
        %2053 = vmatprep.subr.bf16.mxu0 0
        %2054 = vmatpush1.bf16.msra.mxu0 0
        %2055 = vmatprep.subr.bf16.mxu0 0
        %2056 = vmatpush1.bf16.msra.mxu0 0
        %2057 = vmatprep.subr.bf16.mxu0 0
        %2058 = vmatpush1.bf16.msra.mxu0 0
        %2059 = vmatprep.subr.bf16.mxu0 0
        %2060 = vmatpush1.bf16.msra.mxu0 0
        %2061 = vmatprep.subr.bf16.mxu0 0
        %2062 = vmatpush1.bf16.msra.mxu0 0
        %2063 = vmatprep.subr.bf16.mxu0 0
        %2064 = vmatpush1.bf16.msra.mxu0 %v2044
        %2065 = vmatprep.subr.bf16.mxu0 0
        %2066 = vmatpush2.bf16.msra.mxu0 0
        %2067 = vmatprep.subr.bf16.mxu0 0
        %2068 = vmatpush2.bf16.msra.mxu0 0
        %2069 = vmatprep.subr.bf16.mxu0 0
        %2070 = vmatpush2.bf16.msra.mxu0 0
        %2071 = vmatprep.subr.bf16.mxu0 0
        %2072 = vmatpush2.bf16.msra.mxu0 0
        %2073 = vmatprep.subr.bf16.mxu0 0
        %2074 = vmatpush2.bf16.msra.mxu0 0
        %2075 = vmatprep.subr.bf16.mxu0 0
        %2076 = vmatpush2.bf16.msra.mxu0 0
        %2077 = vmatprep.subr.bf16.mxu0 0
        %2078 = vmatpush2.bf16.msra.mxu0 0
        %2079 = vmatprep.subr.bf16.mxu0 0
        %2080 = vmatpush2.bf16.msra.mxu0 0
        %2081 = vmatprep.mubr.bf16.mxu0 0
        %2082 = vmatmul.mubr.bf16.gmra.mxu0 %v2047
        %v2083 = vpop.f32.mrf.mxu0
        %v2084 = vadd.f32 0.0, %v2083
        %v2085 = vpop.f32.mrf.mxu0
        %v2086 = vpop.f32.mrf.mxu0
        %v2087 = vadd.f32 0.0, %v2086
        %v2088 = vpop.f32.mrf.mxu0
        %2089 = vdwg.mxu0
        %2090 = vrot.lane.b32.xlu0 %v1721, 104
        %v2091 = vpop.permute.xlu0 %2090
        %2092 = vrot.lane.b32.xlu0 %v1721, 72
        %v2093 = vpop.permute.xlu0 %2092
        %v2095 = vsel %vm630, %v2091, 0
        %v2098 = vsel %vm630, %v2093, 0
        %2100 = vmatprep.subr.bf16.mxu0 0
        %2101 = vmatpush1.bf16.xpose.msra.mxu0 0
        %2102 = vmatprep.subr.bf16.mxu0 0
        %2103 = vmatpush1.bf16.xpose.msra.mxu0 0
        %2104 = vmatprep.subr.bf16.mxu0 0
        %2105 = vmatpush1.bf16.xpose.msra.mxu0 0
        %2106 = vmatprep.subr.bf16.mxu0 0
        %2107 = vmatpush1.bf16.xpose.msra.mxu0 0
        %2108 = vmatprep.subr.bf16.mxu0 0
        %2109 = vmatpush1.bf16.xpose.msra.mxu0 0
        %2110 = vmatprep.subr.bf16.mxu0 0
        %2111 = vmatpush1.bf16.xpose.msra.mxu0 0
        %2112 = vmatprep.subr.bf16.mxu0 0
        %2113 = vmatpush1.bf16.xpose.msra.mxu0 0
        %2114 = vmatprep.subr.bf16.mxu0 0
        %2115 = vmatpush1.bf16.xpose.msra.mxu0 %v2098
        %2116 = vmatprep.subr.bf16.mxu0 0
        %2117 = vmatpush2.bf16.xpose.msra.mxu0 0
        %2118 = vmatprep.subr.bf16.mxu0 0
        %2119 = vmatpush2.bf16.xpose.msra.mxu0 0
        %2120 = vmatprep.subr.bf16.mxu0 0
        %2121 = vmatpush2.bf16.xpose.msra.mxu0 0
        %2122 = vmatprep.subr.bf16.mxu0 0
        %2123 = vmatpush2.bf16.xpose.msra.mxu0 0
        %2124 = vmatprep.subr.bf16.mxu0 0
        %2125 = vmatpush2.bf16.xpose.msra.mxu0 0
        %2126 = vmatprep.subr.bf16.mxu0 0
        %2127 = vmatpush2.bf16.xpose.msra.mxu0 0
        %2128 = vmatprep.subr.bf16.mxu0 0
        %2129 = vmatpush2.bf16.xpose.msra.mxu0 0
        %2130 = vmatprep.subr.bf16.mxu0 0
        %2131 = vmatpush2.bf16.xpose.msra.mxu0 0
        %2132 = vmatprep.mubr.bf16.mxu0 0
        %2133 = vmatmul.mubr.bf16.gmra.mxu0 %v2095
        %v2134 = vpop.f32.mrf.mxu0
        %v2135 = vadd.f32 0.0, %v2134
        %v2136 = vpop.f32.mrf.mxu0
        %v2137 = vpop.f32.mrf.mxu0
        %v2138 = vadd.f32 0.0, %v2137
        %v2139 = vpop.f32.mrf.mxu0
        %2140 = vdwg.mxu0
        %v2141 = vmul.f32 %v2135, 0.35355338
        %v2142 = vmul.f32 %v2138, 0.35355338
        %v2143 = vsel %vm880, %v2141, -inf
        %2144 = vmax.xlane.f32.xlu0 %v2143
        %v2145 = vpop.xlane.xlu0 %2144
        %v2146 = vsel %vm880, %v2142, -inf
        %2147 = vmax.xlane.f32.xlu0 %v2146
        %v2148 = vpop.xlane.xlu0 %2147
        %v2149 = vsub.f32 %v2141, %v2145
        %v2150 = vsub.f32 %v2142, %v2148
        %v2151 = vmul.f32 %v2149, 1.442695
        %v2152 = vpow.pop %v2151
        %v2153 = vmul.f32 %v2150, 1.442695
        %v2154 = vpow.pop %v2153
        %v2155 = vsel %vm880, %v2152, 0.0
        %2156 = vadd.xlane.f32.xlu0 %v2155
        %v2157 = vpop.xlane.xlu0 %2156
        %v2158 = vsel %vm880, %v2154, 0.0
        %2159 = vadd.xlane.f32.xlu0 %v2158
        %v2160 = vpop.xlane.xlu0 %2159
        %v2161 = vrcp.pop %v2157
        %v2162 = vmul.f32 %v2152, %v2161
        %v2163 = vrcp.pop %v2160
        %v2164 = vmul.f32 %v2154, %v2163
        %v2165 = vpack.c.bf16 %v2164, %v2162
        %2166 = vrot.lane.b32.xlu0 %v1721, 40
        %v2167 = vpop.permute.xlu0 %2166
        %v2170 = vsel %vm880, %v2165, 0
        %2172 = vmatprep.subr.bf16.mxu0 0
        %2173 = vmatpush1.bf16.msra.mxu0 0
        %2174 = vmatprep.subr.bf16.mxu0 0
        %2175 = vmatpush1.bf16.msra.mxu0 0
        %2176 = vmatprep.subr.bf16.mxu0 0
        %2177 = vmatpush1.bf16.msra.mxu0 0
        %2178 = vmatprep.subr.bf16.mxu0 0
        %2179 = vmatpush1.bf16.msra.mxu0 0
        %2180 = vmatprep.subr.bf16.mxu0 0
        %2181 = vmatpush1.bf16.msra.mxu0 0
        %2182 = vmatprep.subr.bf16.mxu0 0
        %2183 = vmatpush1.bf16.msra.mxu0 0
        %2184 = vmatprep.subr.bf16.mxu0 0
        %2185 = vmatpush1.bf16.msra.mxu0 0
        %2186 = vmatprep.subr.bf16.mxu0 0
        %2187 = vmatpush1.bf16.msra.mxu0 %v2167
        %2188 = vmatprep.subr.bf16.mxu0 0
        %2189 = vmatpush2.bf16.msra.mxu0 0
        %2190 = vmatprep.subr.bf16.mxu0 0
        %2191 = vmatpush2.bf16.msra.mxu0 0
        %2192 = vmatprep.subr.bf16.mxu0 0
        %2193 = vmatpush2.bf16.msra.mxu0 0
        %2194 = vmatprep.subr.bf16.mxu0 0
        %2195 = vmatpush2.bf16.msra.mxu0 0
        %2196 = vmatprep.subr.bf16.mxu0 0
        %2197 = vmatpush2.bf16.msra.mxu0 0
        %2198 = vmatprep.subr.bf16.mxu0 0
        %2199 = vmatpush2.bf16.msra.mxu0 0
        %2200 = vmatprep.subr.bf16.mxu0 0
        %2201 = vmatpush2.bf16.msra.mxu0 0
        %2202 = vmatprep.subr.bf16.mxu0 0
        %2203 = vmatpush2.bf16.msra.mxu0 0
        %2204 = vmatprep.mubr.bf16.mxu0 0
        %2205 = vmatmul.mubr.bf16.gmra.mxu0 %v2170
        %v2206 = vpop.f32.mrf.mxu0
        %v2207 = vadd.f32 0.0, %v2206
        %v2208 = vpop.f32.mrf.mxu0
        %v2209 = vpop.f32.mrf.mxu0
        %v2210 = vadd.f32 0.0, %v2209
        %v2211 = vpop.f32.mrf.mxu0
        %2212 = vdwg.mxu0
        %2215 = vrot.lane.b32.xlu0 %v1961, 8
        %v2216 = vpop.permute.xlu0 %2215
        %2217 = vrot.lane.b32.xlu0 %v1964, 8
        %v2218 = vpop.permute.xlu0 %2217
        %2223 = vrot.lane.b32.xlu0 %v2084, 16
        %v2224 = vpop.permute.xlu0 %2223
        %2225 = vrot.lane.b32.xlu0 %v2087, 16
        %v2226 = vpop.permute.xlu0 %2225
        %2231 = vrot.lane.b32.xlu0 %v2207, 24
        %v2232 = vpop.permute.xlu0 %2231
        %2233 = vrot.lane.b32.xlu0 %v2210, 24
        %v2234 = vpop.permute.xlu0 %2233
        %v2237 = vsel %vm630, %v1838, %v2216
        %v2238 = vsel %vm630, %v1841, %v2218
        %v2239 = vsel %vm880, %v2237, %v2224
        %v2240 = vsel %vm880, %v2238, %v2226
        %v2241 = vsel %vm1348, %v2239, %v2232
        %v2242 = vsel %vm1348, %v2240, %v2234
        %v2243 = vpack.c.bf16 %v2242, %v2241
        %s2244 = scalar_lea.vmem %s7, 16
        %v2245 = vld [vmem:[%s2244] sm:$0xf]
        %v2246 = vld [vmem:[%s2244 + $0x4] sm:$0xf]
        %v2247 = vld [vmem:[%s2244 + $0x8] sm:$0xf]
        %v2248 = vld [vmem:[%s2244 + $0xc] sm:$0xf]
        %v2253 = vunpack.c.l.b16 %v2245
        %v2254 = vunpack.c.l.b16 %v2246
        %v2255 = vunpack.c.l.b16 %v2247
        %v2256 = vunpack.c.l.b16 %v2248
        %v2257 = vpack.c.b16 %v2254, %v2253
        %v2258 = vpack.c.b16 %v2256, %v2255
        %v2262 = vsel %vm782, %v2243, 0
        %2264 = vmatprep.subr.bf16.mxu0 0
        %2265 = vmatpush1.bf16.msra.mxu0 0
        %2266 = vmatprep.subr.bf16.mxu0 0
        %2267 = vmatpush1.bf16.msra.mxu0 0
        %2268 = vmatprep.subr.bf16.mxu0 0
        %2269 = vmatpush1.bf16.msra.mxu0 0
        %2270 = vmatprep.subr.bf16.mxu0 0
        %2271 = vmatpush1.bf16.msra.mxu0 0
        %2272 = vmatprep.subr.bf16.mxu0 0
        %2273 = vmatpush1.bf16.msra.mxu0 0
        %2274 = vmatprep.subr.bf16.mxu0 0
        %2275 = vmatpush1.bf16.msra.mxu0 0
        %2276 = vmatprep.subr.bf16.mxu0 0
        %2277 = vmatpush1.bf16.msra.mxu0 %v2258
        %2278 = vmatprep.subr.bf16.mxu0 0
        %2279 = vmatpush1.bf16.msra.mxu0 %v2257
        %2280 = vmatprep.subr.bf16.mxu0 0
        %2281 = vmatpush2.bf16.msra.mxu0 0
        %2282 = vmatprep.subr.bf16.mxu0 0
        %2283 = vmatpush2.bf16.msra.mxu0 0
        %2284 = vmatprep.subr.bf16.mxu0 0
        %2285 = vmatpush2.bf16.msra.mxu0 0
        %2286 = vmatprep.subr.bf16.mxu0 0
        %2287 = vmatpush2.bf16.msra.mxu0 0
        %2288 = vmatprep.subr.bf16.mxu0 0
        %2289 = vmatpush2.bf16.msra.mxu0 0
        %2290 = vmatprep.subr.bf16.mxu0 0
        %2291 = vmatpush2.bf16.msra.mxu0 0
        %2292 = vmatprep.subr.bf16.mxu0 0
        %2293 = vmatpush2.bf16.msra.mxu0 0
        %2294 = vmatprep.subr.bf16.mxu0 0
        %2295 = vmatpush2.bf16.msra.mxu0 0
        %2296 = vmatprep.mubr.bf16.mxu0 0
        %2297 = vmatmul.mubr.bf16.gmra.mxu0 %v2262
        %v2298 = vpop.f32.mrf.mxu0
        %v2299 = vadd.f32 0.0, %v2298
        %v2300 = vpop.f32.mrf.mxu0
        %v2301 = vpop.f32.mrf.mxu0
        %v2302 = vadd.f32 0.0, %v2301
        %v2303 = vpop.f32.mrf.mxu0
        %2304 = vdwg.mxu0
        %v2305 = vadd.f32 %v1657, %v2299
        %v2306 = vadd.f32 %v1658, %v2302
        %s2307 = scalar_lea.vmem %s8, 1
        %v2308 = vld [vmem:[%s2307] sm:$0x1]
        %s2309 = scalar_lea.vmem %s9, 1
        %v2310 = vld [vmem:[%s2309] sm:$0x1]
        %v2311 = vsel %vm782, %v2305, 0.0
        %2312 = vadd.xlane.f32.xlu0 %v2311
        %v2313 = vpop.xlane.xlu0 %2312
        %v2314 = vsel %vm782, %v2306, 0.0
        %2315 = vadd.xlane.f32.xlu0 %v2314
        %v2316 = vpop.xlane.xlu0 %2315
        %v2317 = vmul.f32 %v2313, %v1422
        %v2318 = vmul.f32 %v2316, %v1422
        %v2319 = vsub.f32 %v2305, %v2317
        %v2320 = vsub.f32 %v2306, %v2318
        %v2321 = vmul.f32 %v2319, %v2319
        %v2322 = vmul.f32 %v2320, %v2320
        %v2323 = vsel %vm782, %v2321, 0.0
        %2324 = vadd.xlane.f32.xlu0 %v2323
        %v2325 = vpop.xlane.xlu0 %2324
        %v2326 = vsel %vm782, %v2322, 0.0
        %2327 = vadd.xlane.f32.xlu0 %v2326
        %v2328 = vpop.xlane.xlu0 %2327
        %v2329 = vmul.f32 %v2325, %v1422
        %v2330 = vmul.f32 %v2328, %v1422
        %v2331 = vadd.f32 %v2329, 1e-05
        %v2332 = vadd.f32 %v2330, 1e-05
        %v2333 = vrsqrt.pop %v2331
        %v2334 = vrsqrt.pop %v2332
        %v2335 = vmul.f32 %v2319, %v2333
        %v2336 = vmul.f32 %v2320, %v2334
        %v2338 = vlaneseq
        %v2339 = vshrl.u32 %v2338, 7
        %v2340 = vsub.s32 0, %v2339
        %v2341 = vrot.slane %v2308, %v2340
        %v2343 = vmul.f32 %v2335, %v2341
        %v2344 = vmul.f32 %v2336, %v2341
        %v2346 = vlaneseq
        %v2347 = vshrl.u32 %v2346, 7
        %v2348 = vsub.s32 0, %v2347
        %v2349 = vrot.slane %v2310, %v2348
        %v2351 = vadd.f32 %v2343, %v2349
        %v2352 = vadd.f32 %v2344, %v2349
        %v2353 = vpack.c.bf16 %v2352, %v2351
        %s2354 = scalar_lea.vmem %s10, 16
        %v2355 = vld [vmem:[%s2354] sm:$0xf]
        %v2356 = vld [vmem:[%s2354 + $0x4] sm:$0xf]
        %v2357 = vld [vmem:[%s2354 + $0x8] sm:$0xf]
        %v2358 = vld [vmem:[%s2354 + $0xc] sm:$0xf]
        %s2359 = scalar_lea.vmem %s11, 1
        %v2360 = vld [vmem:[%s2359] sm:$0x1]
        %v2362 = vlaneseq
        %v2363 = vshrl.u32 %v2362, 7
        %v2364 = vsub.s32 0, %v2363
        %v2365 = vrot.slane %v2360, %v2364
        %v2371 = vunpack.c.l.b16 %v2355
        %v2372 = vunpack.c.l.b16 %v2356
        %v2373 = vunpack.c.l.b16 %v2357
        %v2374 = vunpack.c.l.b16 %v2358
        %v2375 = vpack.c.b16 %v2372, %v2371
        %v2376 = vpack.c.b16 %v2374, %v2373
        %v2380 = vsel %vm782, %v2353, 0
        %2382 = vmatprep.subr.bf16.mxu0 0
        %2383 = vmatpush1.bf16.msra.mxu0 0
        %2384 = vmatprep.subr.bf16.mxu0 0
        %2385 = vmatpush1.bf16.msra.mxu0 0
        %2386 = vmatprep.subr.bf16.mxu0 0
        %2387 = vmatpush1.bf16.msra.mxu0 0
        %2388 = vmatprep.subr.bf16.mxu0 0
        %2389 = vmatpush1.bf16.msra.mxu0 0
        %2390 = vmatprep.subr.bf16.mxu0 0
        %2391 = vmatpush1.bf16.msra.mxu0 0
        %2392 = vmatprep.subr.bf16.mxu0 0
        %2393 = vmatpush1.bf16.msra.mxu0 0
        %2394 = vmatprep.subr.bf16.mxu0 0
        %2395 = vmatpush1.bf16.msra.mxu0 %v2376
        %2396 = vmatprep.subr.bf16.mxu0 0
        %2397 = vmatpush1.bf16.msra.mxu0 %v2375
        %2398 = vmatprep.subr.bf16.mxu0 0
        %2399 = vmatpush2.bf16.msra.mxu0 0
        %2400 = vmatprep.subr.bf16.mxu0 0
        %2401 = vmatpush2.bf16.msra.mxu0 0
        %2402 = vmatprep.subr.bf16.mxu0 0
        %2403 = vmatpush2.bf16.msra.mxu0 0
        %2404 = vmatprep.subr.bf16.mxu0 0
        %2405 = vmatpush2.bf16.msra.mxu0 0
        %2406 = vmatprep.subr.bf16.mxu0 0
        %2407 = vmatpush2.bf16.msra.mxu0 0
        %2408 = vmatprep.subr.bf16.mxu0 0
        %2409 = vmatpush2.bf16.msra.mxu0 0
        %2410 = vmatprep.subr.bf16.mxu0 0
        %2411 = vmatpush2.bf16.msra.mxu0 0
        %2412 = vmatprep.subr.bf16.mxu0 0
        %2413 = vmatpush2.bf16.msra.mxu0 0
        %2414 = vmatprep.mubr.bf16.mxu0 0
        %2415 = vmatmul.mubr.bf16.gmra.mxu0 %v2380
        %v2416 = vpop.f32.mrf.mxu0
        %v2417 = vadd.f32 %v2365, %v2416
        %v2418 = vpop.f32.mrf.mxu0
        %v2419 = vpop.f32.mrf.mxu0
        %v2420 = vadd.f32 %v2365, %v2419
        %v2421 = vpop.f32.mrf.mxu0
        %2422 = vdwg.mxu0
        %v2423 = vmax.f32 %v2417, 0.0
        %v2424 = vmax.f32 %v2420, 0.0
        %v2425 = vpack.c.bf16 %v2424, %v2423
        %s2426 = scalar_lea.vmem %s12, 32
        %v2427 = vld [vmem:[%s2426] sm:$0xf]
        %v2428 = vld [vmem:[%s2426 + $0x4] sm:$0xf]
        %v2429 = vld [vmem:[%s2426 + $0x8] sm:$0xf]
        %v2430 = vld [vmem:[%s2426 + $0xc] sm:$0xf]
        %v2431 = vld [vmem:[%s2426 + $0x10] sm:$0xf]
        %v2432 = vld [vmem:[%s2426 + $0x14] sm:$0xf]
        %v2433 = vld [vmem:[%s2426 + $0x18] sm:$0xf]
        %v2434 = vld [vmem:[%s2426 + $0x1c] sm:$0xf]
        %s2435 = scalar_lea.vmem %s13, 1
        %v2436 = vld [vmem:[%s2435] sm:$0x1]
        %v2438 = vlaneseq
        %v2439 = vshrl.u32 %v2438, 7
        %v2440 = vsub.s32 0, %v2439
        %v2441 = vrot.slane %v2436, %v2440
        %v2451 = vunpack.c.l.b16 %v2427
        %v2452 = vunpack.c.l.b16 %v2428
        %v2453 = vunpack.c.l.b16 %v2429
        %v2454 = vunpack.c.l.b16 %v2430
        %v2455 = vunpack.c.l.b16 %v2431
        %v2456 = vunpack.c.l.b16 %v2432
        %v2457 = vunpack.c.l.b16 %v2433
        %v2458 = vunpack.c.l.b16 %v2434
        %v2459 = vpack.c.b16 %v2452, %v2451
        %v2460 = vpack.c.b16 %v2454, %v2453
        %v2461 = vpack.c.b16 %v2456, %v2455
        %v2462 = vpack.c.b16 %v2458, %v2457
        %v2468 = vsel %vm720, %v2425, 0
        %2470 = vmatprep.subr.bf16.mxu0 0
        %2471 = vmatpush1.bf16.msra.mxu0 0
        %2472 = vmatprep.subr.bf16.mxu0 0
        %2473 = vmatpush1.bf16.msra.mxu0 0
        %2474 = vmatprep.subr.bf16.mxu0 0
        %2475 = vmatpush1.bf16.msra.mxu0 0
        %2476 = vmatprep.subr.bf16.mxu0 0
        %2477 = vmatpush1.bf16.msra.mxu0 0
        %2478 = vmatprep.subr.bf16.mxu0 0
        %2479 = vmatpush1.bf16.msra.mxu0 %v2462
        %2480 = vmatprep.subr.bf16.mxu0 0
        %2481 = vmatpush1.bf16.msra.mxu0 %v2461
        %2482 = vmatprep.subr.bf16.mxu0 0
        %2483 = vmatpush1.bf16.msra.mxu0 %v2460
        %2484 = vmatprep.subr.bf16.mxu0 0
        %2485 = vmatpush1.bf16.msra.mxu0 %v2459
        %2486 = vmatprep.subr.bf16.mxu0 0
        %2487 = vmatpush2.bf16.msra.mxu0 0
        %2488 = vmatprep.subr.bf16.mxu0 0
        %2489 = vmatpush2.bf16.msra.mxu0 0
        %2490 = vmatprep.subr.bf16.mxu0 0
        %2491 = vmatpush2.bf16.msra.mxu0 0
        %2492 = vmatprep.subr.bf16.mxu0 0
        %2493 = vmatpush2.bf16.msra.mxu0 0
        %2494 = vmatprep.subr.bf16.mxu0 0
        %2495 = vmatpush2.bf16.msra.mxu0 0
        %2496 = vmatprep.subr.bf16.mxu0 0
        %2497 = vmatpush2.bf16.msra.mxu0 0
        %2498 = vmatprep.subr.bf16.mxu0 0
        %2499 = vmatpush2.bf16.msra.mxu0 0
        %2500 = vmatprep.subr.bf16.mxu0 0
        %2501 = vmatpush2.bf16.msra.mxu0 0
        %2502 = vmatprep.mubr.bf16.mxu0 0
        %2503 = vmatmul.mubr.bf16.gmra.mxu0 %v2468
        %v2504 = vpop.f32.mrf.mxu0
        %v2505 = vadd.f32 %v2441, %v2504
        %v2506 = vpop.f32.mrf.mxu0
        %v2507 = vpop.f32.mrf.mxu0
        %v2508 = vadd.f32 %v2441, %v2507
        %v2509 = vpop.f32.mrf.mxu0
        %2510 = vdwg.mxu0
        %v2511 = vadd.f32 %v2351, %v2505
        %v2512 = vadd.f32 %v2352, %v2508
        %s2513 = scalar_lea.vmem %s14, 1
        %v2514 = vld [vmem:[%s2513] sm:$0x1]
        %s2515 = scalar_lea.vmem %s15, 1
        %v2516 = vld [vmem:[%s2515] sm:$0x1]
        %v2517 = vsel %vm782, %v2511, 0.0
        %2518 = vadd.xlane.f32.xlu0 %v2517
        %v2519 = vpop.xlane.xlu0 %2518
        %v2520 = vsel %vm782, %v2512, 0.0
        %2521 = vadd.xlane.f32.xlu0 %v2520
        %v2522 = vpop.xlane.xlu0 %2521
        %v2523 = vmul.f32 %v2519, %v1422
        %v2524 = vmul.f32 %v2522, %v1422
        %v2525 = vsub.f32 %v2511, %v2523
        %v2526 = vsub.f32 %v2512, %v2524
        %v2527 = vmul.f32 %v2525, %v2525
        %v2528 = vmul.f32 %v2526, %v2526
        %v2529 = vsel %vm782, %v2527, 0.0
        %2530 = vadd.xlane.f32.xlu0 %v2529
        %v2531 = vpop.xlane.xlu0 %2530
        %v2532 = vsel %vm782, %v2528, 0.0
        %2533 = vadd.xlane.f32.xlu0 %v2532
        %v2534 = vpop.xlane.xlu0 %2533
        %v2535 = vmul.f32 %v2531, %v1422
        %v2536 = vmul.f32 %v2534, %v1422
        %v2537 = vadd.f32 %v2535, 1e-05
        %v2538 = vadd.f32 %v2536, 1e-05
        %v2539 = vrsqrt.pop %v2537
        %v2540 = vrsqrt.pop %v2538
        %v2541 = vmul.f32 %v2525, %v2539
        %v2542 = vmul.f32 %v2526, %v2540
        %v2544 = vlaneseq
        %v2545 = vshrl.u32 %v2544, 7
        %v2546 = vsub.s32 0, %v2545
        %v2547 = vrot.slane %v2514, %v2546
        %v2549 = vmul.f32 %v2541, %v2547
        %v2550 = vmul.f32 %v2542, %v2547
        %v2552 = vlaneseq
        %v2553 = vshrl.u32 %v2552, 7
        %v2554 = vsub.s32 0, %v2553
        %v2555 = vrot.slane %v2516, %v2554
        %v2557 = vadd.f32 %v2549, %v2555
        %v2558 = vadd.f32 %v2550, %v2555
        %v2559 = vpack.c.bf16 %v759, %v759
        %s2560 = scalar_lea.vmem %s6, 32
        %v2561 = vld [vmem:[%s2560] sm:$0xf]
        %v2562 = vld [vmem:[%s2560 + $0x4] sm:$0xf]
        %v2563 = vld [vmem:[%s2560 + $0x8] sm:$0xf]
        %v2564 = vld [vmem:[%s2560 + $0xc] sm:$0xf]
        %v2569 = vunpack.c.l.b16 %v2561
        %v2570 = vunpack.c.l.b16 %v2562
        %v2571 = vunpack.c.l.b16 %v2563
        %v2572 = vunpack.c.l.b16 %v2564
        %v2573 = vpack.c.b16 %v2570, %v2569
        %v2574 = vpack.c.b16 %v2572, %v2571
        %v2578 = vsel %vm782, %v2559, 0
        %2580 = vmatprep.subr.bf16.mxu0 0
        %2581 = vmatpush1.bf16.msra.mxu0 0
        %2582 = vmatprep.subr.bf16.mxu0 0
        %2583 = vmatpush1.bf16.msra.mxu0 0
        %2584 = vmatprep.subr.bf16.mxu0 0
        %2585 = vmatpush1.bf16.msra.mxu0 0
        %2586 = vmatprep.subr.bf16.mxu0 0
        %2587 = vmatpush1.bf16.msra.mxu0 0
        %2588 = vmatprep.subr.bf16.mxu0 0
        %2589 = vmatpush1.bf16.msra.mxu0 0
        %2590 = vmatprep.subr.bf16.mxu0 0
        %2591 = vmatpush1.bf16.msra.mxu0 0
        %2592 = vmatprep.subr.bf16.mxu0 0
        %2593 = vmatpush1.bf16.msra.mxu0 %v2574
        %2594 = vmatprep.subr.bf16.mxu0 0
        %2595 = vmatpush1.bf16.msra.mxu0 %v2573
        %2596 = vmatprep.subr.bf16.mxu0 0
        %2597 = vmatpush2.bf16.msra.mxu0 0
        %2598 = vmatprep.subr.bf16.mxu0 0
        %2599 = vmatpush2.bf16.msra.mxu0 0
        %2600 = vmatprep.subr.bf16.mxu0 0
        %2601 = vmatpush2.bf16.msra.mxu0 0
        %2602 = vmatprep.subr.bf16.mxu0 0
        %2603 = vmatpush2.bf16.msra.mxu0 0
        %2604 = vmatprep.subr.bf16.mxu0 0
        %2605 = vmatpush2.bf16.msra.mxu0 0
        %2606 = vmatprep.subr.bf16.mxu0 0
        %2607 = vmatpush2.bf16.msra.mxu0 0
        %2608 = vmatprep.subr.bf16.mxu0 0
        %2609 = vmatpush2.bf16.msra.mxu0 0
        %2610 = vmatprep.subr.bf16.mxu0 0
        %2611 = vmatpush2.bf16.msra.mxu0 0
        %2612 = vmatprep.mubr.bf16.mxu0 0
        %2613 = vmatmul.mubr.bf16.gmra.mxu0 %v2578
        %v2614 = vpop.f32.mrf.mxu0
        %v2615 = vadd.f32 0.0, %v2614
        %v2616 = vpop.f32.mrf.mxu0
        %v2617 = vpop.f32.mrf.mxu0
        %v2618 = vpop.f32.mrf.mxu0
        %2619 = vdwg.mxu0
        %v2620 = vpack.c.bf16 %v2615, %v2615
        %2622 = vrot.lane.b32.xlu0 %v2620, 96
        %v2623 = vpop.permute.xlu0 %2622
        %v2625 = vsel %vm630, %v2620, 0
        %v2628 = vsel %vm630, %v2623, 0
        %2630 = vmatprep.subr.bf16.mxu0 0
        %2631 = vmatpush1.bf16.xpose.msra.mxu0 0
        %2632 = vmatprep.subr.bf16.mxu0 0
        %2633 = vmatpush1.bf16.xpose.msra.mxu0 0
        %2634 = vmatprep.subr.bf16.mxu0 0
        %2635 = vmatpush1.bf16.xpose.msra.mxu0 0
        %2636 = vmatprep.subr.bf16.mxu0 0
        %2637 = vmatpush1.bf16.xpose.msra.mxu0 0
        %2638 = vmatprep.subr.bf16.mxu0 0
        %2639 = vmatpush1.bf16.xpose.msra.mxu0 0
        %2640 = vmatprep.subr.bf16.mxu0 0
        %2641 = vmatpush1.bf16.xpose.msra.mxu0 0
        %2642 = vmatprep.subr.bf16.mxu0 0
        %2643 = vmatpush1.bf16.xpose.msra.mxu0 0
        %2644 = vmatprep.subr.bf16.mxu0 0
        %2645 = vmatpush1.bf16.xpose.msra.mxu0 %v2628
        %2646 = vmatprep.subr.bf16.mxu0 0
        %2647 = vmatpush2.bf16.xpose.msra.mxu0 0
        %2648 = vmatprep.subr.bf16.mxu0 0
        %2649 = vmatpush2.bf16.xpose.msra.mxu0 0
        %2650 = vmatprep.subr.bf16.mxu0 0
        %2651 = vmatpush2.bf16.xpose.msra.mxu0 0
        %2652 = vmatprep.subr.bf16.mxu0 0
        %2653 = vmatpush2.bf16.xpose.msra.mxu0 0
        %2654 = vmatprep.subr.bf16.mxu0 0
        %2655 = vmatpush2.bf16.xpose.msra.mxu0 0
        %2656 = vmatprep.subr.bf16.mxu0 0
        %2657 = vmatpush2.bf16.xpose.msra.mxu0 0
        %2658 = vmatprep.subr.bf16.mxu0 0
        %2659 = vmatpush2.bf16.xpose.msra.mxu0 0
        %2660 = vmatprep.subr.bf16.mxu0 0
        %2661 = vmatpush2.bf16.xpose.msra.mxu0 0
        %2662 = vmatprep.mubr.bf16.mxu0 0
        %2663 = vmatmul.mubr.bf16.gmra.mxu0 %v2625
        %v2664 = vpop.f32.mrf.mxu0
        %v2665 = vadd.f32 0.0, %v2664
        %v2666 = vpop.f32.mrf.mxu0
        %v2667 = vpop.f32.mrf.mxu0
        %v2668 = vpop.f32.mrf.mxu0
        %2669 = vdwg.mxu0
        %v2670 = vmul.f32 %v2665, 0.35355338
        %v2672 = vlaneseq
        %v2673 = vshrl.u32 %v2672, 7
        %v2674 = vsub.s32 0, %v2673
        %v2675 = vrot.slane %v764, %v2674
        %v2677 = vadd.f32 %v2670, %v2675
        %vm2678 = vcmask 18432
        %v2679 = vsel %vm2678, %v2677, -inf
        %2680 = vmax.xlane.f32.xlu0 %v2679
        %v2681 = vpop.xlane.xlu0 %2680
        %v2682 = vsub.f32 %v2677, %v2681
        %v2683 = vmul.f32 %v2682, 1.442695
        %v2684 = vpow.pop %v2683
        %v2685 = vsel %vm2678, %v2684, 0.0
        %2686 = vadd.xlane.f32.xlu0 %v2685
        %v2687 = vpop.xlane.xlu0 %2686
        %v2688 = vrcp.pop %v2687
        %v2689 = vmul.f32 %v2684, %v2688
        %v2690 = vpack.c.bf16 %v2689, %v2689
        %2691 = vrot.lane.b32.xlu0 %v2620, 64
        %v2692 = vpop.permute.xlu0 %2691
        %vm2693 = vcmask 23552
        %v2695 = vsel %vm2693, %v2690, 0
        %vm2697 = vcmask 1040384
        %vm2698 = vcmask 1041408
        %v2699 = vsel %vm2697, 4294967295, 65535
        %v2700 = vsel %vm2698, %v2699, 0
        %v2702 = vand.u32 %v2692, %v2700
        %2704 = vmatprep.subr.bf16.mxu0 0
        %2705 = vmatpush1.bf16.msra.mxu0 0
        %2706 = vmatprep.subr.bf16.mxu0 0
        %2707 = vmatpush1.bf16.msra.mxu0 0
        %2708 = vmatprep.subr.bf16.mxu0 0
        %2709 = vmatpush1.bf16.msra.mxu0 0
        %2710 = vmatprep.subr.bf16.mxu0 0
        %2711 = vmatpush1.bf16.msra.mxu0 0
        %2712 = vmatprep.subr.bf16.mxu0 0
        %2713 = vmatpush1.bf16.msra.mxu0 0
        %2714 = vmatprep.subr.bf16.mxu0 0
        %2715 = vmatpush1.bf16.msra.mxu0 0
        %2716 = vmatprep.subr.bf16.mxu0 0
        %2717 = vmatpush1.bf16.msra.mxu0 0
        %2718 = vmatprep.subr.bf16.mxu0 0
        %2719 = vmatpush1.bf16.msra.mxu0 %v2702
        %2720 = vmatprep.subr.bf16.mxu0 0
        %2721 = vmatpush2.bf16.msra.mxu0 0
        %2722 = vmatprep.subr.bf16.mxu0 0
        %2723 = vmatpush2.bf16.msra.mxu0 0
        %2724 = vmatprep.subr.bf16.mxu0 0
        %2725 = vmatpush2.bf16.msra.mxu0 0
        %2726 = vmatprep.subr.bf16.mxu0 0
        %2727 = vmatpush2.bf16.msra.mxu0 0
        %2728 = vmatprep.subr.bf16.mxu0 0
        %2729 = vmatpush2.bf16.msra.mxu0 0
        %2730 = vmatprep.subr.bf16.mxu0 0
        %2731 = vmatpush2.bf16.msra.mxu0 0
        %2732 = vmatprep.subr.bf16.mxu0 0
        %2733 = vmatpush2.bf16.msra.mxu0 0
        %2734 = vmatprep.subr.bf16.mxu0 0
        %2735 = vmatpush2.bf16.msra.mxu0 0
        %2736 = vmatprep.mubr.bf16.mxu0 0
        %2737 = vmatmul.mubr.bf16.gmra.mxu0 %v2695
        %v2738 = vpop.f32.mrf.mxu0
        %v2739 = vadd.f32 0.0, %v2738
        %v2740 = vpop.f32.mrf.mxu0
        %v2741 = vpop.f32.mrf.mxu0
        %v2742 = vpop.f32.mrf.mxu0
        %2743 = vdwg.mxu0
        %2744 = vrot.lane.b32.xlu0 %v2620, 120
        %v2745 = vpop.permute.xlu0 %2744
        %2746 = vrot.lane.b32.xlu0 %v2620, 88
        %v2747 = vpop.permute.xlu0 %2746
        %v2749 = vsel %vm630, %v2745, 0
        %v2752 = vsel %vm630, %v2747, 0
        %2754 = vmatprep.subr.bf16.mxu0 0
        %2755 = vmatpush1.bf16.xpose.msra.mxu0 0
        %2756 = vmatprep.subr.bf16.mxu0 0
        %2757 = vmatpush1.bf16.xpose.msra.mxu0 0
        %2758 = vmatprep.subr.bf16.mxu0 0
        %2759 = vmatpush1.bf16.xpose.msra.mxu0 0
        %2760 = vmatprep.subr.bf16.mxu0 0
        %2761 = vmatpush1.bf16.xpose.msra.mxu0 0
        %2762 = vmatprep.subr.bf16.mxu0 0
        %2763 = vmatpush1.bf16.xpose.msra.mxu0 0
        %2764 = vmatprep.subr.bf16.mxu0 0
        %2765 = vmatpush1.bf16.xpose.msra.mxu0 0
        %2766 = vmatprep.subr.bf16.mxu0 0
        %2767 = vmatpush1.bf16.xpose.msra.mxu0 0
        %2768 = vmatprep.subr.bf16.mxu0 0
        %2769 = vmatpush1.bf16.xpose.msra.mxu0 %v2752
        %2770 = vmatprep.subr.bf16.mxu0 0
        %2771 = vmatpush2.bf16.xpose.msra.mxu0 0
        %2772 = vmatprep.subr.bf16.mxu0 0
        %2773 = vmatpush2.bf16.xpose.msra.mxu0 0
        %2774 = vmatprep.subr.bf16.mxu0 0
        %2775 = vmatpush2.bf16.xpose.msra.mxu0 0
        %2776 = vmatprep.subr.bf16.mxu0 0
        %2777 = vmatpush2.bf16.xpose.msra.mxu0 0
        %2778 = vmatprep.subr.bf16.mxu0 0
        %2779 = vmatpush2.bf16.xpose.msra.mxu0 0
        %2780 = vmatprep.subr.bf16.mxu0 0
        %2781 = vmatpush2.bf16.xpose.msra.mxu0 0
        %2782 = vmatprep.subr.bf16.mxu0 0
        %2783 = vmatpush2.bf16.xpose.msra.mxu0 0
        %2784 = vmatprep.subr.bf16.mxu0 0
        %2785 = vmatpush2.bf16.xpose.msra.mxu0 0
        %2786 = vmatprep.mubr.bf16.mxu0 0
        %2787 = vmatmul.mubr.bf16.gmra.mxu0 %v2749
        %v2788 = vpop.f32.mrf.mxu0
        %v2789 = vadd.f32 0.0, %v2788
        %v2790 = vpop.f32.mrf.mxu0
        %v2791 = vpop.f32.mrf.mxu0
        %v2792 = vpop.f32.mrf.mxu0
        %2793 = vdwg.mxu0
        %v2794 = vmul.f32 %v2789, 0.35355338
        %v2795 = vadd.f32 %v2794, %v2675
        %v2796 = vsel %vm2678, %v2795, -inf
        %2797 = vmax.xlane.f32.xlu0 %v2796
        %v2798 = vpop.xlane.xlu0 %2797
        %v2799 = vsub.f32 %v2795, %v2798
        %v2800 = vmul.f32 %v2799, 1.442695
        %v2801 = vpow.pop %v2800
        %v2802 = vsel %vm2678, %v2801, 0.0
        %2803 = vadd.xlane.f32.xlu0 %v2802
        %v2804 = vpop.xlane.xlu0 %2803
        %v2805 = vrcp.pop %v2804
        %v2806 = vmul.f32 %v2801, %v2805
        %v2807 = vpack.c.bf16 %v2806, %v2806
        %2808 = vrot.lane.b32.xlu0 %v2620, 56
        %v2809 = vpop.permute.xlu0 %2808
        %v2811 = vsel %vm2693, %v2807, 0
        %v2814 = vand.u32 %v2809, %v2700
        %2816 = vmatprep.subr.bf16.mxu0 0
        %2817 = vmatpush1.bf16.msra.mxu0 0
        %2818 = vmatprep.subr.bf16.mxu0 0
        %2819 = vmatpush1.bf16.msra.mxu0 0
        %2820 = vmatprep.subr.bf16.mxu0 0
        %2821 = vmatpush1.bf16.msra.mxu0 0
        %2822 = vmatprep.subr.bf16.mxu0 0
        %2823 = vmatpush1.bf16.msra.mxu0 0
        %2824 = vmatprep.subr.bf16.mxu0 0
        %2825 = vmatpush1.bf16.msra.mxu0 0
        %2826 = vmatprep.subr.bf16.mxu0 0
        %2827 = vmatpush1.bf16.msra.mxu0 0
        %2828 = vmatprep.subr.bf16.mxu0 0
        %2829 = vmatpush1.bf16.msra.mxu0 0
        %2830 = vmatprep.subr.bf16.mxu0 0
        %2831 = vmatpush1.bf16.msra.mxu0 %v2814
        %2832 = vmatprep.subr.bf16.mxu0 0
        %2833 = vmatpush2.bf16.msra.mxu0 0
        %2834 = vmatprep.subr.bf16.mxu0 0
        %2835 = vmatpush2.bf16.msra.mxu0 0
        %2836 = vmatprep.subr.bf16.mxu0 0
        %2837 = vmatpush2.bf16.msra.mxu0 0
        %2838 = vmatprep.subr.bf16.mxu0 0
        %2839 = vmatpush2.bf16.msra.mxu0 0
        %2840 = vmatprep.subr.bf16.mxu0 0
        %2841 = vmatpush2.bf16.msra.mxu0 0
        %2842 = vmatprep.subr.bf16.mxu0 0
        %2843 = vmatpush2.bf16.msra.mxu0 0
        %2844 = vmatprep.subr.bf16.mxu0 0
        %2845 = vmatpush2.bf16.msra.mxu0 0
        %2846 = vmatprep.subr.bf16.mxu0 0
        %2847 = vmatpush2.bf16.msra.mxu0 0
        %2848 = vmatprep.mubr.bf16.mxu0 0
        %2849 = vmatmul.mubr.bf16.gmra.mxu0 %v2811
        %v2850 = vpop.f32.mrf.mxu0
        %v2851 = vadd.f32 0.0, %v2850
        %v2852 = vpop.f32.mrf.mxu0
        %v2853 = vpop.f32.mrf.mxu0
        %v2854 = vpop.f32.mrf.mxu0
        %2855 = vdwg.mxu0
        %2856 = vrot.lane.b32.xlu0 %v2620, 112
        %v2857 = vpop.permute.xlu0 %2856
        %2858 = vrot.lane.b32.xlu0 %v2620, 80
        %v2859 = vpop.permute.xlu0 %2858
        %v2861 = vsel %vm630, %v2857, 0
        %v2864 = vsel %vm630, %v2859, 0
        %2866 = vmatprep.subr.bf16.mxu0 0
        %2867 = vmatpush1.bf16.xpose.msra.mxu0 0
        %2868 = vmatprep.subr.bf16.mxu0 0
        %2869 = vmatpush1.bf16.xpose.msra.mxu0 0
        %2870 = vmatprep.subr.bf16.mxu0 0
        %2871 = vmatpush1.bf16.xpose.msra.mxu0 0
        %2872 = vmatprep.subr.bf16.mxu0 0
        %2873 = vmatpush1.bf16.xpose.msra.mxu0 0
        %2874 = vmatprep.subr.bf16.mxu0 0
        %2875 = vmatpush1.bf16.xpose.msra.mxu0 0
        %2876 = vmatprep.subr.bf16.mxu0 0
        %2877 = vmatpush1.bf16.xpose.msra.mxu0 0
        %2878 = vmatprep.subr.bf16.mxu0 0
        %2879 = vmatpush1.bf16.xpose.msra.mxu0 0
        %2880 = vmatprep.subr.bf16.mxu0 0
        %2881 = vmatpush1.bf16.xpose.msra.mxu0 %v2864
        %2882 = vmatprep.subr.bf16.mxu0 0
        %2883 = vmatpush2.bf16.xpose.msra.mxu0 0
        %2884 = vmatprep.subr.bf16.mxu0 0
        %2885 = vmatpush2.bf16.xpose.msra.mxu0 0
        %2886 = vmatprep.subr.bf16.mxu0 0
        %2887 = vmatpush2.bf16.xpose.msra.mxu0 0
        %2888 = vmatprep.subr.bf16.mxu0 0
        %2889 = vmatpush2.bf16.xpose.msra.mxu0 0
        %2890 = vmatprep.subr.bf16.mxu0 0
        %2891 = vmatpush2.bf16.xpose.msra.mxu0 0
        %2892 = vmatprep.subr.bf16.mxu0 0
        %2893 = vmatpush2.bf16.xpose.msra.mxu0 0
        %2894 = vmatprep.subr.bf16.mxu0 0
        %2895 = vmatpush2.bf16.xpose.msra.mxu0 0
        %2896 = vmatprep.subr.bf16.mxu0 0
        %2897 = vmatpush2.bf16.xpose.msra.mxu0 0
        %2898 = vmatprep.mubr.bf16.mxu0 0
        %2899 = vmatmul.mubr.bf16.gmra.mxu0 %v2861
        %v2900 = vpop.f32.mrf.mxu0
        %v2901 = vadd.f32 0.0, %v2900
        %v2902 = vpop.f32.mrf.mxu0
        %v2903 = vpop.f32.mrf.mxu0
        %v2904 = vpop.f32.mrf.mxu0
        %2905 = vdwg.mxu0
        %v2906 = vmul.f32 %v2901, 0.35355338
        %v2907 = vadd.f32 %v2906, %v2675
        %v2908 = vsel %vm2678, %v2907, -inf
        %2909 = vmax.xlane.f32.xlu0 %v2908
        %v2910 = vpop.xlane.xlu0 %2909
        %v2911 = vsub.f32 %v2907, %v2910
        %v2912 = vmul.f32 %v2911, 1.442695
        %v2913 = vpow.pop %v2912
        %v2914 = vsel %vm2678, %v2913, 0.0
        %2915 = vadd.xlane.f32.xlu0 %v2914
        %v2916 = vpop.xlane.xlu0 %2915
        %v2917 = vrcp.pop %v2916
        %v2918 = vmul.f32 %v2913, %v2917
        %v2919 = vpack.c.bf16 %v2918, %v2918
        %2920 = vrot.lane.b32.xlu0 %v2620, 48
        %v2921 = vpop.permute.xlu0 %2920
        %v2923 = vsel %vm2693, %v2919, 0
        %v2926 = vand.u32 %v2921, %v2700
        %2928 = vmatprep.subr.bf16.mxu0 0
        %2929 = vmatpush1.bf16.msra.mxu0 0
        %2930 = vmatprep.subr.bf16.mxu0 0
        %2931 = vmatpush1.bf16.msra.mxu0 0
        %2932 = vmatprep.subr.bf16.mxu0 0
        %2933 = vmatpush1.bf16.msra.mxu0 0
        %2934 = vmatprep.subr.bf16.mxu0 0
        %2935 = vmatpush1.bf16.msra.mxu0 0
        %2936 = vmatprep.subr.bf16.mxu0 0
        %2937 = vmatpush1.bf16.msra.mxu0 0
        %2938 = vmatprep.subr.bf16.mxu0 0
        %2939 = vmatpush1.bf16.msra.mxu0 0
        %2940 = vmatprep.subr.bf16.mxu0 0
        %2941 = vmatpush1.bf16.msra.mxu0 0
        %2942 = vmatprep.subr.bf16.mxu0 0
        %2943 = vmatpush1.bf16.msra.mxu0 %v2926
        %2944 = vmatprep.subr.bf16.mxu0 0
        %2945 = vmatpush2.bf16.msra.mxu0 0
        %2946 = vmatprep.subr.bf16.mxu0 0
        %2947 = vmatpush2.bf16.msra.mxu0 0
        %2948 = vmatprep.subr.bf16.mxu0 0
        %2949 = vmatpush2.bf16.msra.mxu0 0
        %2950 = vmatprep.subr.bf16.mxu0 0
        %2951 = vmatpush2.bf16.msra.mxu0 0
        %2952 = vmatprep.subr.bf16.mxu0 0
        %2953 = vmatpush2.bf16.msra.mxu0 0
        %2954 = vmatprep.subr.bf16.mxu0 0
        %2955 = vmatpush2.bf16.msra.mxu0 0
        %2956 = vmatprep.subr.bf16.mxu0 0
        %2957 = vmatpush2.bf16.msra.mxu0 0
        %2958 = vmatprep.subr.bf16.mxu0 0
        %2959 = vmatpush2.bf16.msra.mxu0 0
        %2960 = vmatprep.mubr.bf16.mxu0 0
        %2961 = vmatmul.mubr.bf16.gmra.mxu0 %v2923
        %v2962 = vpop.f32.mrf.mxu0
        %v2963 = vadd.f32 0.0, %v2962
        %v2964 = vpop.f32.mrf.mxu0
        %v2965 = vpop.f32.mrf.mxu0
        %v2966 = vpop.f32.mrf.mxu0
        %2967 = vdwg.mxu0
        %2968 = vrot.lane.b32.xlu0 %v2620, 104
        %v2969 = vpop.permute.xlu0 %2968
        %2970 = vrot.lane.b32.xlu0 %v2620, 72
        %v2971 = vpop.permute.xlu0 %2970
        %v2973 = vsel %vm630, %v2969, 0
        %v2976 = vsel %vm630, %v2971, 0
        %2978 = vmatprep.subr.bf16.mxu0 0
        %2979 = vmatpush1.bf16.xpose.msra.mxu0 0
        %2980 = vmatprep.subr.bf16.mxu0 0
        %2981 = vmatpush1.bf16.xpose.msra.mxu0 0
        %2982 = vmatprep.subr.bf16.mxu0 0
        %2983 = vmatpush1.bf16.xpose.msra.mxu0 0
        %2984 = vmatprep.subr.bf16.mxu0 0
        %2985 = vmatpush1.bf16.xpose.msra.mxu0 0
        %2986 = vmatprep.subr.bf16.mxu0 0
        %2987 = vmatpush1.bf16.xpose.msra.mxu0 0
        %2988 = vmatprep.subr.bf16.mxu0 0
        %2989 = vmatpush1.bf16.xpose.msra.mxu0 0
        %2990 = vmatprep.subr.bf16.mxu0 0
        %2991 = vmatpush1.bf16.xpose.msra.mxu0 0
        %2992 = vmatprep.subr.bf16.mxu0 0
        %2993 = vmatpush1.bf16.xpose.msra.mxu0 %v2976
        %2994 = vmatprep.subr.bf16.mxu0 0
        %2995 = vmatpush2.bf16.xpose.msra.mxu0 0
        %2996 = vmatprep.subr.bf16.mxu0 0
        %2997 = vmatpush2.bf16.xpose.msra.mxu0 0
        %2998 = vmatprep.subr.bf16.mxu0 0
        %2999 = vmatpush2.bf16.xpose.msra.mxu0 0
        %3000 = vmatprep.subr.bf16.mxu0 0
        %3001 = vmatpush2.bf16.xpose.msra.mxu0 0
        %3002 = vmatprep.subr.bf16.mxu0 0
        %3003 = vmatpush2.bf16.xpose.msra.mxu0 0
        %3004 = vmatprep.subr.bf16.mxu0 0
        %3005 = vmatpush2.bf16.xpose.msra.mxu0 0
        %3006 = vmatprep.subr.bf16.mxu0 0
        %3007 = vmatpush2.bf16.xpose.msra.mxu0 0
        %3008 = vmatprep.subr.bf16.mxu0 0
        %3009 = vmatpush2.bf16.xpose.msra.mxu0 0
        %3010 = vmatprep.mubr.bf16.mxu0 0
        %3011 = vmatmul.mubr.bf16.gmra.mxu0 %v2973
        %v3012 = vpop.f32.mrf.mxu0
        %v3013 = vadd.f32 0.0, %v3012
        %v3014 = vpop.f32.mrf.mxu0
        %v3015 = vpop.f32.mrf.mxu0
        %v3016 = vpop.f32.mrf.mxu0
        %3017 = vdwg.mxu0
        %v3018 = vmul.f32 %v3013, 0.35355338
        %v3019 = vadd.f32 %v3018, %v2675
        %v3020 = vsel %vm2678, %v3019, -inf
        %3021 = vmax.xlane.f32.xlu0 %v3020
        %v3022 = vpop.xlane.xlu0 %3021
        %v3023 = vsub.f32 %v3019, %v3022
        %v3024 = vmul.f32 %v3023, 1.442695
        %v3025 = vpow.pop %v3024
        %v3026 = vsel %vm2678, %v3025, 0.0
        %3027 = vadd.xlane.f32.xlu0 %v3026
        %v3028 = vpop.xlane.xlu0 %3027
        %v3029 = vrcp.pop %v3028
        %v3030 = vmul.f32 %v3025, %v3029
        %v3031 = vpack.c.bf16 %v3030, %v3030
        %3032 = vrot.lane.b32.xlu0 %v2620, 40
        %v3033 = vpop.permute.xlu0 %3032
        %v3035 = vsel %vm2693, %v3031, 0
        %v3038 = vand.u32 %v3033, %v2700
        %3040 = vmatprep.subr.bf16.mxu0 0
        %3041 = vmatpush1.bf16.msra.mxu0 0
        %3042 = vmatprep.subr.bf16.mxu0 0
        %3043 = vmatpush1.bf16.msra.mxu0 0
        %3044 = vmatprep.subr.bf16.mxu0 0
        %3045 = vmatpush1.bf16.msra.mxu0 0
        %3046 = vmatprep.subr.bf16.mxu0 0
        %3047 = vmatpush1.bf16.msra.mxu0 0
        %3048 = vmatprep.subr.bf16.mxu0 0
        %3049 = vmatpush1.bf16.msra.mxu0 0
        %3050 = vmatprep.subr.bf16.mxu0 0
        %3051 = vmatpush1.bf16.msra.mxu0 0
        %3052 = vmatprep.subr.bf16.mxu0 0
        %3053 = vmatpush1.bf16.msra.mxu0 0
        %3054 = vmatprep.subr.bf16.mxu0 0
        %3055 = vmatpush1.bf16.msra.mxu0 %v3038
        %3056 = vmatprep.subr.bf16.mxu0 0
        %3057 = vmatpush2.bf16.msra.mxu0 0
        %3058 = vmatprep.subr.bf16.mxu0 0
        %3059 = vmatpush2.bf16.msra.mxu0 0
        %3060 = vmatprep.subr.bf16.mxu0 0
        %3061 = vmatpush2.bf16.msra.mxu0 0
        %3062 = vmatprep.subr.bf16.mxu0 0
        %3063 = vmatpush2.bf16.msra.mxu0 0
        %3064 = vmatprep.subr.bf16.mxu0 0
        %3065 = vmatpush2.bf16.msra.mxu0 0
        %3066 = vmatprep.subr.bf16.mxu0 0
        %3067 = vmatpush2.bf16.msra.mxu0 0
        %3068 = vmatprep.subr.bf16.mxu0 0
        %3069 = vmatpush2.bf16.msra.mxu0 0
        %3070 = vmatprep.subr.bf16.mxu0 0
        %3071 = vmatpush2.bf16.msra.mxu0 0
        %3072 = vmatprep.mubr.bf16.mxu0 0
        %3073 = vmatmul.mubr.bf16.gmra.mxu0 %v3035
        %v3074 = vpop.f32.mrf.mxu0
        %v3075 = vadd.f32 0.0, %v3074
        %v3076 = vpop.f32.mrf.mxu0
        %v3077 = vpop.f32.mrf.mxu0
        %v3078 = vpop.f32.mrf.mxu0
        %3079 = vdwg.mxu0
        %3081 = vrot.lane.b32.xlu0 %v2851, 8
        %v3082 = vpop.permute.xlu0 %3081
        %3085 = vrot.lane.b32.xlu0 %v2963, 16
        %v3086 = vpop.permute.xlu0 %3085
        %3089 = vrot.lane.b32.xlu0 %v3075, 24
        %v3090 = vpop.permute.xlu0 %3089
        %v3092 = vsel %vm630, %v2739, %v3082
        %v3093 = vsel %vm880, %v3092, %v3086
        %v3094 = vsel %vm1348, %v3093, %v3090
        %v3095 = vpack.c.bf16 %v3094, %v3094
        %s3096 = scalar_lea.vmem %s7, 32
        %v3097 = vld [vmem:[%s3096] sm:$0xf]
        %v3098 = vld [vmem:[%s3096 + $0x4] sm:$0xf]
        %v3099 = vld [vmem:[%s3096 + $0x8] sm:$0xf]
        %v3100 = vld [vmem:[%s3096 + $0xc] sm:$0xf]
        %v3105 = vunpack.c.l.b16 %v3097
        %v3106 = vunpack.c.l.b16 %v3098
        %v3107 = vunpack.c.l.b16 %v3099
        %v3108 = vunpack.c.l.b16 %v3100
        %v3109 = vpack.c.b16 %v3106, %v3105
        %v3110 = vpack.c.b16 %v3108, %v3107
        %v3114 = vsel %vm782, %v3095, 0
        %3116 = vmatprep.subr.bf16.mxu0 0
        %3117 = vmatpush1.bf16.msra.mxu0 0
        %3118 = vmatprep.subr.bf16.mxu0 0
        %3119 = vmatpush1.bf16.msra.mxu0 0
        %3120 = vmatprep.subr.bf16.mxu0 0
        %3121 = vmatpush1.bf16.msra.mxu0 0
        %3122 = vmatprep.subr.bf16.mxu0 0
        %3123 = vmatpush1.bf16.msra.mxu0 0
        %3124 = vmatprep.subr.bf16.mxu0 0
        %3125 = vmatpush1.bf16.msra.mxu0 0
        %3126 = vmatprep.subr.bf16.mxu0 0
        %3127 = vmatpush1.bf16.msra.mxu0 0
        %3128 = vmatprep.subr.bf16.mxu0 0
        %3129 = vmatpush1.bf16.msra.mxu0 %v3110
        %3130 = vmatprep.subr.bf16.mxu0 0
        %3131 = vmatpush1.bf16.msra.mxu0 %v3109
        %3132 = vmatprep.subr.bf16.mxu0 0
        %3133 = vmatpush2.bf16.msra.mxu0 0
        %3134 = vmatprep.subr.bf16.mxu0 0
        %3135 = vmatpush2.bf16.msra.mxu0 0
        %3136 = vmatprep.subr.bf16.mxu0 0
        %3137 = vmatpush2.bf16.msra.mxu0 0
        %3138 = vmatprep.subr.bf16.mxu0 0
        %3139 = vmatpush2.bf16.msra.mxu0 0
        %3140 = vmatprep.subr.bf16.mxu0 0
        %3141 = vmatpush2.bf16.msra.mxu0 0
        %3142 = vmatprep.subr.bf16.mxu0 0
        %3143 = vmatpush2.bf16.msra.mxu0 0
        %3144 = vmatprep.subr.bf16.mxu0 0
        %3145 = vmatpush2.bf16.msra.mxu0 0
        %3146 = vmatprep.subr.bf16.mxu0 0
        %3147 = vmatpush2.bf16.msra.mxu0 0
        %3148 = vmatprep.mubr.bf16.mxu0 0
        %3149 = vmatmul.mubr.bf16.gmra.mxu0 %v3114
        %v3150 = vpop.f32.mrf.mxu0
        %v3151 = vadd.f32 0.0, %v3150
        %v3152 = vpop.f32.mrf.mxu0
        %v3153 = vpop.f32.mrf.mxu0
        %v3154 = vpop.f32.mrf.mxu0
        %3155 = vdwg.mxu0
        %v3156 = vadd.f32 %v759, %v3151
        %s3157 = scalar_lea.vmem %s8, 2
        %v3158 = vld [vmem:[%s3157] sm:$0x1]
        %s3159 = scalar_lea.vmem %s9, 2
        %v3160 = vld [vmem:[%s3159] sm:$0x1]
        %vm3161 = vcmask 256000
        %v3162 = vsel %vm3161, %v3156, 0.0
        %3163 = vadd.xlane.f32.xlu0 %v3162
        %v3164 = vpop.xlane.xlu0 %3163
        %v3165 = vmul.f32 %v3164, %v1422
        %v3166 = vsub.f32 %v3156, %v3165
        %v3167 = vmul.f32 %v3166, %v3166
        %v3168 = vsel %vm3161, %v3167, 0.0
        %3169 = vadd.xlane.f32.xlu0 %v3168
        %v3170 = vpop.xlane.xlu0 %3169
        %v3171 = vmul.f32 %v3170, %v1422
        %v3172 = vadd.f32 %v3171, 1e-05
        %v3173 = vrsqrt.pop %v3172
        %v3174 = vmul.f32 %v3166, %v3173
        %v3176 = vlaneseq
        %v3177 = vshrl.u32 %v3176, 7
        %v3178 = vsub.s32 0, %v3177
        %v3179 = vrot.slane %v3158, %v3178
        %v3181 = vmul.f32 %v3174, %v3179
        %v3183 = vlaneseq
        %v3184 = vshrl.u32 %v3183, 7
        %v3185 = vsub.s32 0, %v3184
        %v3186 = vrot.slane %v3160, %v3185
        %v3188 = vadd.f32 %v3181, %v3186
        %v3189 = vpack.c.bf16 %v3188, %v3188
        %s3190 = scalar_lea.vmem %s10, 32
        %v3191 = vld [vmem:[%s3190] sm:$0xf]
        %v3192 = vld [vmem:[%s3190 + $0x4] sm:$0xf]
        %v3193 = vld [vmem:[%s3190 + $0x8] sm:$0xf]
        %v3194 = vld [vmem:[%s3190 + $0xc] sm:$0xf]
        %s3195 = scalar_lea.vmem %s11, 2
        %v3196 = vld [vmem:[%s3195] sm:$0x1]
        %v3198 = vlaneseq
        %v3199 = vshrl.u32 %v3198, 7
        %v3200 = vsub.s32 0, %v3199
        %v3201 = vrot.slane %v3196, %v3200
        %v3207 = vunpack.c.l.b16 %v3191
        %v3208 = vunpack.c.l.b16 %v3192
        %v3209 = vunpack.c.l.b16 %v3193
        %v3210 = vunpack.c.l.b16 %v3194
        %v3211 = vpack.c.b16 %v3208, %v3207
        %v3212 = vpack.c.b16 %v3210, %v3209
        %v3216 = vsel %vm782, %v3189, 0
        %3218 = vmatprep.subr.bf16.mxu0 0
        %3219 = vmatpush1.bf16.msra.mxu0 0
        %3220 = vmatprep.subr.bf16.mxu0 0
        %3221 = vmatpush1.bf16.msra.mxu0 0
        %3222 = vmatprep.subr.bf16.mxu0 0
        %3223 = vmatpush1.bf16.msra.mxu0 0
        %3224 = vmatprep.subr.bf16.mxu0 0
        %3225 = vmatpush1.bf16.msra.mxu0 0
        %3226 = vmatprep.subr.bf16.mxu0 0
        %3227 = vmatpush1.bf16.msra.mxu0 0
        %3228 = vmatprep.subr.bf16.mxu0 0
        %3229 = vmatpush1.bf16.msra.mxu0 0
        %3230 = vmatprep.subr.bf16.mxu0 0
        %3231 = vmatpush1.bf16.msra.mxu0 %v3212
        %3232 = vmatprep.subr.bf16.mxu0 0
        %3233 = vmatpush1.bf16.msra.mxu0 %v3211
        %3234 = vmatprep.subr.bf16.mxu0 0
        %3235 = vmatpush2.bf16.msra.mxu0 0
        %3236 = vmatprep.subr.bf16.mxu0 0
        %3237 = vmatpush2.bf16.msra.mxu0 0
        %3238 = vmatprep.subr.bf16.mxu0 0
        %3239 = vmatpush2.bf16.msra.mxu0 0
        %3240 = vmatprep.subr.bf16.mxu0 0
        %3241 = vmatpush2.bf16.msra.mxu0 0
        %3242 = vmatprep.subr.bf16.mxu0 0
        %3243 = vmatpush2.bf16.msra.mxu0 0
        %3244 = vmatprep.subr.bf16.mxu0 0
        %3245 = vmatpush2.bf16.msra.mxu0 0
        %3246 = vmatprep.subr.bf16.mxu0 0
        %3247 = vmatpush2.bf16.msra.mxu0 0
        %3248 = vmatprep.subr.bf16.mxu0 0
        %3249 = vmatpush2.bf16.msra.mxu0 0
        %3250 = vmatprep.mubr.bf16.mxu0 0
        %3251 = vmatmul.mubr.bf16.gmra.mxu0 %v3216
        %v3252 = vpop.f32.mrf.mxu0
        %v3253 = vadd.f32 %v3201, %v3252
        %v3254 = vpop.f32.mrf.mxu0
        %v3255 = vpop.f32.mrf.mxu0
        %v3256 = vpop.f32.mrf.mxu0
        %3257 = vdwg.mxu0
        %v3258 = vmax.f32 %v3253, 0.0
        %v3259 = vpack.c.bf16 %v3258, %v3258
        %s3260 = scalar_lea.vmem %s12, 64
        %v3261 = vld [vmem:[%s3260] sm:$0xf]
        %v3262 = vld [vmem:[%s3260 + $0x4] sm:$0xf]
        %v3263 = vld [vmem:[%s3260 + $0x8] sm:$0xf]
        %v3264 = vld [vmem:[%s3260 + $0xc] sm:$0xf]
        %v3265 = vld [vmem:[%s3260 + $0x10] sm:$0xf]
        %v3266 = vld [vmem:[%s3260 + $0x14] sm:$0xf]
        %v3267 = vld [vmem:[%s3260 + $0x18] sm:$0xf]
        %v3268 = vld [vmem:[%s3260 + $0x1c] sm:$0xf]
        %s3269 = scalar_lea.vmem %s13, 2
        %v3270 = vld [vmem:[%s3269] sm:$0x1]
        %v3272 = vlaneseq
        %v3273 = vshrl.u32 %v3272, 7
        %v3274 = vsub.s32 0, %v3273
        %v3275 = vrot.slane %v3270, %v3274
        %v3285 = vunpack.c.l.b16 %v3261
        %v3286 = vunpack.c.l.b16 %v3262
        %v3287 = vunpack.c.l.b16 %v3263
        %v3288 = vunpack.c.l.b16 %v3264
        %v3289 = vunpack.c.l.b16 %v3265
        %v3290 = vunpack.c.l.b16 %v3266
        %v3291 = vunpack.c.l.b16 %v3267
        %v3292 = vunpack.c.l.b16 %v3268
        %v3293 = vpack.c.b16 %v3286, %v3285
        %v3294 = vpack.c.b16 %v3288, %v3287
        %v3295 = vpack.c.b16 %v3290, %v3289
        %v3296 = vpack.c.b16 %v3292, %v3291
        %v3302 = vsel %vm720, %v3259, 0
        %3304 = vmatprep.subr.bf16.mxu0 0
        %3305 = vmatpush1.bf16.msra.mxu0 0
        %3306 = vmatprep.subr.bf16.mxu0 0
        %3307 = vmatpush1.bf16.msra.mxu0 0
        %3308 = vmatprep.subr.bf16.mxu0 0
        %3309 = vmatpush1.bf16.msra.mxu0 0
        %3310 = vmatprep.subr.bf16.mxu0 0
        %3311 = vmatpush1.bf16.msra.mxu0 0
        %3312 = vmatprep.subr.bf16.mxu0 0
        %3313 = vmatpush1.bf16.msra.mxu0 %v3296
        %3314 = vmatprep.subr.bf16.mxu0 0
        %3315 = vmatpush1.bf16.msra.mxu0 %v3295
        %3316 = vmatprep.subr.bf16.mxu0 0
        %3317 = vmatpush1.bf16.msra.mxu0 %v3294
        %3318 = vmatprep.subr.bf16.mxu0 0
        %3319 = vmatpush1.bf16.msra.mxu0 %v3293
        %3320 = vmatprep.subr.bf16.mxu0 0
        %3321 = vmatpush2.bf16.msra.mxu0 0
        %3322 = vmatprep.subr.bf16.mxu0 0
        %3323 = vmatpush2.bf16.msra.mxu0 0
        %3324 = vmatprep.subr.bf16.mxu0 0
        %3325 = vmatpush2.bf16.msra.mxu0 0
        %3326 = vmatprep.subr.bf16.mxu0 0
        %3327 = vmatpush2.bf16.msra.mxu0 0
        %3328 = vmatprep.subr.bf16.mxu0 0
        %3329 = vmatpush2.bf16.msra.mxu0 0
        %3330 = vmatprep.subr.bf16.mxu0 0
        %3331 = vmatpush2.bf16.msra.mxu0 0
        %3332 = vmatprep.subr.bf16.mxu0 0
        %3333 = vmatpush2.bf16.msra.mxu0 0
        %3334 = vmatprep.subr.bf16.mxu0 0
        %3335 = vmatpush2.bf16.msra.mxu0 0
        %3336 = vmatprep.mubr.bf16.mxu0 0
        %3337 = vmatmul.mubr.bf16.gmra.mxu0 %v3302
        %v3338 = vpop.f32.mrf.mxu0
        %v3339 = vadd.f32 %v3275, %v3338
        %v3340 = vpop.f32.mrf.mxu0
        %v3341 = vpop.f32.mrf.mxu0
        %v3342 = vpop.f32.mrf.mxu0
        %3343 = vdwg.mxu0
        %v3344 = vadd.f32 %v3188, %v3339
        %s3345 = scalar_lea.vmem %s14, 2
        %v3346 = vld [vmem:[%s3345] sm:$0x1]
        %s3347 = scalar_lea.vmem %s15, 2
        %v3348 = vld [vmem:[%s3347] sm:$0x1]
        %v3349 = vsel %vm3161, %v3344, 0.0
        %3350 = vadd.xlane.f32.xlu0 %v3349
        %v3351 = vpop.xlane.xlu0 %3350
        %v3352 = vmul.f32 %v3351, %v1422
        %v3353 = vsub.f32 %v3344, %v3352
        %v3354 = vmul.f32 %v3353, %v3353
        %v3355 = vsel %vm3161, %v3354, 0.0
        %3356 = vadd.xlane.f32.xlu0 %v3355
        %v3357 = vpop.xlane.xlu0 %3356
        %v3358 = vmul.f32 %v3357, %v1422
        %v3359 = vadd.f32 %v3358, 1e-05
        %v3360 = vrsqrt.pop %v3359
        %v3361 = vmul.f32 %v3353, %v3360
        %v3363 = vlaneseq
        %v3364 = vshrl.u32 %v3363, 7
        %v3365 = vsub.s32 0, %v3364
        %v3366 = vrot.slane %v3346, %v3365
        %v3368 = vmul.f32 %v3361, %v3366
        %v3370 = vlaneseq
        %v3371 = vshrl.u32 %v3370, 7
        %v3372 = vsub.s32 0, %v3371
        %v3373 = vrot.slane %v3348, %v3372
        %v3375 = vadd.f32 %v3368, %v3373
        %v3376 = vpack.c.bf16 %v3375, %v3375
        %s3377 = scalar_lea.vmem %s6, 48
        %v3378 = vld [vmem:[%s3377] sm:$0xf]
        %v3379 = vld [vmem:[%s3377 + $0x4] sm:$0xf]
        %v3380 = vld [vmem:[%s3377 + $0x8] sm:$0xf]
        %v3381 = vld [vmem:[%s3377 + $0xc] sm:$0xf]
        %v3386 = vunpack.c.l.b16 %v3378
        %v3387 = vunpack.c.l.b16 %v3379
        %v3388 = vunpack.c.l.b16 %v3380
        %v3389 = vunpack.c.l.b16 %v3381
        %v3390 = vpack.c.b16 %v3387, %v3386
        %v3391 = vpack.c.b16 %v3389, %v3388
        %v3395 = vsel %vm782, %v3376, 0
        %3397 = vmatprep.subr.bf16.mxu0 0
        %3398 = vmatpush1.bf16.msra.mxu0 0
        %3399 = vmatprep.subr.bf16.mxu0 0
        %3400 = vmatpush1.bf16.msra.mxu0 0
        %3401 = vmatprep.subr.bf16.mxu0 0
        %3402 = vmatpush1.bf16.msra.mxu0 0
        %3403 = vmatprep.subr.bf16.mxu0 0
        %3404 = vmatpush1.bf16.msra.mxu0 0
        %3405 = vmatprep.subr.bf16.mxu0 0
        %3406 = vmatpush1.bf16.msra.mxu0 0
        %3407 = vmatprep.subr.bf16.mxu0 0
        %3408 = vmatpush1.bf16.msra.mxu0 0
        %3409 = vmatprep.subr.bf16.mxu0 0
        %3410 = vmatpush1.bf16.msra.mxu0 %v3391
        %3411 = vmatprep.subr.bf16.mxu0 0
        %3412 = vmatpush1.bf16.msra.mxu0 %v3390
        %3413 = vmatprep.subr.bf16.mxu0 0
        %3414 = vmatpush2.bf16.msra.mxu0 0
        %3415 = vmatprep.subr.bf16.mxu0 0
        %3416 = vmatpush2.bf16.msra.mxu0 0
        %3417 = vmatprep.subr.bf16.mxu0 0
        %3418 = vmatpush2.bf16.msra.mxu0 0
        %3419 = vmatprep.subr.bf16.mxu0 0
        %3420 = vmatpush2.bf16.msra.mxu0 0
        %3421 = vmatprep.subr.bf16.mxu0 0
        %3422 = vmatpush2.bf16.msra.mxu0 0
        %3423 = vmatprep.subr.bf16.mxu0 0
        %3424 = vmatpush2.bf16.msra.mxu0 0
        %3425 = vmatprep.subr.bf16.mxu0 0
        %3426 = vmatpush2.bf16.msra.mxu0 0
        %3427 = vmatprep.subr.bf16.mxu0 0
        %3428 = vmatpush2.bf16.msra.mxu0 0
        %3429 = vmatprep.mubr.bf16.mxu0 0
        %3430 = vmatmul.mubr.bf16.gmra.mxu0 %v3395
        %v3431 = vpop.f32.mrf.mxu0
        %v3432 = vadd.f32 0.0, %v3431
        %v3433 = vpop.f32.mrf.mxu0
        %v3434 = vpop.f32.mrf.mxu0
        %v3435 = vpop.f32.mrf.mxu0
        %3436 = vdwg.mxu0
        %v3437 = vpack.c.bf16 %v3432, %v3432
        %3439 = vrot.lane.b32.xlu0 %v3437, 96
        %v3440 = vpop.permute.xlu0 %3439
        %v3442 = vsel %vm630, %v3437, 0
        %v3445 = vsel %vm630, %v3440, 0
        %3447 = vmatprep.subr.bf16.mxu0 0
        %3448 = vmatpush1.bf16.xpose.msra.mxu0 0
        %3449 = vmatprep.subr.bf16.mxu0 0
        %3450 = vmatpush1.bf16.xpose.msra.mxu0 0
        %3451 = vmatprep.subr.bf16.mxu0 0
        %3452 = vmatpush1.bf16.xpose.msra.mxu0 0
        %3453 = vmatprep.subr.bf16.mxu0 0
        %3454 = vmatpush1.bf16.xpose.msra.mxu0 0
        %3455 = vmatprep.subr.bf16.mxu0 0
        %3456 = vmatpush1.bf16.xpose.msra.mxu0 0
        %3457 = vmatprep.subr.bf16.mxu0 0
        %3458 = vmatpush1.bf16.xpose.msra.mxu0 0
        %3459 = vmatprep.subr.bf16.mxu0 0
        %3460 = vmatpush1.bf16.xpose.msra.mxu0 0
        %3461 = vmatprep.subr.bf16.mxu0 0
        %3462 = vmatpush1.bf16.xpose.msra.mxu0 %v3445
        %3463 = vmatprep.subr.bf16.mxu0 0
        %3464 = vmatpush2.bf16.xpose.msra.mxu0 0
        %3465 = vmatprep.subr.bf16.mxu0 0
        %3466 = vmatpush2.bf16.xpose.msra.mxu0 0
        %3467 = vmatprep.subr.bf16.mxu0 0
        %3468 = vmatpush2.bf16.xpose.msra.mxu0 0
        %3469 = vmatprep.subr.bf16.mxu0 0
        %3470 = vmatpush2.bf16.xpose.msra.mxu0 0
        %3471 = vmatprep.subr.bf16.mxu0 0
        %3472 = vmatpush2.bf16.xpose.msra.mxu0 0
        %3473 = vmatprep.subr.bf16.mxu0 0
        %3474 = vmatpush2.bf16.xpose.msra.mxu0 0
        %3475 = vmatprep.subr.bf16.mxu0 0
        %3476 = vmatpush2.bf16.xpose.msra.mxu0 0
        %3477 = vmatprep.subr.bf16.mxu0 0
        %3478 = vmatpush2.bf16.xpose.msra.mxu0 0
        %3479 = vmatprep.mubr.bf16.mxu0 0
        %3480 = vmatmul.mubr.bf16.gmra.mxu0 %v3442
        %v3481 = vpop.f32.mrf.mxu0
        %v3482 = vadd.f32 0.0, %v3481
        %v3483 = vpop.f32.mrf.mxu0
        %v3484 = vpop.f32.mrf.mxu0
        %v3485 = vpop.f32.mrf.mxu0
        %3486 = vdwg.mxu0
        %v3487 = vmul.f32 %v3482, 0.35355338
        %v3488 = vadd.f32 %v3487, %v2675
        %v3489 = vsel %vm2678, %v3488, -inf
        %3490 = vmax.xlane.f32.xlu0 %v3489
        %v3491 = vpop.xlane.xlu0 %3490
        %v3492 = vsub.f32 %v3488, %v3491
        %v3493 = vmul.f32 %v3492, 1.442695
        %v3494 = vpow.pop %v3493
        %v3495 = vsel %vm2678, %v3494, 0.0
        %3496 = vadd.xlane.f32.xlu0 %v3495
        %v3497 = vpop.xlane.xlu0 %3496
        %v3498 = vrcp.pop %v3497
        %v3499 = vmul.f32 %v3494, %v3498
        %v3500 = vpack.c.bf16 %v3499, %v3499
        %3501 = vrot.lane.b32.xlu0 %v3437, 64
        %v3502 = vpop.permute.xlu0 %3501
        %v3504 = vsel %vm2693, %v3500, 0
        %v3507 = vand.u32 %v3502, %v2700
        %3509 = vmatprep.subr.bf16.mxu0 0
        %3510 = vmatpush1.bf16.msra.mxu0 0
        %3511 = vmatprep.subr.bf16.mxu0 0
        %3512 = vmatpush1.bf16.msra.mxu0 0
        %3513 = vmatprep.subr.bf16.mxu0 0
        %3514 = vmatpush1.bf16.msra.mxu0 0
        %3515 = vmatprep.subr.bf16.mxu0 0
        %3516 = vmatpush1.bf16.msra.mxu0 0
        %3517 = vmatprep.subr.bf16.mxu0 0
        %3518 = vmatpush1.bf16.msra.mxu0 0
        %3519 = vmatprep.subr.bf16.mxu0 0
        %3520 = vmatpush1.bf16.msra.mxu0 0
        %3521 = vmatprep.subr.bf16.mxu0 0
        %3522 = vmatpush1.bf16.msra.mxu0 0
        %3523 = vmatprep.subr.bf16.mxu0 0
        %3524 = vmatpush1.bf16.msra.mxu0 %v3507
        %3525 = vmatprep.subr.bf16.mxu0 0
        %3526 = vmatpush2.bf16.msra.mxu0 0
        %3527 = vmatprep.subr.bf16.mxu0 0
        %3528 = vmatpush2.bf16.msra.mxu0 0
        %3529 = vmatprep.subr.bf16.mxu0 0
        %3530 = vmatpush2.bf16.msra.mxu0 0
        %3531 = vmatprep.subr.bf16.mxu0 0
        %3532 = vmatpush2.bf16.msra.mxu0 0
        %3533 = vmatprep.subr.bf16.mxu0 0
        %3534 = vmatpush2.bf16.msra.mxu0 0
        %3535 = vmatprep.subr.bf16.mxu0 0
        %3536 = vmatpush2.bf16.msra.mxu0 0
        %3537 = vmatprep.subr.bf16.mxu0 0
        %3538 = vmatpush2.bf16.msra.mxu0 0
        %3539 = vmatprep.subr.bf16.mxu0 0
        %3540 = vmatpush2.bf16.msra.mxu0 0
        %3541 = vmatprep.mubr.bf16.mxu0 0
        %3542 = vmatmul.mubr.bf16.gmra.mxu0 %v3504
        %v3543 = vpop.f32.mrf.mxu0
        %v3544 = vadd.f32 0.0, %v3543
        %v3545 = vpop.f32.mrf.mxu0
        %v3546 = vpop.f32.mrf.mxu0
        %v3547 = vpop.f32.mrf.mxu0
        %3548 = vdwg.mxu0
        %3549 = vrot.lane.b32.xlu0 %v3437, 120
        %v3550 = vpop.permute.xlu0 %3549
        %3551 = vrot.lane.b32.xlu0 %v3437, 88
        %v3552 = vpop.permute.xlu0 %3551
        %v3554 = vsel %vm630, %v3550, 0
        %v3557 = vsel %vm630, %v3552, 0
        %3559 = vmatprep.subr.bf16.mxu0 0
        %3560 = vmatpush1.bf16.xpose.msra.mxu0 0
        %3561 = vmatprep.subr.bf16.mxu0 0
        %3562 = vmatpush1.bf16.xpose.msra.mxu0 0
        %3563 = vmatprep.subr.bf16.mxu0 0
        %3564 = vmatpush1.bf16.xpose.msra.mxu0 0
        %3565 = vmatprep.subr.bf16.mxu0 0
        %3566 = vmatpush1.bf16.xpose.msra.mxu0 0
        %3567 = vmatprep.subr.bf16.mxu0 0
        %3568 = vmatpush1.bf16.xpose.msra.mxu0 0
        %3569 = vmatprep.subr.bf16.mxu0 0
        %3570 = vmatpush1.bf16.xpose.msra.mxu0 0
        %3571 = vmatprep.subr.bf16.mxu0 0
        %3572 = vmatpush1.bf16.xpose.msra.mxu0 0
        %3573 = vmatprep.subr.bf16.mxu0 0
        %3574 = vmatpush1.bf16.xpose.msra.mxu0 %v3557
        %3575 = vmatprep.subr.bf16.mxu0 0
        %3576 = vmatpush2.bf16.xpose.msra.mxu0 0
        %3577 = vmatprep.subr.bf16.mxu0 0
        %3578 = vmatpush2.bf16.xpose.msra.mxu0 0
        %3579 = vmatprep.subr.bf16.mxu0 0
        %3580 = vmatpush2.bf16.xpose.msra.mxu0 0
        %3581 = vmatprep.subr.bf16.mxu0 0
        %3582 = vmatpush2.bf16.xpose.msra.mxu0 0
        %3583 = vmatprep.subr.bf16.mxu0 0
        %3584 = vmatpush2.bf16.xpose.msra.mxu0 0
        %3585 = vmatprep.subr.bf16.mxu0 0
        %3586 = vmatpush2.bf16.xpose.msra.mxu0 0
        %3587 = vmatprep.subr.bf16.mxu0 0
        %3588 = vmatpush2.bf16.xpose.msra.mxu0 0
        %3589 = vmatprep.subr.bf16.mxu0 0
        %3590 = vmatpush2.bf16.xpose.msra.mxu0 0
        %3591 = vmatprep.mubr.bf16.mxu0 0
        %3592 = vmatmul.mubr.bf16.gmra.mxu0 %v3554
        %v3593 = vpop.f32.mrf.mxu0
        %v3594 = vadd.f32 0.0, %v3593
        %v3595 = vpop.f32.mrf.mxu0
        %v3596 = vpop.f32.mrf.mxu0
        %v3597 = vpop.f32.mrf.mxu0
        %3598 = vdwg.mxu0
        %v3599 = vmul.f32 %v3594, 0.35355338
        %v3600 = vadd.f32 %v3599, %v2675
        %v3601 = vsel %vm2678, %v3600, -inf
        %3602 = vmax.xlane.f32.xlu0 %v3601
        %v3603 = vpop.xlane.xlu0 %3602
        %v3604 = vsub.f32 %v3600, %v3603
        %v3605 = vmul.f32 %v3604, 1.442695
        %v3606 = vpow.pop %v3605
        %v3607 = vsel %vm2678, %v3606, 0.0
        %3608 = vadd.xlane.f32.xlu0 %v3607
        %v3609 = vpop.xlane.xlu0 %3608
        %v3610 = vrcp.pop %v3609
        %v3611 = vmul.f32 %v3606, %v3610
        %v3612 = vpack.c.bf16 %v3611, %v3611
        %3613 = vrot.lane.b32.xlu0 %v3437, 56
        %v3614 = vpop.permute.xlu0 %3613
        %v3616 = vsel %vm2693, %v3612, 0
        %v3619 = vand.u32 %v3614, %v2700
        %3621 = vmatprep.subr.bf16.mxu0 0
        %3622 = vmatpush1.bf16.msra.mxu0 0
        %3623 = vmatprep.subr.bf16.mxu0 0
        %3624 = vmatpush1.bf16.msra.mxu0 0
        %3625 = vmatprep.subr.bf16.mxu0 0
        %3626 = vmatpush1.bf16.msra.mxu0 0
        %3627 = vmatprep.subr.bf16.mxu0 0
        %3628 = vmatpush1.bf16.msra.mxu0 0
        %3629 = vmatprep.subr.bf16.mxu0 0
        %3630 = vmatpush1.bf16.msra.mxu0 0
        %3631 = vmatprep.subr.bf16.mxu0 0
        %3632 = vmatpush1.bf16.msra.mxu0 0
        %3633 = vmatprep.subr.bf16.mxu0 0
        %3634 = vmatpush1.bf16.msra.mxu0 0
        %3635 = vmatprep.subr.bf16.mxu0 0
        %3636 = vmatpush1.bf16.msra.mxu0 %v3619
        %3637 = vmatprep.subr.bf16.mxu0 0
        %3638 = vmatpush2.bf16.msra.mxu0 0
        %3639 = vmatprep.subr.bf16.mxu0 0
        %3640 = vmatpush2.bf16.msra.mxu0 0
        %3641 = vmatprep.subr.bf16.mxu0 0
        %3642 = vmatpush2.bf16.msra.mxu0 0
        %3643 = vmatprep.subr.bf16.mxu0 0
        %3644 = vmatpush2.bf16.msra.mxu0 0
        %3645 = vmatprep.subr.bf16.mxu0 0
        %3646 = vmatpush2.bf16.msra.mxu0 0
        %3647 = vmatprep.subr.bf16.mxu0 0
        %3648 = vmatpush2.bf16.msra.mxu0 0
        %3649 = vmatprep.subr.bf16.mxu0 0
        %3650 = vmatpush2.bf16.msra.mxu0 0
        %3651 = vmatprep.subr.bf16.mxu0 0
        %3652 = vmatpush2.bf16.msra.mxu0 0
        %3653 = vmatprep.mubr.bf16.mxu0 0
        %3654 = vmatmul.mubr.bf16.gmra.mxu0 %v3616
        %v3655 = vpop.f32.mrf.mxu0
        %v3656 = vadd.f32 0.0, %v3655
        %v3657 = vpop.f32.mrf.mxu0
        %v3658 = vpop.f32.mrf.mxu0
        %v3659 = vpop.f32.mrf.mxu0
        %3660 = vdwg.mxu0
        %3661 = vrot.lane.b32.xlu0 %v3437, 112
        %v3662 = vpop.permute.xlu0 %3661
        %3663 = vrot.lane.b32.xlu0 %v3437, 80
        %v3664 = vpop.permute.xlu0 %3663
        %v3666 = vsel %vm630, %v3662, 0
        %v3669 = vsel %vm630, %v3664, 0
        %3671 = vmatprep.subr.bf16.mxu0 0
        %3672 = vmatpush1.bf16.xpose.msra.mxu0 0
        %3673 = vmatprep.subr.bf16.mxu0 0
        %3674 = vmatpush1.bf16.xpose.msra.mxu0 0
        %3675 = vmatprep.subr.bf16.mxu0 0
        %3676 = vmatpush1.bf16.xpose.msra.mxu0 0
        %3677 = vmatprep.subr.bf16.mxu0 0
        %3678 = vmatpush1.bf16.xpose.msra.mxu0 0
        %3679 = vmatprep.subr.bf16.mxu0 0
        %3680 = vmatpush1.bf16.xpose.msra.mxu0 0
        %3681 = vmatprep.subr.bf16.mxu0 0
        %3682 = vmatpush1.bf16.xpose.msra.mxu0 0
        %3683 = vmatprep.subr.bf16.mxu0 0
        %3684 = vmatpush1.bf16.xpose.msra.mxu0 0
        %3685 = vmatprep.subr.bf16.mxu0 0
        %3686 = vmatpush1.bf16.xpose.msra.mxu0 %v3669
        %3687 = vmatprep.subr.bf16.mxu0 0
        %3688 = vmatpush2.bf16.xpose.msra.mxu0 0
        %3689 = vmatprep.subr.bf16.mxu0 0
        %3690 = vmatpush2.bf16.xpose.msra.mxu0 0
        %3691 = vmatprep.subr.bf16.mxu0 0
        %3692 = vmatpush2.bf16.xpose.msra.mxu0 0
        %3693 = vmatprep.subr.bf16.mxu0 0
        %3694 = vmatpush2.bf16.xpose.msra.mxu0 0
        %3695 = vmatprep.subr.bf16.mxu0 0
        %3696 = vmatpush2.bf16.xpose.msra.mxu0 0
        %3697 = vmatprep.subr.bf16.mxu0 0
        %3698 = vmatpush2.bf16.xpose.msra.mxu0 0
        %3699 = vmatprep.subr.bf16.mxu0 0
        %3700 = vmatpush2.bf16.xpose.msra.mxu0 0
        %3701 = vmatprep.subr.bf16.mxu0 0
        %3702 = vmatpush2.bf16.xpose.msra.mxu0 0
        %3703 = vmatprep.mubr.bf16.mxu0 0
        %3704 = vmatmul.mubr.bf16.gmra.mxu0 %v3666
        %v3705 = vpop.f32.mrf.mxu0
        %v3706 = vadd.f32 0.0, %v3705
        %v3707 = vpop.f32.mrf.mxu0
        %v3708 = vpop.f32.mrf.mxu0
        %v3709 = vpop.f32.mrf.mxu0
        %3710 = vdwg.mxu0
        %v3711 = vmul.f32 %v3706, 0.35355338
        %v3712 = vadd.f32 %v3711, %v2675
        %v3713 = vsel %vm2678, %v3712, -inf
        %3714 = vmax.xlane.f32.xlu0 %v3713
        %v3715 = vpop.xlane.xlu0 %3714
        %v3716 = vsub.f32 %v3712, %v3715
        %v3717 = vmul.f32 %v3716, 1.442695
        %v3718 = vpow.pop %v3717
        %v3719 = vsel %vm2678, %v3718, 0.0
        %3720 = vadd.xlane.f32.xlu0 %v3719
        %v3721 = vpop.xlane.xlu0 %3720
        %v3722 = vrcp.pop %v3721
        %v3723 = vmul.f32 %v3718, %v3722
        %v3724 = vpack.c.bf16 %v3723, %v3723
        %3725 = vrot.lane.b32.xlu0 %v3437, 48
        %v3726 = vpop.permute.xlu0 %3725
        %v3728 = vsel %vm2693, %v3724, 0
        %v3731 = vand.u32 %v3726, %v2700
        %3733 = vmatprep.subr.bf16.mxu0 0
        %3734 = vmatpush1.bf16.msra.mxu0 0
        %3735 = vmatprep.subr.bf16.mxu0 0
        %3736 = vmatpush1.bf16.msra.mxu0 0
        %3737 = vmatprep.subr.bf16.mxu0 0
        %3738 = vmatpush1.bf16.msra.mxu0 0
        %3739 = vmatprep.subr.bf16.mxu0 0
        %3740 = vmatpush1.bf16.msra.mxu0 0
        %3741 = vmatprep.subr.bf16.mxu0 0
        %3742 = vmatpush1.bf16.msra.mxu0 0
        %3743 = vmatprep.subr.bf16.mxu0 0
        %3744 = vmatpush1.bf16.msra.mxu0 0
        %3745 = vmatprep.subr.bf16.mxu0 0
        %3746 = vmatpush1.bf16.msra.mxu0 0
        %3747 = vmatprep.subr.bf16.mxu0 0
        %3748 = vmatpush1.bf16.msra.mxu0 %v3731
        %3749 = vmatprep.subr.bf16.mxu0 0
        %3750 = vmatpush2.bf16.msra.mxu0 0
        %3751 = vmatprep.subr.bf16.mxu0 0
        %3752 = vmatpush2.bf16.msra.mxu0 0
        %3753 = vmatprep.subr.bf16.mxu0 0
        %3754 = vmatpush2.bf16.msra.mxu0 0
        %3755 = vmatprep.subr.bf16.mxu0 0
        %3756 = vmatpush2.bf16.msra.mxu0 0
        %3757 = vmatprep.subr.bf16.mxu0 0
        %3758 = vmatpush2.bf16.msra.mxu0 0
        %3759 = vmatprep.subr.bf16.mxu0 0
        %3760 = vmatpush2.bf16.msra.mxu0 0
        %3761 = vmatprep.subr.bf16.mxu0 0
        %3762 = vmatpush2.bf16.msra.mxu0 0
        %3763 = vmatprep.subr.bf16.mxu0 0
        %3764 = vmatpush2.bf16.msra.mxu0 0
        %3765 = vmatprep.mubr.bf16.mxu0 0
        %3766 = vmatmul.mubr.bf16.gmra.mxu0 %v3728
        %v3767 = vpop.f32.mrf.mxu0
        %v3768 = vadd.f32 0.0, %v3767
        %v3769 = vpop.f32.mrf.mxu0
        %v3770 = vpop.f32.mrf.mxu0
        %v3771 = vpop.f32.mrf.mxu0
        %3772 = vdwg.mxu0
        %3773 = vrot.lane.b32.xlu0 %v3437, 104
        %v3774 = vpop.permute.xlu0 %3773
        %3775 = vrot.lane.b32.xlu0 %v3437, 72
        %v3776 = vpop.permute.xlu0 %3775
        %v3778 = vsel %vm630, %v3774, 0
        %v3781 = vsel %vm630, %v3776, 0
        %3783 = vmatprep.subr.bf16.mxu0 0
        %3784 = vmatpush1.bf16.xpose.msra.mxu0 0
        %3785 = vmatprep.subr.bf16.mxu0 0
        %3786 = vmatpush1.bf16.xpose.msra.mxu0 0
        %3787 = vmatprep.subr.bf16.mxu0 0
        %3788 = vmatpush1.bf16.xpose.msra.mxu0 0
        %3789 = vmatprep.subr.bf16.mxu0 0
        %3790 = vmatpush1.bf16.xpose.msra.mxu0 0
        %3791 = vmatprep.subr.bf16.mxu0 0
        %3792 = vmatpush1.bf16.xpose.msra.mxu0 0
        %3793 = vmatprep.subr.bf16.mxu0 0
        %3794 = vmatpush1.bf16.xpose.msra.mxu0 0
        %3795 = vmatprep.subr.bf16.mxu0 0
        %3796 = vmatpush1.bf16.xpose.msra.mxu0 0
        %3797 = vmatprep.subr.bf16.mxu0 0
        %3798 = vmatpush1.bf16.xpose.msra.mxu0 %v3781
        %3799 = vmatprep.subr.bf16.mxu0 0
        %3800 = vmatpush2.bf16.xpose.msra.mxu0 0
        %3801 = vmatprep.subr.bf16.mxu0 0
        %3802 = vmatpush2.bf16.xpose.msra.mxu0 0
        %3803 = vmatprep.subr.bf16.mxu0 0
        %3804 = vmatpush2.bf16.xpose.msra.mxu0 0
        %3805 = vmatprep.subr.bf16.mxu0 0
        %3806 = vmatpush2.bf16.xpose.msra.mxu0 0
        %3807 = vmatprep.subr.bf16.mxu0 0
        %3808 = vmatpush2.bf16.xpose.msra.mxu0 0
        %3809 = vmatprep.subr.bf16.mxu0 0
        %3810 = vmatpush2.bf16.xpose.msra.mxu0 0
        %3811 = vmatprep.subr.bf16.mxu0 0
        %3812 = vmatpush2.bf16.xpose.msra.mxu0 0
        %3813 = vmatprep.subr.bf16.mxu0 0
        %3814 = vmatpush2.bf16.xpose.msra.mxu0 0
        %3815 = vmatprep.mubr.bf16.mxu0 0
        %3816 = vmatmul.mubr.bf16.gmra.mxu0 %v3778
        %v3817 = vpop.f32.mrf.mxu0
        %v3818 = vadd.f32 0.0, %v3817
        %v3819 = vpop.f32.mrf.mxu0
        %v3820 = vpop.f32.mrf.mxu0
        %v3821 = vpop.f32.mrf.mxu0
        %3822 = vdwg.mxu0
        %v3823 = vmul.f32 %v3818, 0.35355338
        %v3824 = vadd.f32 %v3823, %v2675
        %v3825 = vsel %vm2678, %v3824, -inf
        %3826 = vmax.xlane.f32.xlu0 %v3825
        %v3827 = vpop.xlane.xlu0 %3826
        %v3828 = vsub.f32 %v3824, %v3827
        %v3829 = vmul.f32 %v3828, 1.442695
        %v3830 = vpow.pop %v3829
        %v3831 = vsel %vm2678, %v3830, 0.0
        %3832 = vadd.xlane.f32.xlu0 %v3831
        %v3833 = vpop.xlane.xlu0 %3832
        %v3834 = vrcp.pop %v3833
        %v3835 = vmul.f32 %v3830, %v3834
        %v3836 = vpack.c.bf16 %v3835, %v3835
        %3837 = vrot.lane.b32.xlu0 %v3437, 40
        %v3838 = vpop.permute.xlu0 %3837
        %v3840 = vsel %vm2693, %v3836, 0
        %v3843 = vand.u32 %v3838, %v2700
        %3845 = vmatprep.subr.bf16.mxu0 0
        %3846 = vmatpush1.bf16.msra.mxu0 0
        %3847 = vmatprep.subr.bf16.mxu0 0
        %3848 = vmatpush1.bf16.msra.mxu0 0
        %3849 = vmatprep.subr.bf16.mxu0 0
        %3850 = vmatpush1.bf16.msra.mxu0 0
        %3851 = vmatprep.subr.bf16.mxu0 0
        %3852 = vmatpush1.bf16.msra.mxu0 0
        %3853 = vmatprep.subr.bf16.mxu0 0
        %3854 = vmatpush1.bf16.msra.mxu0 0
        %3855 = vmatprep.subr.bf16.mxu0 0
        %3856 = vmatpush1.bf16.msra.mxu0 0
        %3857 = vmatprep.subr.bf16.mxu0 0
        %3858 = vmatpush1.bf16.msra.mxu0 0
        %3859 = vmatprep.subr.bf16.mxu0 0
        %3860 = vmatpush1.bf16.msra.mxu0 %v3843
        %3861 = vmatprep.subr.bf16.mxu0 0
        %3862 = vmatpush2.bf16.msra.mxu0 0
        %3863 = vmatprep.subr.bf16.mxu0 0
        %3864 = vmatpush2.bf16.msra.mxu0 0
        %3865 = vmatprep.subr.bf16.mxu0 0
        %3866 = vmatpush2.bf16.msra.mxu0 0
        %3867 = vmatprep.subr.bf16.mxu0 0
        %3868 = vmatpush2.bf16.msra.mxu0 0
        %3869 = vmatprep.subr.bf16.mxu0 0
        %3870 = vmatpush2.bf16.msra.mxu0 0
        %3871 = vmatprep.subr.bf16.mxu0 0
        %3872 = vmatpush2.bf16.msra.mxu0 0
        %3873 = vmatprep.subr.bf16.mxu0 0
        %3874 = vmatpush2.bf16.msra.mxu0 0
        %3875 = vmatprep.subr.bf16.mxu0 0
        %3876 = vmatpush2.bf16.msra.mxu0 0
        %3877 = vmatprep.mubr.bf16.mxu0 0
        %3878 = vmatmul.mubr.bf16.gmra.mxu0 %v3840
        %v3879 = vpop.f32.mrf.mxu0
        %v3880 = vadd.f32 0.0, %v3879
        %v3881 = vpop.f32.mrf.mxu0
        %v3882 = vpop.f32.mrf.mxu0
        %v3883 = vpop.f32.mrf.mxu0
        %3884 = vdwg.mxu0
        %3886 = vrot.lane.b32.xlu0 %v3656, 8
        %v3887 = vpop.permute.xlu0 %3886
        %3890 = vrot.lane.b32.xlu0 %v3768, 16
        %v3891 = vpop.permute.xlu0 %3890
        %3894 = vrot.lane.b32.xlu0 %v3880, 24
        %v3895 = vpop.permute.xlu0 %3894
        %v3897 = vsel %vm630, %v3544, %v3887
        %v3898 = vsel %vm880, %v3897, %v3891
        %v3899 = vsel %vm1348, %v3898, %v3895
        %v3900 = vpack.c.bf16 %v3899, %v3899
        %s3901 = scalar_lea.vmem %s7, 48
        %v3902 = vld [vmem:[%s3901] sm:$0xf]
        %v3903 = vld [vmem:[%s3901 + $0x4] sm:$0xf]
        %v3904 = vld [vmem:[%s3901 + $0x8] sm:$0xf]
        %v3905 = vld [vmem:[%s3901 + $0xc] sm:$0xf]
        %v3910 = vunpack.c.l.b16 %v3902
        %v3911 = vunpack.c.l.b16 %v3903
        %v3912 = vunpack.c.l.b16 %v3904
        %v3913 = vunpack.c.l.b16 %v3905
        %v3914 = vpack.c.b16 %v3911, %v3910
        %v3915 = vpack.c.b16 %v3913, %v3912
        %v3919 = vsel %vm782, %v3900, 0
        %3921 = vmatprep.subr.bf16.mxu0 0
        %3922 = vmatpush1.bf16.msra.mxu0 0
        %3923 = vmatprep.subr.bf16.mxu0 0
        %3924 = vmatpush1.bf16.msra.mxu0 0
        %3925 = vmatprep.subr.bf16.mxu0 0
        %3926 = vmatpush1.bf16.msra.mxu0 0
        %3927 = vmatprep.subr.bf16.mxu0 0
        %3928 = vmatpush1.bf16.msra.mxu0 0
        %3929 = vmatprep.subr.bf16.mxu0 0
        %3930 = vmatpush1.bf16.msra.mxu0 0
        %3931 = vmatprep.subr.bf16.mxu0 0
        %3932 = vmatpush1.bf16.msra.mxu0 0
        %3933 = vmatprep.subr.bf16.mxu0 0
        %3934 = vmatpush1.bf16.msra.mxu0 %v3915
        %3935 = vmatprep.subr.bf16.mxu0 0
        %3936 = vmatpush1.bf16.msra.mxu0 %v3914
        %3937 = vmatprep.subr.bf16.mxu0 0
        %3938 = vmatpush2.bf16.msra.mxu0 0
        %3939 = vmatprep.subr.bf16.mxu0 0
        %3940 = vmatpush2.bf16.msra.mxu0 0
        %3941 = vmatprep.subr.bf16.mxu0 0
        %3942 = vmatpush2.bf16.msra.mxu0 0
        %3943 = vmatprep.subr.bf16.mxu0 0
        %3944 = vmatpush2.bf16.msra.mxu0 0
        %3945 = vmatprep.subr.bf16.mxu0 0
        %3946 = vmatpush2.bf16.msra.mxu0 0
        %3947 = vmatprep.subr.bf16.mxu0 0
        %3948 = vmatpush2.bf16.msra.mxu0 0
        %3949 = vmatprep.subr.bf16.mxu0 0
        %3950 = vmatpush2.bf16.msra.mxu0 0
        %3951 = vmatprep.subr.bf16.mxu0 0
        %3952 = vmatpush2.bf16.msra.mxu0 0
        %3953 = vmatprep.mubr.bf16.mxu0 0
        %3954 = vmatmul.mubr.bf16.gmra.mxu0 %v3919
        %v3955 = vpop.f32.mrf.mxu0
        %v3956 = vadd.f32 0.0, %v3955
        %v3957 = vpop.f32.mrf.mxu0
        %v3958 = vpop.f32.mrf.mxu0
        %v3959 = vpop.f32.mrf.mxu0
        %3960 = vdwg.mxu0
        %v3961 = vadd.f32 %v3375, %v3956
        %s3962 = scalar_lea.vmem %s8, 3
        %v3963 = vld [vmem:[%s3962] sm:$0x1]
        %s3964 = scalar_lea.vmem %s9, 3
        %v3965 = vld [vmem:[%s3964] sm:$0x1]
        %v3966 = vsel %vm3161, %v3961, 0.0
        %3967 = vadd.xlane.f32.xlu0 %v3966
        %v3968 = vpop.xlane.xlu0 %3967
        %v3969 = vmul.f32 %v3968, %v1422
        %v3970 = vsub.f32 %v3961, %v3969
        %v3971 = vmul.f32 %v3970, %v3970
        %v3972 = vsel %vm3161, %v3971, 0.0
        %3973 = vadd.xlane.f32.xlu0 %v3972
        %v3974 = vpop.xlane.xlu0 %3973
        %v3975 = vmul.f32 %v3974, %v1422
        %v3976 = vadd.f32 %v3975, 1e-05
        %v3977 = vrsqrt.pop %v3976
        %v3978 = vmul.f32 %v3970, %v3977
        %v3980 = vlaneseq
        %v3981 = vshrl.u32 %v3980, 7
        %v3982 = vsub.s32 0, %v3981
        %v3983 = vrot.slane %v3963, %v3982
        %v3985 = vmul.f32 %v3978, %v3983
        %v3987 = vlaneseq
        %v3988 = vshrl.u32 %v3987, 7
        %v3989 = vsub.s32 0, %v3988
        %v3990 = vrot.slane %v3965, %v3989
        %v3992 = vadd.f32 %v3985, %v3990
        %v3993 = vpack.c.bf16 %v3992, %v3992
        %s3994 = scalar_lea.vmem %s10, 48
        %v3995 = vld [vmem:[%s3994] sm:$0xf]
        %v3996 = vld [vmem:[%s3994 + $0x4] sm:$0xf]
        %v3997 = vld [vmem:[%s3994 + $0x8] sm:$0xf]
        %v3998 = vld [vmem:[%s3994 + $0xc] sm:$0xf]
        %s3999 = scalar_lea.vmem %s11, 3
        %v4000 = vld [vmem:[%s3999] sm:$0x1]
        %v4002 = vlaneseq
        %v4003 = vshrl.u32 %v4002, 7
        %v4004 = vsub.s32 0, %v4003
        %v4005 = vrot.slane %v4000, %v4004
        %v4011 = vunpack.c.l.b16 %v3995
        %v4012 = vunpack.c.l.b16 %v3996
        %v4013 = vunpack.c.l.b16 %v3997
        %v4014 = vunpack.c.l.b16 %v3998
        %v4015 = vpack.c.b16 %v4012, %v4011
        %v4016 = vpack.c.b16 %v4014, %v4013
        %v4020 = vsel %vm782, %v3993, 0
        %4022 = vmatprep.subr.bf16.mxu0 0
        %4023 = vmatpush1.bf16.msra.mxu0 0
        %4024 = vmatprep.subr.bf16.mxu0 0
        %4025 = vmatpush1.bf16.msra.mxu0 0
        %4026 = vmatprep.subr.bf16.mxu0 0
        %4027 = vmatpush1.bf16.msra.mxu0 0
        %4028 = vmatprep.subr.bf16.mxu0 0
        %4029 = vmatpush1.bf16.msra.mxu0 0
        %4030 = vmatprep.subr.bf16.mxu0 0
        %4031 = vmatpush1.bf16.msra.mxu0 0
        %4032 = vmatprep.subr.bf16.mxu0 0
        %4033 = vmatpush1.bf16.msra.mxu0 0
        %4034 = vmatprep.subr.bf16.mxu0 0
        %4035 = vmatpush1.bf16.msra.mxu0 %v4016
        %4036 = vmatprep.subr.bf16.mxu0 0
        %4037 = vmatpush1.bf16.msra.mxu0 %v4015
        %4038 = vmatprep.subr.bf16.mxu0 0
        %4039 = vmatpush2.bf16.msra.mxu0 0
        %4040 = vmatprep.subr.bf16.mxu0 0
        %4041 = vmatpush2.bf16.msra.mxu0 0
        %4042 = vmatprep.subr.bf16.mxu0 0
        %4043 = vmatpush2.bf16.msra.mxu0 0
        %4044 = vmatprep.subr.bf16.mxu0 0
        %4045 = vmatpush2.bf16.msra.mxu0 0
        %4046 = vmatprep.subr.bf16.mxu0 0
        %4047 = vmatpush2.bf16.msra.mxu0 0
        %4048 = vmatprep.subr.bf16.mxu0 0
        %4049 = vmatpush2.bf16.msra.mxu0 0
        %4050 = vmatprep.subr.bf16.mxu0 0
        %4051 = vmatpush2.bf16.msra.mxu0 0
        %4052 = vmatprep.subr.bf16.mxu0 0
        %4053 = vmatpush2.bf16.msra.mxu0 0
        %4054 = vmatprep.mubr.bf16.mxu0 0
        %4055 = vmatmul.mubr.bf16.gmra.mxu0 %v4020
        %v4056 = vpop.f32.mrf.mxu0
        %v4057 = vadd.f32 %v4005, %v4056
        %v4058 = vpop.f32.mrf.mxu0
        %v4059 = vpop.f32.mrf.mxu0
        %v4060 = vpop.f32.mrf.mxu0
        %4061 = vdwg.mxu0
        %v4062 = vmax.f32 %v4057, 0.0
        %v4063 = vpack.c.bf16 %v4062, %v4062
        %s4064 = scalar_lea.vmem %s12, 96
        %v4065 = vld [vmem:[%s4064] sm:$0xf]
        %v4066 = vld [vmem:[%s4064 + $0x4] sm:$0xf]
        %v4067 = vld [vmem:[%s4064 + $0x8] sm:$0xf]
        %v4068 = vld [vmem:[%s4064 + $0xc] sm:$0xf]
        %v4069 = vld [vmem:[%s4064 + $0x10] sm:$0xf]
        %v4070 = vld [vmem:[%s4064 + $0x14] sm:$0xf]
        %v4071 = vld [vmem:[%s4064 + $0x18] sm:$0xf]
        %v4072 = vld [vmem:[%s4064 + $0x1c] sm:$0xf]
        %s4073 = scalar_lea.vmem %s13, 3
        %v4074 = vld [vmem:[%s4073] sm:$0x1]
        %v4076 = vlaneseq
        %v4077 = vshrl.u32 %v4076, 7
        %v4078 = vsub.s32 0, %v4077
        %v4079 = vrot.slane %v4074, %v4078
        %v4089 = vunpack.c.l.b16 %v4065
        %v4090 = vunpack.c.l.b16 %v4066
        %v4091 = vunpack.c.l.b16 %v4067
        %v4092 = vunpack.c.l.b16 %v4068
        %v4093 = vunpack.c.l.b16 %v4069
        %v4094 = vunpack.c.l.b16 %v4070
        %v4095 = vunpack.c.l.b16 %v4071
        %v4096 = vunpack.c.l.b16 %v4072
        %v4097 = vpack.c.b16 %v4090, %v4089
        %v4098 = vpack.c.b16 %v4092, %v4091
        %v4099 = vpack.c.b16 %v4094, %v4093
        %v4100 = vpack.c.b16 %v4096, %v4095
        %v4106 = vsel %vm720, %v4063, 0
        %4108 = vmatprep.subr.bf16.mxu0 0
        %4109 = vmatpush1.bf16.msra.mxu0 0
        %4110 = vmatprep.subr.bf16.mxu0 0
        %4111 = vmatpush1.bf16.msra.mxu0 0
        %4112 = vmatprep.subr.bf16.mxu0 0
        %4113 = vmatpush1.bf16.msra.mxu0 0
        %4114 = vmatprep.subr.bf16.mxu0 0
        %4115 = vmatpush1.bf16.msra.mxu0 0
        %4116 = vmatprep.subr.bf16.mxu0 0
        %4117 = vmatpush1.bf16.msra.mxu0 %v4100
        %4118 = vmatprep.subr.bf16.mxu0 0
        %4119 = vmatpush1.bf16.msra.mxu0 %v4099
        %4120 = vmatprep.subr.bf16.mxu0 0
        %4121 = vmatpush1.bf16.msra.mxu0 %v4098
        %4122 = vmatprep.subr.bf16.mxu0 0
        %4123 = vmatpush1.bf16.msra.mxu0 %v4097
        %4124 = vmatprep.subr.bf16.mxu0 0
        %4125 = vmatpush2.bf16.msra.mxu0 0
        %4126 = vmatprep.subr.bf16.mxu0 0
        %4127 = vmatpush2.bf16.msra.mxu0 0
        %4128 = vmatprep.subr.bf16.mxu0 0
        %4129 = vmatpush2.bf16.msra.mxu0 0
        %4130 = vmatprep.subr.bf16.mxu0 0
        %4131 = vmatpush2.bf16.msra.mxu0 0
        %4132 = vmatprep.subr.bf16.mxu0 0
        %4133 = vmatpush2.bf16.msra.mxu0 0
        %4134 = vmatprep.subr.bf16.mxu0 0
        %4135 = vmatpush2.bf16.msra.mxu0 0
        %4136 = vmatprep.subr.bf16.mxu0 0
        %4137 = vmatpush2.bf16.msra.mxu0 0
        %4138 = vmatprep.subr.bf16.mxu0 0
        %4139 = vmatpush2.bf16.msra.mxu0 0
        %4140 = vmatprep.mubr.bf16.mxu0 0
        %4141 = vmatmul.mubr.bf16.gmra.mxu0 %v4106
        %v4142 = vpop.f32.mrf.mxu0
        %v4143 = vadd.f32 %v4079, %v4142
        %v4144 = vpop.f32.mrf.mxu0
        %v4145 = vpop.f32.mrf.mxu0
        %v4146 = vpop.f32.mrf.mxu0
        %4147 = vdwg.mxu0
        %v4148 = vadd.f32 %v3992, %v4143
        %s4149 = scalar_lea.vmem %s14, 3
        %v4150 = vld [vmem:[%s4149] sm:$0x1]
        %s4151 = scalar_lea.vmem %s15, 3
        %v4152 = vld [vmem:[%s4151] sm:$0x1]
        %v4153 = vsel %vm3161, %v4148, 0.0
        %4154 = vadd.xlane.f32.xlu0 %v4153
        %v4155 = vpop.xlane.xlu0 %4154
        %v4156 = vmul.f32 %v4155, %v1422
        %v4157 = vsub.f32 %v4148, %v4156
        %v4158 = vmul.f32 %v4157, %v4157
        %v4159 = vsel %vm3161, %v4158, 0.0
        %4160 = vadd.xlane.f32.xlu0 %v4159
        %v4161 = vpop.xlane.xlu0 %4160
        %v4162 = vmul.f32 %v4161, %v1422
        %v4163 = vadd.f32 %v4162, 1e-05
        %v4164 = vrsqrt.pop %v4163
        %v4165 = vmul.f32 %v4157, %v4164
        %v4167 = vlaneseq
        %v4168 = vshrl.u32 %v4167, 7
        %v4169 = vsub.s32 0, %v4168
        %v4170 = vrot.slane %v4150, %v4169
        %v4172 = vmul.f32 %v4165, %v4170
        %v4174 = vlaneseq
        %v4175 = vshrl.u32 %v4174, 7
        %v4176 = vsub.s32 0, %v4175
        %v4177 = vrot.slane %v4152, %v4176
        %v4179 = vadd.f32 %v4172, %v4177
        %4180 = vst.msk [vmem:[%s596] sm:$0xff] %vm782, %v2557
        %4181 = vst.msk [vmem:[%s596 + $0x8] sm:$0xff] %vm782, %v2558
        %4182 = vst.msk [vmem:[%s624] sm:$0x7] %vm3161, %v4179
        %v4183 = vsel %vm782, %v2557, 0.0
        %v4184 = vsel %vm782, %v2558, 0.0
        %v4185 = vadd.f32 %v4183, %v4184
        %v4186 = vrot.slane %v4185, 4
        %v4187 = vadd.f32 %v4185, %v4186
        %v4188 = vrot.slane %v4187, 2
        %v4189 = vadd.f32 %v4187, %v4188
        %v4190 = vrot.slane %v4189, 1
        %v4191 = vadd.f32 %v4189, %v4190
        %v4192 = vrcp.pop 16.0
        %v4193 = vmul.f32 %v4191, %v4192
        %vm4194 = vcmask 253952
        %4195 = vst.msk [vmem:[%s602] sm:$0x1] %vm4194, %v4193
        %s4196 = sand.u32 %s395, 1
        %s4197 = scalar_lea.sflag [#allocation3], %s4196
        %s4198 = sand.u32 %s395, 1
        %s4199 = smul.addr %s4198, 16
        %s4200 = scalar_lea.vmem [#allocation2], %s4199
        %s4201 = sand.u32 %s421, 1
        %s4202 = scalar_lea.sflag [#allocation5], %s4201
        %s4203 = sand.u32 %s421, 1
        %s4204 = scalar_lea.vmem [#allocation4], %s4203
        %p4205 = scmp.lt.s32.totalorder %s36, 1
        %s4206 = scalar_select %p4205, %s36, 1
        %s4207 = smul.addr %s4206, 4
        %s4208 = scalar_lea.vmem %s18, %s4207
        // Predicated region
        $region85: #{graph_attention_encoder.1} parent=83 // pred_check
          %p4209 = pneg %p405
        $region86: #{graph_attention_encoder.1} parent=83 // pred_check_branch
          %4211 = sbr.rel (%p4209) target = $region88
        $region87: #{graph_attention_encoder.1} parent=83 // pred_region
          %s4213 = ssub.s32 256, 256
          %4214 = vsyncadd %s4197, %s4213
          %s4215 = smul.addr %s36, 2
          %s4216 = smul.addr %s4215, 128
          %s4217 = scalar_lea.hbm %s16, %s4216
          %s4218 = sshll.u32 %s4200, 4
          %s4219 = int_to_ptr.vmem [resolvable:$true] %s4218
          %4224 = dma.vmem_to_hbm [thread:$0]  %s4219, 256, %s4217, %s4197, 128, 128, 8
        $region88: #{graph_attention_encoder.1} parent=83 // pred_fallthru
          _
        // Predicated region
        $region89: #{graph_attention_encoder.1} parent=83 // pred_check
          %p4225 = pneg %p431
        $region90: #{graph_attention_encoder.1} parent=83 // pred_check_branch
          %4227 = sbr.rel (%p4225) target = $region92
        $region91: #{graph_attention_encoder.1} parent=83 // pred_region
          %s4229 = ssub.s32 16, 16
          %4230 = vsyncadd %s4202, %s4229
          %s4231 = smul.addr %s36, 16
          %s4232 = scalar_lea.hbm %s17, %s4231
          %s4234 = sshll.u32 %s4204, 4
          %s4235 = int_to_ptr.vmem [resolvable:$true] %s4234
          %4237 = dma.vmem_to_hbm [thread:$0]  %s4235, 16, %s4232, %s4202
        $region92: #{graph_attention_encoder.1} parent=83 // pred_fallthru
          _
        // Predicated region
        $region93: #{graph_attention_encoder.1} parent=83 // pred_check
          %p4238 = pneg %p457
        $region94: #{graph_attention_encoder.1} parent=83 // pred_check_branch
          %4240 = sbr.rel (%p4238) target = $region96
        $region95: #{graph_attention_encoder.1} parent=83 // pred_region
          _
        $region96: #{graph_attention_encoder.1} parent=83 // pred_fallthru
          _
      $region84: #{graph_attention_encoder.1} parent=5 // pred_fallthru
        _
      %p4241 = scmp.le.s32.totalorder 2, %s31
      // Predicated region
      $region97: #{graph_attention_encoder.1} parent=5 // pred_check
        %p4242 = pneg %p4241
      $region98: #{graph_attention_encoder.1} parent=5 // pred_check_branch
        %4244 = sbr.rel (%p4242) target = $region100
      $region99: #{graph_attention_encoder.1} parent=5 // pred_region
        %s4245 = ssub.s32 %s31, 2
        // Predicated region
        $region101: #{graph_attention_encoder.1} parent=99 // pred_check
          %p4246 = pneg %p411
        $region102: #{graph_attention_encoder.1} parent=99 // pred_check_branch
          %4248 = sbr.rel (%p4246) target = $region104
        $region103: #{graph_attention_encoder.1} parent=99 // pred_region
          %s4249 = sand.u32 %s396, 1
          %s4250 = scalar_lea.sflag [#allocation3], %s4249
          %s4251 = sand.u32 %s396, 1
          %s4252 = smul.addr %s4251, 16
          %s4253 = scalar_lea.vmem [#allocation2], %s4252
          %4254 = dma.done %s4250, 256
        $region104: #{graph_attention_encoder.1} parent=99 // pred_fallthru
          _
        // Predicated region
        $region105: #{graph_attention_encoder.1} parent=99 // pred_check
          %p4255 = pneg %p437
        $region106: #{graph_attention_encoder.1} parent=99 // pred_check_branch
          %4257 = sbr.rel (%p4255) target = $region108
        $region107: #{graph_attention_encoder.1} parent=99 // pred_region
          %s4258 = sand.u32 %s422, 1
          %s4259 = scalar_lea.sflag [#allocation5], %s4258
          %s4260 = sand.u32 %s422, 1
          %s4261 = scalar_lea.vmem [#allocation4], %s4260
          %4262 = dma.done %s4259, 16
        $region108: #{graph_attention_encoder.1} parent=99 // pred_fallthru
          _
        // Predicated region
        $region109: #{graph_attention_encoder.1} parent=99 // pred_check
          %p4263 = pneg %p463
        $region110: #{graph_attention_encoder.1} parent=99 // pred_check_branch
          %4265 = sbr.rel (%p4263) target = $region112
        $region111: #{graph_attention_encoder.1} parent=99 // pred_region
          %p4266 = scmp.lt.s32.totalorder %s37, 1
          %s4267 = scalar_select %p4266, %s37, 1
          %s4268 = smul.addr %s4267, 4
          %s4269 = scalar_lea.vmem %s18, %s4268
        $region112: #{graph_attention_encoder.1} parent=99 // pred_fallthru
          _
      $region100: #{graph_attention_encoder.1} parent=5 // pred_fallthru
        _
    $region6: #{graph_attention_encoder.1} parent=1 // loop_footer
      %s35 = sadd.s32 1, %s31
    $region7: #{graph_attention_encoder.1} parent=1 // loop_footer_branch
      %30 = sbr.rel target = $region3
    $region8: #{graph_attention_encoder.1} parent=1 // loop_exit
      _
    %4270 = vsyncpa [#allocation3], 1
    %s4271 = scalar_lea.sflag [#allocation3], 1
    %4272 = vsyncpa %s4271, 1
    %4273 = vsyncpa [#allocation5], 1
    %s4274 = scalar_lea.sflag [#allocation5], 1
    %4275 = vsyncpa %s4274, 1

</llo_original>
